<compile_context>
chip_gen: v6e
topology: v6e:2x2x1
jax: 0.10.0
libtpu: 0.0.40
codegen_flags: <defaults>
</compile_context>

<pallas_src>
import functools

import jax
import jax.numpy as jnp
from jax.experimental import pallas as pl
from jax.experimental.pallas import tpu as pltpu


# ----------------------------- config-equivalents ---------------------------
T_DIM = 32          # cfg.TEXT.DIMENSION
C_DIM = 8           # cfg.GAN.CONDITION_DIM
Z_DIM = 8           # cfg.Z_DIM
GF_DIM_BASE = 4     # cfg.GAN.GF_DIM
NGF = GF_DIM_BASE * 8          # gf_dim = 32
NINPUT = Z_DIM + C_DIM         # 16
BN_EPS = 1e-5


# ------------------------------ Pallas kernels ------------------------------

def _head_kernel(te_ref, noise_ref, eps_ref, caw_ref, cab_ref, fcw_ref, g_ref, b_ref,
                 h_ref, mu_ref, lv_ref, *, c_dim, inv_n):
    """CA_NET fc+ReLU -> split -> reparametrize -> concat -> fc -> BN1d(train) -> ReLU."""
    x = jnp.dot(te_ref[...], caw_ref[...], preferred_element_type=jnp.float32)
    x = jnp.maximum(x + cab_ref[...], 0.0)               # (N, 2*c_dim)
    mu = x[:, :c_dim]
    logvar = x[:, c_dim:]
    std = jnp.exp(0.5 * logvar)
    c_code = eps_ref[...] * std + mu                     # reparametrize (eps supplied)
    zc = jnp.concatenate([noise_ref[...], c_code], axis=1)
    h = jnp.dot(zc, fcw_ref[...], preferred_element_type=jnp.float32)   # (N, ngf*16)
    mean = jnp.sum(h, axis=0, keepdims=True) * inv_n
    cent = h - mean
    var = jnp.sum(cent * cent, axis=0, keepdims=True) * inv_n
    scale = g_ref[...] * jax.lax.rsqrt(var + BN_EPS)
    h_ref[...] = jnp.maximum(cent * scale + b_ref[...], 0.0)
    mu_ref[...] = mu
    lv_ref[...] = logvar


def _upblock_kernel(xcol_ref, w_ref, gb_ref, f_ref, o_ref, *, inv_count):
    """Fused (upsample+conv3x3) as subpixel matmul + BatchNorm2d(train) + ReLU.

    xcol_ref: (9*Cin, M) bf16   — im2col of the PRE-upsample image, M = N*H*W on lanes
    w_ref:    (4*Cout, 9*Cin) bf16 — 4 subpixel effective kernels, row = (a*2+b)*Cout+co
    gb_ref:   (4*Cout, 2) f32   — [gamma, beta] tiled per subpixel row
    f_ref:    (4*Cout, 4*Cout) f32 — fold matrix: 1 where rows share a BN channel
    o_ref:    (4*Cout, M) bf16  — lane-dense output, pixel-shuffled by the wrapper
    """
    y = jnp.dot(w_ref[...], xcol_ref[...], preferred_element_type=jnp.float32)   # (R, M) f32
    # Training-mode BN: per-channel stats pooled over the 4 subpixel row groups and M.
    # Reduce over M first (XLU), then pool same-channel rows with a tiny (R,R)@(R,1) matvec.
    row_sum = jnp.sum(y, axis=1, keepdims=True)                                   # (R, 1)
    mean = jnp.dot(f_ref[...], row_sum, preferred_element_type=jnp.float32) * inv_count
    cent = y - mean
    row_ss = jnp.sum(cent * cent, axis=1, keepdims=True)                          # (R, 1)
    var = jnp.dot(f_ref[...], row_ss, preferred_element_type=jnp.float32) * inv_count
    scale = gb_ref[:, 0:1] * jax.lax.rsqrt(var + BN_EPS)
    o_ref[...] = jnp.maximum(cent * scale + gb_ref[:, 1:2], 0.0).astype(o_ref.dtype)


def _img_kernel(xcol_ref, w_ref, o_ref):
    """conv3x3 (transposed, lane-dense) + tanh; one (batch, spatial-tile) block per step."""
    y = jnp.dot(w_ref[...], xcol_ref[...], preferred_element_type=jnp.float32)
    o_ref[...] = jnp.tanh(y)


# ------------------------------ wrappers / glue ------------------------------

# Row/col fold matrices for "nearest-x2 upsample followed by conv3x3(pad=1)":
# out[2i+a, 2j+b] = sum_{d,e} w_eff[a,b,d,e] * x_pad1[i+d, j+e]   (d,e in {0,1,2})
_R_FOLD = jnp.array(
    [[[1., 0., 0.], [0., 1., 1.], [0., 0., 0.]],     # a = 0
     [[0., 0., 0.], [1., 1., 0.], [0., 0., 1.]]],    # a = 1
    dtype=jnp.float32)


def _fold_upsample_weight(w):
    """(3,3,Cin,Cout) conv weight -> (4*Cout, 9*Cin) subpixel-folded weight."""
    cin, cout = w.shape[2], w.shape[3]
    w_eff = jnp.einsum('ady,bex,yxio->abdeio', _R_FOLD, _R_FOLD, w)  # (2,2,3,3,Cin,Cout)
    return w_eff.transpose(0, 1, 5, 2, 3, 4).reshape(4 * cout, 9 * cin)


def _im2col_T(x_cfirst):
    """(C, N, H, W) -> (9*C, N*H*W): 3x3 taps stacked along rows (tap-major, channel-minor)."""
    c, n, h, w = x_cfirst.shape
    xp = jnp.pad(x_cfirst, ((0, 0), (0, 0), (1, 1), (1, 1)))
    taps = [xp[:, :, dy:dy + h, dx:dx + w] for dy in range(3) for dx in range(3)]
    return jnp.concatenate(taps, axis=0).reshape(9 * c, n * h * w)


def _pixel_shuffle(y, cout, n, h, w):
    """(4*Cout, N*H*W) subpixel rows (g = a*2+b) -> (Cout, N, 2H, 2W)."""
    y = y.reshape(2, 2, cout, n, h, w)            # (a, b, co, n, i, j)
    y = y.transpose(2, 3, 4, 0, 5, 1)             # (co, n, i, a, j, b)
    return y.reshape(cout, n, 2 * h, 2 * w)


def pallas_head(text_embedding, noise, eps, ca_w, ca_b, fc_w, fc_g, fc_b):
    n = text_embedding.shape[0]
    return pl.pallas_call(
        functools.partial(_head_kernel, c_dim=C_DIM, inv_n=1.0 / n),
        out_shape=(
            jax.ShapeDtypeStruct((n, NGF * 16), jnp.float32),
            jax.ShapeDtypeStruct((n, C_DIM), jnp.float32),
            jax.ShapeDtypeStruct((n, C_DIM), jnp.float32),
        ),
    )(text_embedding, noise, eps, ca_w, ca_b.reshape(1, -1), fc_w,
      fc_g.reshape(1, -1), fc_b.reshape(1, -1))


def pallas_up_block(x_cfirst, w, gamma, beta):
    """upBlock: Upsample(x2 nearest) -> conv3x3 -> BatchNorm2d(train) -> ReLU.

    x_cfirst: (Cin, N, H, W) bf16.  Returns (Cout, N, 2H, 2W) bf16.
    """
    cin, n, h, w_sp = x_cfirst.shape
    cout = w.shape[3]
    m = n * h * w_sp
    xcol = _im2col_T(x_cfirst).astype(jnp.bfloat16)                   # (9*Cin, M)
    w_all = _fold_upsample_weight(w).astype(jnp.bfloat16)             # (4*Cout, 9*Cin)
    gb = jnp.stack([jnp.tile(gamma, 4), jnp.tile(beta, 4)], axis=1)   # (4*Cout, 2) f32
    idx = jnp.arange(4 * cout) % cout
    fold = (idx[:, None] == idx[None, :]).astype(jnp.float32)         # (4*Cout, 4*Cout)
    y = pl.pallas_call(
        functools.partial(_upblock_kernel, inv_count=1.0 / (4.0 * m)),
        out_shape=jax.ShapeDtypeStruct((4 * cout, m), jnp.bfloat16),
    )(xcol, w_all, gb, fold)
    return _pixel_shuffle(y, cout, n, h, w_sp)


def pallas_img_head(x_cfirst, w):
    """img head: conv3x3 -> tanh, written directly in (N, 3, H*W) layout (-> NCHW free)."""
    cin, n, h, w_sp = x_cfirst.shape
    cout = w.shape[3]
    m_per_n = h * w_sp
    xcol = _im2col_T(x_cfirst).astype(jnp.bfloat16)                   # (9*Cin, N*H*W), n-major
    w_col = w.transpose(3, 0, 1, 2).reshape(cout, 9 * cin).astype(jnp.bfloat16)
    tile = 2048 if (m_per_n % 2048 == 0) else m_per_n
    tiles_per_n = m_per_n // tile
    y = pl.pallas_call(
        _img_kernel,
        out_shape=jax.ShapeDtypeStruct((n, cout, m_per_n), jnp.float32),
        grid=(n, tiles_per_n),
        in_specs=[
            pl.BlockSpec((9 * cin, tile), lambda b, i: (0, b * tiles_per_n + i)),
            pl.BlockSpec((cout, 9 * cin), lambda b, i: (0, 0)),
        ],
        out_specs=pl.BlockSpec((None, cout, tile), lambda b, i: (b, 0, i)),
        compiler_params=pltpu.CompilerParams(
            dimension_semantics=("parallel", "parallel")),
    )(xcol, w_col)
    return y.reshape(n, cout, h, w_sp)                                # NCHW


# ------------------------------- parameters ---------------------------------

def init_params(key):
    ks = jax.random.split(key, 8)
    s = 0.1
    p = {
        # CA_NET.fc : Linear(t_dim, 2*c_dim, bias=True)
        "ca_w": s * jax.random.normal(ks[0], (T_DIM, 2 * C_DIM), jnp.float32),
        "ca_b": s * jax.random.normal(ks[1], (2 * C_DIM,), jnp.float32),
        # main fc : Linear(ninput, ngf*4*4, bias=False) + BN1d
        "fc_w": s * jax.random.normal(ks[2], (NINPUT, NGF * 4 * 4), jnp.float32),
        "fc_bn_g": jnp.ones((NGF * 4 * 4,), jnp.float32),
        "fc_bn_b": jnp.zeros((NGF * 4 * 4,), jnp.float32),
        # final img conv3x3(ngf//16 -> 3), weight layout (kh, kw, Cin, Cout)
        "img_w": s * jax.random.normal(ks[7], (3, 3, NGF // 16, 3), jnp.float32),
    }
    chans = [NGF, NGF // 2, NGF // 4, NGF // 8, NGF // 16]
    for i in range(4):
        cin, cout = chans[i], chans[i + 1]
        p[f"up{i + 1}_w"] = s * jax.random.normal(ks[3 + i], (3, 3, cin, cout), jnp.float32)
        p[f"up{i + 1}_bn_g"] = jnp.ones((cout,), jnp.float32)
        p[f"up{i + 1}_bn_b"] = jnp.zeros((cout,), jnp.float32)
    return p


# --------------------------------- forward ----------------------------------

def stage1g_resblock_forward(params, text_embedding, noise, eps):
    n = text_embedding.shape[0]

    # CA_NET + reparametrize + concat + fc + BN1d + ReLU in one kernel.
    h, mu, logvar = pallas_head(text_embedding, noise, eps,
                                params["ca_w"], params["ca_b"],
                                params["fc_w"], params["fc_bn_g"], params["fc_bn_b"])

    # view(-1, ngf, 4, 4) (NCHW), then channels-first-of-batch (C, N, H, W) in bf16.
    h = h.reshape(n, NGF, 4, 4).transpose(1, 0, 2, 3).astype(jnp.bfloat16)

    # four upBlocks: 4 -> 8 -> 16 -> 32 -> 64
    for i in range(1, 5):
        h = pallas_up_block(h, params[f"up{i}_w"],
                            params[f"up{i}_bn_g"], params[f"up{i}_bn_b"])

    # img head: conv3x3 -> tanh; output already NCHW (N, 3, 64, 64).
    fake_img = pallas_img_head(h, params["img_w"])

    return None, fake_img, mu, logvar


# ----------------------------------- main ------------------------------------

if __name__ == "__main__":
    key = jax.random.PRNGKey(0)
    kp, kt, kn, ke = jax.random.split(key, 4)

    params = init_params(kp)
    batch = 2
    text_embedding = jax.random.normal(kt, (batch, T_DIM), jnp.float32)
    noise = jax.random.normal(kn, (batch, Z_DIM), jnp.float32)
    eps = jax.random.normal(ke, (batch, C_DIM), jnp.float32)     # reparam noise

    fwd = jax.jit(stage1g_resblock_forward)
    _, fake_img, mu, logvar = fwd(params, text_embedding, noise, eps)
    fake_img = jax.block_until_ready(fake_img)

    assert fake_img.shape == (batch, 3, 64, 64), fake_img.shape
    assert mu.shape == (batch, C_DIM) and logvar.shape == (batch, C_DIM)
    assert bool(jnp.all(jnp.isfinite(fake_img)))
    print("KERNEL_OK")
</pallas_src>

<mosaic_0001>
module attributes {stable_mosaic.version = 11 : i64} {
  func.func @_head_kernel(%arg0: memref<2x32xf32, #tpu.memory_space<vmem>>, %arg1: memref<2x8xf32, #tpu.memory_space<vmem>>, %arg2: memref<2x8xf32, #tpu.memory_space<vmem>>, %arg3: memref<32x16xf32, #tpu.memory_space<vmem>>, %arg4: memref<1x16xf32, #tpu.memory_space<vmem>>, %arg5: memref<16x512xf32, #tpu.memory_space<vmem>>, %arg6: memref<1x512xf32, #tpu.memory_space<vmem>>, %arg7: memref<1x512xf32, #tpu.memory_space<vmem>>, %arg8: memref<2x512xf32, #tpu.memory_space<vmem>>, %arg9: memref<2x8xf32, #tpu.memory_space<vmem>>, %arg10: memref<2x8xf32, #tpu.memory_space<vmem>>) attributes {dimension_semantics = [], scalar_prefetch = 0 : i64, scratch_operands = 0 : i64, tpu.core_type = #tpu.core_type<tc>} {
    %c0 = arith.constant 0 : index
    %c0_0 = arith.constant 0 : index
    %0 = vector.load %arg0[%c0, %c0_0] : memref<2x32xf32, #tpu.memory_space<vmem>>, vector<2x32xf32>
    %c0_1 = arith.constant 0 : index
    %c0_2 = arith.constant 0 : index
    %1 = vector.load %arg3[%c0_1, %c0_2] : memref<32x16xf32, #tpu.memory_space<vmem>>, vector<32x16xf32>
    %cst = arith.constant dense<0.000000e+00> : vector<2x16xf32>
    %2 = tpu.matmul %0, %1, %cst {dimension_numbers = #tpu.dot_dimension_numbers<[1], [0], [0], [1], [0, 0, 1, 1], [], []>} : vector<2x32xf32>, vector<32x16xf32>, vector<2x16xf32> -> vector<2x16xf32>
    %c0_3 = arith.constant 0 : index
    %c0_4 = arith.constant 0 : index
    %3 = vector.load %arg4[%c0_3, %c0_4] : memref<1x16xf32, #tpu.memory_space<vmem>>, vector<1x16xf32>
    %4 = vector.broadcast %3 : vector<1x16xf32> to vector<2x16xf32>
    %5 = arith.addf %2, %4 : vector<2x16xf32>
    %cst_5 = arith.constant 0.000000e+00 : f32
    %6 = vector.broadcast %cst_5 : f32 to vector<2x16xf32>
    %7 = arith.maximumf %5, %6 : vector<2x16xf32>
    %8 = vector.extract_strided_slice %7 {offsets = [0, 0], sizes = [2, 8], strides = [1, 1]} : vector<2x16xf32> to vector<2x8xf32>
    %9 = vector.extract_strided_slice %7 {offsets = [0, 8], sizes = [2, 8], strides = [1, 1]} : vector<2x16xf32> to vector<2x8xf32>
    %cst_6 = arith.constant 5.000000e-01 : f32
    %10 = vector.broadcast %cst_6 : f32 to vector<2x8xf32>
    %11 = arith.mulf %10, %9 : vector<2x8xf32>
    %12 = math.exp %11 : vector<2x8xf32>
    %c0_7 = arith.constant 0 : index
    %c0_8 = arith.constant 0 : index
    %13 = vector.load %arg2[%c0_7, %c0_8] : memref<2x8xf32, #tpu.memory_space<vmem>>, vector<2x8xf32>
    %14 = arith.mulf %13, %12 : vector<2x8xf32>
    %15 = arith.addf %14, %8 : vector<2x8xf32>
    %c0_9 = arith.constant 0 : index
    %c0_10 = arith.constant 0 : index
    %16 = vector.load %arg1[%c0_9, %c0_10] : memref<2x8xf32, #tpu.memory_space<vmem>>, vector<2x8xf32>
    %17 = tpu.concatenate %16, %15 in 1 : vector<2x8xf32>, vector<2x8xf32> -> vector<2x16xf32>
    %c0_11 = arith.constant 0 : index
    %c0_12 = arith.constant 0 : index
    %18 = vector.load %arg5[%c0_11, %c0_12] : memref<16x512xf32, #tpu.memory_space<vmem>>, vector<16x512xf32>
    %cst_13 = arith.constant dense<0.000000e+00> : vector<2x512xf32>
    %19 = tpu.matmul %17, %18, %cst_13 {dimension_numbers = #tpu.dot_dimension_numbers<[1], [0], [0], [1], [0, 0, 1, 1], [], []>} : vector<2x16xf32>, vector<16x512xf32>, vector<2x512xf32> -> vector<2x512xf32>
    %cst_14 = arith.constant dense<0.000000e+00> : vector<512xf32>
    %20 = vector.multi_reduction <add>, %19, %cst_14 [0] : vector<2x512xf32> to vector<512xf32>
    %21 = vector.shape_cast %20 : vector<512xf32> to vector<1x512xf32>
    %cst_15 = arith.constant 5.000000e-01 : f32
    %22 = vector.broadcast %cst_15 : f32 to vector<1x512xf32>
    %23 = arith.mulf %21, %22 : vector<1x512xf32>
    %24 = vector.broadcast %23 : vector<1x512xf32> to vector<2x512xf32>
    %25 = arith.subf %19, %24 : vector<2x512xf32>
    %26 = arith.mulf %25, %25 : vector<2x512xf32>
    %cst_16 = arith.constant dense<0.000000e+00> : vector<512xf32>
    %27 = vector.multi_reduction <add>, %26, %cst_16 [0] : vector<2x512xf32> to vector<512xf32>
    %28 = vector.shape_cast %27 : vector<512xf32> to vector<1x512xf32>
    %cst_17 = arith.constant 5.000000e-01 : f32
    %29 = vector.broadcast %cst_17 : f32 to vector<1x512xf32>
    %30 = arith.mulf %28, %29 : vector<1x512xf32>
    %c0_18 = arith.constant 0 : index
    %c0_19 = arith.constant 0 : index
    %31 = vector.load %arg6[%c0_18, %c0_19] : memref<1x512xf32, #tpu.memory_space<vmem>>, vector<1x512xf32>
    %cst_20 = arith.constant 9.99999974E-6 : f32
    %32 = vector.broadcast %cst_20 : f32 to vector<1x512xf32>
    %33 = arith.addf %30, %32 : vector<1x512xf32>
    %34 = math.rsqrt %33 : vector<1x512xf32>
    %35 = arith.mulf %31, %34 : vector<1x512xf32>
    %36 = vector.broadcast %35 : vector<1x512xf32> to vector<2x512xf32>
    %37 = arith.mulf %25, %36 : vector<2x512xf32>
    %c0_21 = arith.constant 0 : index
    %c0_22 = arith.constant 0 : index
    %38 = vector.load %arg7[%c0_21, %c0_22] : memref<1x512xf32, #tpu.memory_space<vmem>>, vector<1x512xf32>
    %39 = vector.broadcast %38 : vector<1x512xf32> to vector<2x512xf32>
    %40 = arith.addf %37, %39 : vector<2x512xf32>
    %cst_23 = arith.constant 0.000000e+00 : f32
    %41 = vector.broadcast %cst_23 : f32 to vector<2x512xf32>
    %42 = arith.maximumf %40, %41 : vector<2x512xf32>
    %c0_24 = arith.constant 0 : index
    %c0_25 = arith.constant 0 : index
    %43 = vector.load %arg8[%c0_24, %c0_25] : memref<2x512xf32, #tpu.memory_space<vmem>>, vector<2x512xf32>
    tpu.vector_store %arg8[%c0_24, %c0_25], %42 {strides = array<i32>} : memref<2x512xf32, #tpu.memory_space<vmem>>, vector<2x512xf32>,
    %c0_26 = arith.constant 0 : index
    %c0_27 = arith.constant 0 : index
    %44 = vector.load %arg9[%c0_26, %c0_27] : memref<2x8xf32, #tpu.memory_space<vmem>>, vector<2x8xf32>
    tpu.vector_store %arg9[%c0_26, %c0_27], %8 {strides = array<i32>} : memref<2x8xf32, #tpu.memory_space<vmem>>, vector<2x8xf32>,
    %c0_28 = arith.constant 0 : index
    %c0_29 = arith.constant 0 : index
    %45 = vector.load %arg10[%c0_28, %c0_29] : memref<2x8xf32, #tpu.memory_space<vmem>>, vector<2x8xf32>
    tpu.vector_store %arg10[%c0_28, %c0_29], %9 {strides = array<i32>} : memref<2x8xf32, #tpu.memory_space<vmem>>, vector<2x8xf32>,
    return
  }
}

module attributes {stable_mosaic.version = 11 : i64} {
  func.func @_upblock_kernel(%arg0: memref<288x32xbf16, #tpu.memory_space<vmem>>, %arg1: memref<64x288xbf16, #tpu.memory_space<vmem>>, %arg2: memref<64x2xf32, #tpu.memory_space<vmem>>, %arg3: memref<64x64xf32, #tpu.memory_space<vmem>>, %arg4: memref<64x32xbf16, #tpu.memory_space<vmem>>) attributes {dimension_semantics = [], scalar_prefetch = 0 : i64, scratch_operands = 0 : i64, tpu.core_type = #tpu.core_type<tc>} {
    %c0 = arith.constant 0 : index
    %c0_0 = arith.constant 0 : index
    %0 = vector.load %arg1[%c0, %c0_0] : memref<64x288xbf16, #tpu.memory_space<vmem>>, vector<64x288xbf16>
    %c0_1 = arith.constant 0 : index
    %c0_2 = arith.constant 0 : index
    %1 = vector.load %arg0[%c0_1, %c0_2] : memref<288x32xbf16, #tpu.memory_space<vmem>>, vector<288x32xbf16>
    %cst = arith.constant dense<0.000000e+00> : vector<64x32xf32>
    %2 = tpu.matmul %0, %1, %cst {dimension_numbers = #tpu.dot_dimension_numbers<[1], [0], [0], [1], [0, 0, 1, 1], [], []>} : vector<64x288xbf16>, vector<288x32xbf16>, vector<64x32xf32> -> vector<64x32xf32>
    %cst_3 = arith.constant dense<0.000000e+00> : vector<64xf32>
    %3 = vector.multi_reduction <add>, %2, %cst_3 [1] : vector<64x32xf32> to vector<64xf32>
    %4 = vector.shape_cast %3 : vector<64xf32> to vector<64x1xf32>
    %c0_4 = arith.constant 0 : index
    %c0_5 = arith.constant 0 : index
    %5 = vector.load %arg3[%c0_4, %c0_5] : memref<64x64xf32, #tpu.memory_space<vmem>>, vector<64x64xf32>
    %cst_6 = arith.constant dense<0.000000e+00> : vector<64x1xf32>
    %6 = tpu.matmul %5, %4, %cst_6 {dimension_numbers = #tpu.dot_dimension_numbers<[1], [0], [0], [1], [0, 0, 1, 1], [], []>} : vector<64x64xf32>, vector<64x1xf32>, vector<64x1xf32> -> vector<64x1xf32>
    %cst_7 = arith.constant 7.812500e-03 : f32
    %7 = vector.broadcast %cst_7 : f32 to vector<64x1xf32>
    %8 = arith.mulf %6, %7 : vector<64x1xf32>
    %9 = vector.broadcast %8 : vector<64x1xf32> to vector<64x32xf32>
    %10 = arith.subf %2, %9 : vector<64x32xf32>
    %11 = arith.mulf %10, %10 : vector<64x32xf32>
    %cst_8 = arith.constant dense<0.000000e+00> : vector<64xf32>
    %12 = vector.multi_reduction <add>, %11, %cst_8 [1] : vector<64x32xf32> to vector<64xf32>
    %13 = vector.shape_cast %12 : vector<64xf32> to vector<64x1xf32>
    %c0_9 = arith.constant 0 : index
    %c0_10 = arith.constant 0 : index
    %14 = vector.load %arg3[%c0_9, %c0_10] : memref<64x64xf32, #tpu.memory_space<vmem>>, vector<64x64xf32>
    %cst_11 = arith.constant dense<0.000000e+00> : vector<64x1xf32>
    %15 = tpu.matmul %14, %13, %cst_11 {dimension_numbers = #tpu.dot_dimension_numbers<[1], [0], [0], [1], [0, 0, 1, 1], [], []>} : vector<64x64xf32>, vector<64x1xf32>, vector<64x1xf32> -> vector<64x1xf32>
    %cst_12 = arith.constant 7.812500e-03 : f32
    %16 = vector.broadcast %cst_12 : f32 to vector<64x1xf32>
    %17 = arith.mulf %15, %16 : vector<64x1xf32>
    %c0_13 = arith.constant 0 : index
    %c0_14 = arith.constant 0 : index
    %18 = vector.load %arg2[%c0_13, %c0_14] : memref<64x2xf32, #tpu.memory_space<vmem>>, vector<64x1xf32>
    %cst_15 = arith.constant 9.99999974E-6 : f32
    %19 = vector.broadcast %cst_15 : f32 to vector<64x1xf32>
    %20 = arith.addf %17, %19 : vector<64x1xf32>
    %21 = math.rsqrt %20 : vector<64x1xf32>
    %22 = arith.mulf %18, %21 : vector<64x1xf32>
    %23 = vector.broadcast %22 : vector<64x1xf32> to vector<64x32xf32>
    %24 = arith.mulf %10, %23 : vector<64x32xf32>
    %c0_16 = arith.constant 0 : index
    %c1 = arith.constant 1 : index
    %25 = vector.load %arg2[%c0_16, %c1] : memref<64x2xf32, #tpu.memory_space<vmem>>, vector<64x1xf32>
    %26 = vector.broadcast %25 : vector<64x1xf32> to vector<64x32xf32>
    %27 = arith.addf %24, %26 : vector<64x32xf32>
    %cst_17 = arith.constant 0.000000e+00 : f32
    %28 = vector.broadcast %cst_17 : f32 to vector<64x32xf32>
    %29 = arith.maximumf %27, %28 : vector<64x32xf32>
    %30 = arith.truncf %29 : vector<64x32xf32> to vector<64x32xbf16>
    %c0_18 = arith.constant 0 : index
    %c0_19 = arith.constant 0 : index
    %31 = vector.load %arg4[%c0_18, %c0_19] : memref<64x32xbf16, #tpu.memory_space<vmem>>, vector<64x32xbf16>
    tpu.vector_store %arg4[%c0_18, %c0_19], %30 {strides = array<i32>} : memref<64x32xbf16, #tpu.memory_space<vmem>>, vector<64x32xbf16>,
    return
  }
}

module attributes {stable_mosaic.version = 11 : i64} {
  func.func @_upblock_kernel(%arg0: memref<144x128xbf16, #tpu.memory_space<vmem>>, %arg1: memref<32x144xbf16, #tpu.memory_space<vmem>>, %arg2: memref<32x2xf32, #tpu.memory_space<vmem>>, %arg3: memref<32x32xf32, #tpu.memory_space<vmem>>, %arg4: memref<32x128xbf16, #tpu.memory_space<vmem>>) attributes {dimension_semantics = [], scalar_prefetch = 0 : i64, scratch_operands = 0 : i64, tpu.core_type = #tpu.core_type<tc>} {
    %c0 = arith.constant 0 : index
    %c0_0 = arith.constant 0 : index
    %0 = vector.load %arg1[%c0, %c0_0] : memref<32x144xbf16, #tpu.memory_space<vmem>>, vector<32x144xbf16>
    %c0_1 = arith.constant 0 : index
    %c0_2 = arith.constant 0 : index
    %1 = vector.load %arg0[%c0_1, %c0_2] : memref<144x128xbf16, #tpu.memory_space<vmem>>, vector<144x128xbf16>
    %cst = arith.constant dense<0.000000e+00> : vector<32x128xf32>
    %2 = tpu.matmul %0, %1, %cst {dimension_numbers = #tpu.dot_dimension_numbers<[1], [0], [0], [1], [0, 0, 1, 1], [], []>} : vector<32x144xbf16>, vector<144x128xbf16>, vector<32x128xf32> -> vector<32x128xf32>
    %cst_3 = arith.constant dense<0.000000e+00> : vector<32xf32>
    %3 = vector.multi_reduction <add>, %2, %cst_3 [1] : vector<32x128xf32> to vector<32xf32>
    %4 = vector.shape_cast %3 : vector<32xf32> to vector<32x1xf32>
    %c0_4 = arith.constant 0 : index
    %c0_5 = arith.constant 0 : index
    %5 = vector.load %arg3[%c0_4, %c0_5] : memref<32x32xf32, #tpu.memory_space<vmem>>, vector<32x32xf32>
    %cst_6 = arith.constant dense<0.000000e+00> : vector<32x1xf32>
    %6 = tpu.matmul %5, %4, %cst_6 {dimension_numbers = #tpu.dot_dimension_numbers<[1], [0], [0], [1], [0, 0, 1, 1], [], []>} : vector<32x32xf32>, vector<32x1xf32>, vector<32x1xf32> -> vector<32x1xf32>
    %cst_7 = arith.constant 0.001953125 : f32
    %7 = vector.broadcast %cst_7 : f32 to vector<32x1xf32>
    %8 = arith.mulf %6, %7 : vector<32x1xf32>
    %9 = vector.broadcast %8 : vector<32x1xf32> to vector<32x128xf32>
    %10 = arith.subf %2, %9 : vector<32x128xf32>
    %11 = arith.mulf %10, %10 : vector<32x128xf32>
    %cst_8 = arith.constant dense<0.000000e+00> : vector<32xf32>
    %12 = vector.multi_reduction <add>, %11, %cst_8 [1] : vector<32x128xf32> to vector<32xf32>
    %13 = vector.shape_cast %12 : vector<32xf32> to vector<32x1xf32>
    %c0_9 = arith.constant 0 : index
    %c0_10 = arith.constant 0 : index
    %14 = vector.load %arg3[%c0_9, %c0_10] : memref<32x32xf32, #tpu.memory_space<vmem>>, vector<32x32xf32>
    %cst_11 = arith.constant dense<0.000000e+00> : vector<32x1xf32>
    %15 = tpu.matmul %14, %13, %cst_11 {dimension_numbers = #tpu.dot_dimension_numbers<[1], [0], [0], [1], [0, 0, 1, 1], [], []>} : vector<32x32xf32>, vector<32x1xf32>, vector<32x1xf32> -> vector<32x1xf32>
    %cst_12 = arith.constant 0.001953125 : f32
    %16 = vector.broadcast %cst_12 : f32 to vector<32x1xf32>
    %17 = arith.mulf %15, %16 : vector<32x1xf32>
    %c0_13 = arith.constant 0 : index
    %c0_14 = arith.constant 0 : index
    %18 = vector.load %arg2[%c0_13, %c0_14] : memref<32x2xf32, #tpu.memory_space<vmem>>, vector<32x1xf32>
    %cst_15 = arith.constant 9.99999974E-6 : f32
    %19 = vector.broadcast %cst_15 : f32 to vector<32x1xf32>
    %20 = arith.addf %17, %19 : vector<32x1xf32>
    %21 = math.rsqrt %20 : vector<32x1xf32>
    %22 = arith.mulf %18, %21 : vector<32x1xf32>
    %23 = vector.broadcast %22 : vector<32x1xf32> to vector<32x128xf32>
    %24 = arith.mulf %10, %23 : vector<32x128xf32>
    %c0_16 = arith.constant 0 : index
    %c1 = arith.constant 1 : index
    %25 = vector.load %arg2[%c0_16, %c1] : memref<32x2xf32, #tpu.memory_space<vmem>>, vector<32x1xf32>
    %26 = vector.broadcast %25 : vector<32x1xf32> to vector<32x128xf32>
    %27 = arith.addf %24, %26 : vector<32x128xf32>
    %cst_17 = arith.constant 0.000000e+00 : f32
    %28 = vector.broadcast %cst_17 : f32 to vector<32x128xf32>
    %29 = arith.maximumf %27, %28 : vector<32x128xf32>
    %30 = arith.truncf %29 : vector<32x128xf32> to vector<32x128xbf16>
    %c0_18 = arith.constant 0 : index
    %c0_19 = arith.constant 0 : index
    %31 = vector.load %arg4[%c0_18, %c0_19] : memref<32x128xbf16, #tpu.memory_space<vmem>>, vector<32x128xbf16>
    tpu.vector_store %arg4[%c0_18, %c0_19], %30 {strides = array<i32>} : memref<32x128xbf16, #tpu.memory_space<vmem>>, vector<32x128xbf16>,
    return
  }
}

module attributes {stable_mosaic.version = 11 : i64} {
  func.func @_upblock_kernel(%arg0: memref<72x512xbf16, #tpu.memory_space<vmem>>, %arg1: memref<16x72xbf16, #tpu.memory_space<vmem>>, %arg2: memref<16x2xf32, #tpu.memory_space<vmem>>, %arg3: memref<16x16xf32, #tpu.memory_space<vmem>>, %arg4: memref<16x512xbf16, #tpu.memory_space<vmem>>) attributes {dimension_semantics = [], scalar_prefetch = 0 : i64, scratch_operands = 0 : i64, tpu.core_type = #tpu.core_type<tc>} {
    %c0 = arith.constant 0 : index
    %c0_0 = arith.constant 0 : index
    %0 = vector.load %arg1[%c0, %c0_0] : memref<16x72xbf16, #tpu.memory_space<vmem>>, vector<16x72xbf16>
    %c0_1 = arith.constant 0 : index
    %c0_2 = arith.constant 0 : index
    %1 = vector.load %arg0[%c0_1, %c0_2] : memref<72x512xbf16, #tpu.memory_space<vmem>>, vector<72x512xbf16>
    %cst = arith.constant dense<0.000000e+00> : vector<16x512xf32>
    %2 = tpu.matmul %0, %1, %cst {dimension_numbers = #tpu.dot_dimension_numbers<[1], [0], [0], [1], [0, 0, 1, 1], [], []>} : vector<16x72xbf16>, vector<72x512xbf16>, vector<16x512xf32> -> vector<16x512xf32>
    %cst_3 = arith.constant dense<0.000000e+00> : vector<16xf32>
    %3 = vector.multi_reduction <add>, %2, %cst_3 [1] : vector<16x512xf32> to vector<16xf32>
    %4 = vector.shape_cast %3 : vector<16xf32> to vector<16x1xf32>
    %c0_4 = arith.constant 0 : index
    %c0_5 = arith.constant 0 : index
    %5 = vector.load %arg3[%c0_4, %c0_5] : memref<16x16xf32, #tpu.memory_space<vmem>>, vector<16x16xf32>
    %cst_6 = arith.constant dense<0.000000e+00> : vector<16x1xf32>
    %6 = tpu.matmul %5, %4, %cst_6 {dimension_numbers = #tpu.dot_dimension_numbers<[1], [0], [0], [1], [0, 0, 1, 1], [], []>} : vector<16x16xf32>, vector<16x1xf32>, vector<16x1xf32> -> vector<16x1xf32>
    %cst_7 = arith.constant 4.8828125E-4 : f32
    %7 = vector.broadcast %cst_7 : f32 to vector<16x1xf32>
    %8 = arith.mulf %6, %7 : vector<16x1xf32>
    %9 = vector.broadcast %8 : vector<16x1xf32> to vector<16x512xf32>
    %10 = arith.subf %2, %9 : vector<16x512xf32>
    %11 = arith.mulf %10, %10 : vector<16x512xf32>
    %cst_8 = arith.constant dense<0.000000e+00> : vector<16xf32>
    %12 = vector.multi_reduction <add>, %11, %cst_8 [1] : vector<16x512xf32> to vector<16xf32>
    %13 = vector.shape_cast %12 : vector<16xf32> to vector<16x1xf32>
    %c0_9 = arith.constant 0 : index
    %c0_10 = arith.constant 0 : index
    %14 = vector.load %arg3[%c0_9, %c0_10] : memref<16x16xf32, #tpu.memory_space<vmem>>, vector<16x16xf32>
    %cst_11 = arith.constant dense<0.000000e+00> : vector<16x1xf32>
    %15 = tpu.matmul %14, %13, %cst_11 {dimension_numbers = #tpu.dot_dimension_numbers<[1], [0], [0], [1], [0, 0, 1, 1], [], []>} : vector<16x16xf32>, vector<16x1xf32>, vector<16x1xf32> -> vector<16x1xf32>
    %cst_12 = arith.constant 4.8828125E-4 : f32
    %16 = vector.broadcast %cst_12 : f32 to vector<16x1xf32>
    %17 = arith.mulf %15, %16 : vector<16x1xf32>
    %c0_13 = arith.constant 0 : index
    %c0_14 = arith.constant 0 : index
    %18 = vector.load %arg2[%c0_13, %c0_14] : memref<16x2xf32, #tpu.memory_space<vmem>>, vector<16x1xf32>
    %cst_15 = arith.constant 9.99999974E-6 : f32
    %19 = vector.broadcast %cst_15 : f32 to vector<16x1xf32>
    %20 = arith.addf %17, %19 : vector<16x1xf32>
    %21 = math.rsqrt %20 : vector<16x1xf32>
    %22 = arith.mulf %18, %21 : vector<16x1xf32>
    %23 = vector.broadcast %22 : vector<16x1xf32> to vector<16x512xf32>
    %24 = arith.mulf %10, %23 : vector<16x512xf32>
    %c0_16 = arith.constant 0 : index
    %c1 = arith.constant 1 : index
    %25 = vector.load %arg2[%c0_16, %c1] : memref<16x2xf32, #tpu.memory_space<vmem>>, vector<16x1xf32>
    %26 = vector.broadcast %25 : vector<16x1xf32> to vector<16x512xf32>
    %27 = arith.addf %24, %26 : vector<16x512xf32>
    %cst_17 = arith.constant 0.000000e+00 : f32
    %28 = vector.broadcast %cst_17 : f32 to vector<16x512xf32>
    %29 = arith.maximumf %27, %28 : vector<16x512xf32>
    %30 = arith.truncf %29 : vector<16x512xf32> to vector<16x512xbf16>
    %c0_18 = arith.constant 0 : index
    %c0_19 = arith.constant 0 : index
    %31 = vector.load %arg4[%c0_18, %c0_19] : memref<16x512xbf16, #tpu.memory_space<vmem>>, vector<16x512xbf16>
    tpu.vector_store %arg4[%c0_18, %c0_19], %30 {strides = array<i32>} : memref<16x512xbf16, #tpu.memory_space<vmem>>, vector<16x512xbf16>,
    return
  }
}

module attributes {stable_mosaic.version = 11 : i64} {
  func.func @_upblock_kernel(%arg0: memref<36x2048xbf16, #tpu.memory_space<vmem>>, %arg1: memref<8x36xbf16, #tpu.memory_space<vmem>>, %arg2: memref<8x2xf32, #tpu.memory_space<vmem>>, %arg3: memref<8x8xf32, #tpu.memory_space<vmem>>, %arg4: memref<8x2048xbf16, #tpu.memory_space<vmem>>) attributes {dimension_semantics = [], scalar_prefetch = 0 : i64, scratch_operands = 0 : i64, tpu.core_type = #tpu.core_type<tc>} {
    %c0 = arith.constant 0 : index
    %c0_0 = arith.constant 0 : index
    %0 = vector.load %arg1[%c0, %c0_0] : memref<8x36xbf16, #tpu.memory_space<vmem>>, vector<8x36xbf16>
    %c0_1 = arith.constant 0 : index
    %c0_2 = arith.constant 0 : index
    %1 = vector.load %arg0[%c0_1, %c0_2] : memref<36x2048xbf16, #tpu.memory_space<vmem>>, vector<36x2048xbf16>
    %cst = arith.constant dense<0.000000e+00> : vector<8x2048xf32>
    %2 = tpu.matmul %0, %1, %cst {dimension_numbers = #tpu.dot_dimension_numbers<[1], [0], [0], [1], [0, 0, 1, 1], [], []>} : vector<8x36xbf16>, vector<36x2048xbf16>, vector<8x2048xf32> -> vector<8x2048xf32>
    %cst_3 = arith.constant dense<0.000000e+00> : vector<8xf32>
    %3 = vector.multi_reduction <add>, %2, %cst_3 [1] : vector<8x2048xf32> to vector<8xf32>
    %4 = vector.shape_cast %3 : vector<8xf32> to vector<8x1xf32>
    %c0_4 = arith.constant 0 : index
    %c0_5 = arith.constant 0 : index
    %5 = vector.load %arg3[%c0_4, %c0_5] : memref<8x8xf32, #tpu.memory_space<vmem>>, vector<8x8xf32>
    %cst_6 = arith.constant dense<0.000000e+00> : vector<8x1xf32>
    %6 = tpu.matmul %5, %4, %cst_6 {dimension_numbers = #tpu.dot_dimension_numbers<[1], [0], [0], [1], [0, 0, 1, 1], [], []>} : vector<8x8xf32>, vector<8x1xf32>, vector<8x1xf32> -> vector<8x1xf32>
    %cst_7 = arith.constant 1.22070313E-4 : f32
    %7 = vector.broadcast %cst_7 : f32 to vector<8x1xf32>
    %8 = arith.mulf %6, %7 : vector<8x1xf32>
    %9 = vector.broadcast %8 : vector<8x1xf32> to vector<8x2048xf32>
    %10 = arith.subf %2, %9 : vector<8x2048xf32>
    %11 = arith.mulf %10, %10 : vector<8x2048xf32>
    %cst_8 = arith.constant dense<0.000000e+00> : vector<8xf32>
    %12 = vector.multi_reduction <add>, %11, %cst_8 [1] : vector<8x2048xf32> to vector<8xf32>
    %13 = vector.shape_cast %12 : vector<8xf32> to vector<8x1xf32>
    %c0_9 = arith.constant 0 : index
    %c0_10 = arith.constant 0 : index
    %14 = vector.load %arg3[%c0_9, %c0_10] : memref<8x8xf32, #tpu.memory_space<vmem>>, vector<8x8xf32>
    %cst_11 = arith.constant dense<0.000000e+00> : vector<8x1xf32>
    %15 = tpu.matmul %14, %13, %cst_11 {dimension_numbers = #tpu.dot_dimension_numbers<[1], [0], [0], [1], [0, 0, 1, 1], [], []>} : vector<8x8xf32>, vector<8x1xf32>, vector<8x1xf32> -> vector<8x1xf32>
    %cst_12 = arith.constant 1.22070313E-4 : f32
    %16 = vector.broadcast %cst_12 : f32 to vector<8x1xf32>
    %17 = arith.mulf %15, %16 : vector<8x1xf32>
    %c0_13 = arith.constant 0 : index
    %c0_14 = arith.constant 0 : index
    %18 = vector.load %arg2[%c0_13, %c0_14] : memref<8x2xf32, #tpu.memory_space<vmem>>, vector<8x1xf32>
    %cst_15 = arith.constant 9.99999974E-6 : f32
    %19 = vector.broadcast %cst_15 : f32 to vector<8x1xf32>
    %20 = arith.addf %17, %19 : vector<8x1xf32>
    %21 = math.rsqrt %20 : vector<8x1xf32>
    %22 = arith.mulf %18, %21 : vector<8x1xf32>
    %23 = vector.broadcast %22 : vector<8x1xf32> to vector<8x2048xf32>
    %24 = arith.mulf %10, %23 : vector<8x2048xf32>
    %c0_16 = arith.constant 0 : index
    %c1 = arith.constant 1 : index
    %25 = vector.load %arg2[%c0_16, %c1] : memref<8x2xf32, #tpu.memory_space<vmem>>, vector<8x1xf32>
    %26 = vector.broadcast %25 : vector<8x1xf32> to vector<8x2048xf32>
    %27 = arith.addf %24, %26 : vector<8x2048xf32>
    %cst_17 = arith.constant 0.000000e+00 : f32
    %28 = vector.broadcast %cst_17 : f32 to vector<8x2048xf32>
    %29 = arith.maximumf %27, %28 : vector<8x2048xf32>
    %30 = arith.truncf %29 : vector<8x2048xf32> to vector<8x2048xbf16>
    %c0_18 = arith.constant 0 : index
    %c0_19 = arith.constant 0 : index
    %31 = vector.load %arg4[%c0_18, %c0_19] : memref<8x2048xbf16, #tpu.memory_space<vmem>>, vector<8x2048xbf16>
    tpu.vector_store %arg4[%c0_18, %c0_19], %30 {strides = array<i32>} : memref<8x2048xbf16, #tpu.memory_space<vmem>>, vector<8x2048xbf16>,
    return
  }
}

module attributes {stable_mosaic.version = 11 : i64} {
  func.func @_img_kernel(%arg0: i32, %arg1: i32, %arg2: memref<18x2048xbf16, #tpu.memory_space<vmem>>, %arg3: memref<3x18xbf16, #tpu.memory_space<vmem>>, %arg4: memref<1x3x2048xf32, #tpu.memory_space<vmem>>) attributes {dimension_semantics = [#tpu.dimension_semantics<parallel>, #tpu.dimension_semantics<parallel>], iteration_bounds = array<i64: 2, 2>, scalar_prefetch = 0 : i64, scratch_operands = 0 : i64, tpu.core_type = #tpu.core_type<tc>, window_params = [{transform_indices = @transform_0, window_bounds = array<i64: 18, 2048>}, {pipeline_mode = #tpu.pipeline_mode<synchronous>, transform_indices = @transform_1, window_bounds = array<i64: 3, 18>}, {transform_indices = @transform_2, window_bounds = array<i64: 1, 3, 2048>}]} {
    %c0 = arith.constant 0 : index
    %c0_0 = arith.constant 0 : index
    %0 = vector.load %arg3[%c0, %c0_0] : memref<3x18xbf16, #tpu.memory_space<vmem>>, vector<3x18xbf16>
    %c0_1 = arith.constant 0 : index
    %c0_2 = arith.constant 0 : index
    %1 = vector.load %arg2[%c0_1, %c0_2] : memref<18x2048xbf16, #tpu.memory_space<vmem>>, vector<18x2048xbf16>
    %cst = arith.constant dense<0.000000e+00> : vector<3x2048xf32>
    %2 = tpu.matmul %0, %1, %cst {dimension_numbers = #tpu.dot_dimension_numbers<[1], [0], [0], [1], [0, 0, 1, 1], [], []>} : vector<3x18xbf16>, vector<18x2048xbf16>, vector<3x2048xf32> -> vector<3x2048xf32>
    %3 = math.tanh %2 : vector<3x2048xf32>
    %c0_3 = arith.constant 0 : index
    %c0_4 = arith.constant 0 : index
    %c0_5 = arith.constant 0 : index
    %4 = vector.load %arg4[%c0_3, %c0_4, %c0_5] : memref<1x3x2048xf32, #tpu.memory_space<vmem>>, vector<1x3x2048xf32>
    %5 = vector.shape_cast %4 : vector<1x3x2048xf32> to vector<3x2048xf32>
    %6 = vector.shape_cast %3 : vector<3x2048xf32> to vector<1x3x2048xf32>
    tpu.vector_store %arg4[%c0_3, %c0_4, %c0_5], %6 {strides = array<i32>} : memref<1x3x2048xf32, #tpu.memory_space<vmem>>, vector<1x3x2048xf32>,
    return
  }
  func.func @transform_0(%arg0: i32, %arg1: i32) -> (i32, i32) {
    %c2_i32 = arith.constant 2 : i32
    %0 = arith.muli %arg0, %c2_i32 : i32
    %1 = arith.addi %0, %arg1 : i32
    %c0_i32 = arith.constant 0 : i32
    %c0_i32_0 = arith.constant 0 : i32
    return %c0_i32, %1 : i32, i32
  }
  func.func @transform_1(%arg0: i32, %arg1: i32) -> (i32, i32) {
    %c0_i32 = arith.constant 0 : i32
    %c0_i32_0 = arith.constant 0 : i32
    %c0_i32_1 = arith.constant 0 : i32
    return %c0_i32, %c0_i32_0 : i32, i32
  }
  func.func @transform_2(%arg0: i32, %arg1: i32) -> (i32, i32, i32) {
    %c0_i32 = arith.constant 0 : i32
    %c0_i32_0 = arith.constant 0 : i32
    return %arg0, %c0_i32, %arg1 : i32, i32, i32
  }
}

</mosaic_0001>

<llo_original>
// kernel: stage1g_resblock_forward.6
$region0: #{stage1g_resblock_forward.6}
  #allocation0 [shape = 'u32[]', space=smem, size = 0x4, offset = 0x4, fixed_abs, tag = 'smem constant byte address 0x4 - core index']
  #allocation1 [shape = 'u32[144,128]{1,0:T(1,128)}', space=vmem, size = 0x12000, scoped, tag = 'internal scratch']
  %s0 = inlined_call_operand.hbm [shape: f32[2,32], index: 0, kind: input, shape index: {}]
  %s1 = inlined_call_operand.hbm [shape: f32[2,8], index: 1, kind: input, shape index: {}]
  %s2 = inlined_call_operand.hbm [shape: f32[2,8], index: 2, kind: input, shape index: {}]
  %s3 = inlined_call_operand.vmem [shape: f32[32,16], index: 3, kind: input, shape index: {}]
  %s4 = inlined_call_operand.hbm [shape: f32[1,16], index: 4, kind: input, shape index: {}]
  %s5 = inlined_call_operand.hbm [shape: f32[16,512], index: 5, kind: input, shape index: {}]
  %s6 = inlined_call_operand.hbm [shape: f32[1,512], index: 6, kind: input, shape index: {}]
  %s7 = inlined_call_operand.hbm [shape: f32[1,512], index: 7, kind: input, shape index: {}]
  %s8 = inlined_call_operand.vmem [shape: f32[2,512], index: 8, kind: output, shape index: {0}]
  %s9 = inlined_call_operand.hbm [shape: f32[2,8], index: 9, kind: output, shape index: {1}]
  %s10 = inlined_call_operand.hbm [shape: f32[2,8], index: 10, kind: output, shape index: {2}]
  %11 = xla_tuple %s8, %s9, %s10
  %s12 = sld [smem:[#allocation0]]
  $region86: #{stage1g_resblock_forward.6} parent=0
    _
  %s14 = ssub.s32 1, %s12
  %s15 = scalar_select 0, %s14, %s12
  $region1: #{stage1g_resblock_forward.6} parent=0
    #allocation2 [shape = 'u8[1024]{0}', space=vmem, size = 0x400, scoped, tag = 'input window, operand 0, single buffered']
    #allocation3 [shape = 's32[1]{0}', space=sflag, size = 0x4, scoped, tag = 'scoped memory for stage1g_resblock_forward.6']
    #allocation4 [shape = 's32[1]{0}', space=sflag, size = 0x4, scoped, tag = 'scoped memory for stage1g_resblock_forward.6']
    #allocation5 [shape = 'u8[1024]{0}', space=vmem, size = 0x400, scoped, tag = 'input window, operand 1, single buffered']
    #allocation6 [shape = 's32[1]{0}', space=sflag, size = 0x4, scoped, tag = 'scoped memory for stage1g_resblock_forward.6']
    #allocation7 [shape = 'u8[1024]{0}', space=vmem, size = 0x400, scoped, tag = 'input window, operand 2, single buffered']
    #allocation8 [shape = 'u8[512]{0}', space=vmem, size = 0x400, scoped, tag = 'input window, operand 4, single buffered']
    #allocation9 [shape = 's32[1]{0}', space=sflag, size = 0x4, scoped, tag = 'scoped memory for stage1g_resblock_forward.6']
    #allocation10 [shape = 'u8[32768]{0}', space=vmem, size = 0x8000, scoped, tag = 'input window, operand 5, single buffered']
    #allocation11 [shape = 'u8[2048]{0}', space=vmem, size = 0x800, scoped, tag = 'input window, operand 6, single buffered']
    #allocation12 [shape = 's32[1]{0}', space=sflag, size = 0x4, scoped, tag = 'scoped memory for stage1g_resblock_forward.6']
    #allocation13 [shape = 'u8[2048]{0}', space=vmem, size = 0x800, scoped, tag = 'input window, operand 7, single buffered']
    #allocation14 [shape = 'u8[1024]{0}', space=vmem, size = 0x400, scoped, tag = 'output window, operand 1, single buffered']
    #allocation15 [shape = 'u8[1024]{0}', space=vmem, size = 0x400, scoped, tag = 'output window, operand 2, single buffered']
    #allocation16 [shape = 's32[1]{0}', space=sflag, size = 0x4, scoped, tag = 'scoped memory for stage1g_resblock_forward.6']
    %16 = vsyncpa [#allocation3], 0
    %17 = vsyncpa [#allocation6], 0
    %18 = vsyncpa [#allocation9], 0
    %19 = vsyncpa [#allocation12], 0
    %20 = vsyncpa [#allocation4], 0
    %21 = vsyncpa [#allocation16], 0
    // Predicated region
    $region2: #{stage1g_resblock_forward.6} parent=1 // pred_check
      _
    $region3: #{stage1g_resblock_forward.6} parent=1 // pred_check_branch
      %23 = sbr.rel (0) target = $region5
    $region4: #{stage1g_resblock_forward.6} parent=1 // pred_region
      %s25 = ssub.s32 32, 32
      %26 = vsyncadd [#allocation3], %s25
      %s28 = sshll.u32 [#allocation2], 4
      %s29 = int_to_ptr.vmem [resolvable:$true] %s28
      %31 = dma.hbm_to_vmem [thread:$0]  %s0, 32, %s29, [#allocation3]
    $region5: #{stage1g_resblock_forward.6} parent=1 // pred_fallthru
      _
    // Predicated region
    $region6: #{stage1g_resblock_forward.6} parent=1 // pred_check
      _
    $region7: #{stage1g_resblock_forward.6} parent=1 // pred_check_branch
      %33 = sbr.rel (0) target = $region9
    $region8: #{stage1g_resblock_forward.6} parent=1 // pred_region
      %s35 = ssub.s32 32, 32
      %36 = vsyncadd [#allocation6], %s35
      %s38 = sshll.u32 [#allocation5], 4
      %s39 = int_to_ptr.vmem [resolvable:$true] %s38
      %41 = dma.hbm_to_vmem [thread:$0]  %s1, 32, %s39, [#allocation6]
    $region9: #{stage1g_resblock_forward.6} parent=1 // pred_fallthru
      _
    // Predicated region
    $region10: #{stage1g_resblock_forward.6} parent=1 // pred_check
      _
    $region11: #{stage1g_resblock_forward.6} parent=1 // pred_check_branch
      %43 = sbr.rel (0) target = $region13
    $region12: #{stage1g_resblock_forward.6} parent=1 // pred_region
      %s45 = ssub.s32 32, 32
      %46 = vsyncadd [#allocation6], %s45
      %s48 = sshll.u32 [#allocation7], 4
      %s49 = int_to_ptr.vmem [resolvable:$true] %s48
      %51 = dma.hbm_to_vmem [thread:$0]  %s2, 32, %s49, [#allocation6]
    $region13: #{stage1g_resblock_forward.6} parent=1 // pred_fallthru
      _
    // Predicated region
    $region14: #{stage1g_resblock_forward.6} parent=1 // pred_check
      _
    $region15: #{stage1g_resblock_forward.6} parent=1 // pred_check_branch
      %53 = sbr.rel (0) target = $region17
    $region16: #{stage1g_resblock_forward.6} parent=1 // pred_region
      _
    $region17: #{stage1g_resblock_forward.6} parent=1 // pred_fallthru
      _
    // Predicated region
    $region18: #{stage1g_resblock_forward.6} parent=1 // pred_check
      _
    $region19: #{stage1g_resblock_forward.6} parent=1 // pred_check_branch
      %55 = sbr.rel (0) target = $region21
    $region20: #{stage1g_resblock_forward.6} parent=1 // pred_region
      %s57 = ssub.s32 16, 16
      %58 = vsyncadd [#allocation9], %s57
      %s60 = sshll.u32 [#allocation8], 4
      %s61 = int_to_ptr.vmem [resolvable:$true] %s60
      %63 = dma.hbm_to_vmem [thread:$0]  %s4, 16, %s61, [#allocation9]
    $region21: #{stage1g_resblock_forward.6} parent=1 // pred_fallthru
      _
    // Predicated region
    $region22: #{stage1g_resblock_forward.6} parent=1 // pred_check
      _
    $region23: #{stage1g_resblock_forward.6} parent=1 // pred_check_branch
      %65 = sbr.rel (0) target = $region25
    $region24: #{stage1g_resblock_forward.6} parent=1 // pred_region
      %s67 = ssub.s32 1024, 1024
      %68 = vsyncadd [#allocation9], %s67
      %s69 = sshll.u32 [#allocation10], 4
      %s70 = int_to_ptr.vmem [resolvable:$true] %s69
      %75 = dma.hbm_to_vmem [thread:$0]  %s5, 1024, %s70, [#allocation9], 512, 512, 32
    $region25: #{stage1g_resblock_forward.6} parent=1 // pred_fallthru
      _
    // Predicated region
    $region26: #{stage1g_resblock_forward.6} parent=1 // pred_check
      _
    $region27: #{stage1g_resblock_forward.6} parent=1 // pred_check_branch
      %77 = sbr.rel (0) target = $region29
    $region28: #{stage1g_resblock_forward.6} parent=1 // pred_region
      %s79 = ssub.s32 64, 64
      %80 = vsyncadd [#allocation12], %s79
      %s82 = sshll.u32 [#allocation11], 4
      %s83 = int_to_ptr.vmem [resolvable:$true] %s82
      %85 = dma.hbm_to_vmem [thread:$0]  %s6, 64, %s83, [#allocation12]
    $region29: #{stage1g_resblock_forward.6} parent=1 // pred_fallthru
      _
    // Predicated region
    $region30: #{stage1g_resblock_forward.6} parent=1 // pred_check
      _
    $region31: #{stage1g_resblock_forward.6} parent=1 // pred_check_branch
      %87 = sbr.rel (0) target = $region33
    $region32: #{stage1g_resblock_forward.6} parent=1 // pred_region
      %s89 = ssub.s32 64, 64
      %90 = vsyncadd [#allocation12], %s89
      %s92 = sshll.u32 [#allocation13], 4
      %s93 = int_to_ptr.vmem [resolvable:$true] %s92
      %95 = dma.hbm_to_vmem [thread:$0]  %s7, 64, %s93, [#allocation12]
    $region33: #{stage1g_resblock_forward.6} parent=1 // pred_fallthru
      _
    // Predicated region
    $region34: #{stage1g_resblock_forward.6} parent=1 // pred_check
      _
    $region35: #{stage1g_resblock_forward.6} parent=1 // pred_check_branch
      %97 = sbr.rel (0) target = $region37
    $region36: #{stage1g_resblock_forward.6} parent=1 // pred_region
      %98 = dma.done [#allocation3], 32
    $region37: #{stage1g_resblock_forward.6} parent=1 // pred_fallthru
      _
    // Predicated region
    $region38: #{stage1g_resblock_forward.6} parent=1 // pred_check
      _
    $region39: #{stage1g_resblock_forward.6} parent=1 // pred_check_branch
      %100 = sbr.rel (0) target = $region41
    $region40: #{stage1g_resblock_forward.6} parent=1 // pred_region
      %101 = dma.done [#allocation6], 32
    $region41: #{stage1g_resblock_forward.6} parent=1 // pred_fallthru
      _
    // Predicated region
    $region42: #{stage1g_resblock_forward.6} parent=1 // pred_check
      _
    $region43: #{stage1g_resblock_forward.6} parent=1 // pred_check_branch
      %103 = sbr.rel (0) target = $region45
    $region44: #{stage1g_resblock_forward.6} parent=1 // pred_region
      %104 = dma.done [#allocation6], 32
    $region45: #{stage1g_resblock_forward.6} parent=1 // pred_fallthru
      _
    // Predicated region
    $region46: #{stage1g_resblock_forward.6} parent=1 // pred_check
      _
    $region47: #{stage1g_resblock_forward.6} parent=1 // pred_check_branch
      %106 = sbr.rel (0) target = $region49
    $region48: #{stage1g_resblock_forward.6} parent=1 // pred_region
      %107 = dma.done [#allocation9], 16
    $region49: #{stage1g_resblock_forward.6} parent=1 // pred_fallthru
      _
    // Predicated region
    $region50: #{stage1g_resblock_forward.6} parent=1 // pred_check
      _
    $region51: #{stage1g_resblock_forward.6} parent=1 // pred_check_branch
      %109 = sbr.rel (0) target = $region53
    $region52: #{stage1g_resblock_forward.6} parent=1 // pred_region
      %110 = dma.done [#allocation9], 1024
    $region53: #{stage1g_resblock_forward.6} parent=1 // pred_fallthru
      _
    // Predicated region
    $region54: #{stage1g_resblock_forward.6} parent=1 // pred_check
      _
    $region55: #{stage1g_resblock_forward.6} parent=1 // pred_check_branch
      %112 = sbr.rel (0) target = $region57
    $region56: #{stage1g_resblock_forward.6} parent=1 // pred_region
      %113 = dma.done [#allocation12], 64
    $region57: #{stage1g_resblock_forward.6} parent=1 // pred_fallthru
      _
    // Predicated region
    $region58: #{stage1g_resblock_forward.6} parent=1 // pred_check
      _
    $region59: #{stage1g_resblock_forward.6} parent=1 // pred_check_branch
      %115 = sbr.rel (0) target = $region61
    $region60: #{stage1g_resblock_forward.6} parent=1 // pred_region
      %116 = dma.done [#allocation12], 64
    $region61: #{stage1g_resblock_forward.6} parent=1 // pred_fallthru
      _
    %v117 = vld [vmem:[#allocation2] sm:$0x3]
    %v118 = vld [vmem:[%s3] sm:$0xff]
    %v119 = vld [vmem:[%s3 + $0x8] sm:$0xff]
    %v120 = vld [vmem:[%s3 + $0x10] sm:$0xff]
    %v121 = vld [vmem:[%s3 + $0x18] sm:$0xff]
    %v122 = vld [vmem:[#allocation8] sm:$0x1]
    %v124 = vlaneseq
    %v125 = vshrl.u32 %v124, 7
    %v126 = vsub.s32 0, %v125
    %v127 = vrot.slane %v122, %v126
    %vm129 = vcmask 261120
    %v131 = vsel %vm129, %v117, 0
    %133 = vmatprep.subr.mxu0 0.0
    %134 = vmatpush1.msra.mxu0 0.0
    %135 = vmatprep.subr.mxu0 0.0
    %136 = vmatpush1.msra.mxu0 0.0
    %137 = vmatprep.subr.mxu0 0.0
    %138 = vmatpush1.msra.mxu0 0.0
    %139 = vmatprep.subr.mxu0 0.0
    %140 = vmatpush1.msra.mxu0 0.0
    %141 = vmatprep.subr.mxu0 0.0
    %142 = vmatpush1.msra.mxu0 0.0
    %143 = vmatprep.subr.mxu0 0.0
    %144 = vmatpush1.msra.mxu0 0.0
    %145 = vmatprep.subr.mxu0 0.0
    %146 = vmatpush1.msra.mxu0 0.0
    %147 = vmatprep.subr.mxu0 0.0
    %148 = vmatpush1.msra.mxu0 0.0
    %149 = vmatprep.subr.mxu0 0.0
    %150 = vmatpush1.msra.mxu0 0.0
    %151 = vmatprep.subr.mxu0 0.0
    %152 = vmatpush1.msra.mxu0 0.0
    %153 = vmatprep.subr.mxu0 0.0
    %154 = vmatpush1.msra.mxu0 0.0
    %155 = vmatprep.subr.mxu0 0.0
    %156 = vmatpush1.msra.mxu0 0.0
    %157 = vmatprep.subr.mxu0 0.0
    %158 = vmatpush1.msra.mxu0 %v121
    %159 = vmatprep.subr.mxu0 0.0
    %160 = vmatpush1.msra.mxu0 %v120
    %161 = vmatprep.subr.mxu0 0.0
    %162 = vmatpush1.msra.mxu0 %v119
    %163 = vmatprep.subr.mxu0 0.0
    %164 = vmatpush1.msra.mxu0 %v118
    %165 = vmatprep.subr.mxu0 0.0
    %166 = vmatpush2.msra.mxu0 0.0
    %167 = vmatprep.subr.mxu0 0.0
    %168 = vmatpush2.msra.mxu0 0.0
    %169 = vmatprep.subr.mxu0 0.0
    %170 = vmatpush2.msra.mxu0 0.0
    %171 = vmatprep.subr.mxu0 0.0
    %172 = vmatpush2.msra.mxu0 0.0
    %173 = vmatprep.subr.mxu0 0.0
    %174 = vmatpush2.msra.mxu0 0.0
    %175 = vmatprep.subr.mxu0 0.0
    %176 = vmatpush2.msra.mxu0 0.0
    %177 = vmatprep.subr.mxu0 0.0
    %178 = vmatpush2.msra.mxu0 0.0
    %179 = vmatprep.subr.mxu0 0.0
    %180 = vmatpush2.msra.mxu0 0.0
    %181 = vmatprep.subr.mxu0 0.0
    %182 = vmatpush2.msra.mxu0 0.0
    %183 = vmatprep.subr.mxu0 0.0
    %184 = vmatpush2.msra.mxu0 0.0
    %185 = vmatprep.subr.mxu0 0.0
    %186 = vmatpush2.msra.mxu0 0.0
    %187 = vmatprep.subr.mxu0 0.0
    %188 = vmatpush2.msra.mxu0 0.0
    %189 = vmatprep.subr.mxu0 0.0
    %190 = vmatpush2.msra.mxu0 0.0
    %191 = vmatprep.subr.mxu0 0.0
    %192 = vmatpush2.msra.mxu0 0.0
    %193 = vmatprep.subr.mxu0 0.0
    %194 = vmatpush2.msra.mxu0 0.0
    %195 = vmatprep.subr.mxu0 0.0
    %196 = vmatpush2.msra.mxu0 0.0
    %197 = vmatprep.mubr.f32.mxu0 0.0
    %198 = vmatmul.mubr.f32.gmra.mxu0 %v131
    %v199 = vpop.f32.mrf.mxu0
    %v200 = vadd.f32 %v127, %v199
    %v201 = vpop.f32.mrf.mxu0
    %202 = vdwg.mxu0
    %v203 = vmax.f32 %v200, 0.0
    %v204 = vmul.f32 %v203, 0.5
    %v205 = vmul.f32 %v204, 1.442695
    %v206 = vpow.pop %v205
    %v207 = vld [vmem:[#allocation7] sm:$0x3]
    %209 = vrot.lane.b32.xlu0 %v206, 120
    %v210 = vpop.permute.xlu0 %209
    %v212 = vmul.f32 %v207, %v210
    %v213 = vadd.f32 %v212, %v203
    %v214 = vld [vmem:[#allocation5] sm:$0x3]
    %216 = vrot.lane.b32.xlu0 %v213, 8
    %v217 = vpop.permute.xlu0 %216
    %vm219 = vcmask 64512
    %v220 = vsel %vm219, %v214, %v217
    %v221 = vld [vmem:[#allocation10] sm:$0xff]
    %v222 = vld [vmem:[#allocation10 + $0x8] sm:$0xff]
    %v223 = vld [vmem:[#allocation10 + $0x10] sm:$0xff]
    %v224 = vld [vmem:[#allocation10 + $0x18] sm:$0xff]
    %v225 = vld [vmem:[#allocation10 + $0x20] sm:$0xff]
    %v226 = vld [vmem:[#allocation10 + $0x28] sm:$0xff]
    %v227 = vld [vmem:[#allocation10 + $0x30] sm:$0xff]
    %v228 = vld [vmem:[#allocation10 + $0x38] sm:$0xff]
    %vm229 = vcmask 130048
    %v231 = vsel %vm229, %v220, 0
    %233 = vmatprep.subr.mxu0 0.0
    %234 = vmatpush1.msra.mxu0 0.0
    %235 = vmatprep.subr.mxu0 0.0
    %236 = vmatpush1.msra.mxu0 0.0
    %237 = vmatprep.subr.mxu0 0.0
    %238 = vmatpush1.msra.mxu0 0.0
    %239 = vmatprep.subr.mxu0 0.0
    %240 = vmatpush1.msra.mxu0 0.0
    %241 = vmatprep.subr.mxu0 0.0
    %242 = vmatpush1.msra.mxu0 0.0
    %243 = vmatprep.subr.mxu0 0.0
    %244 = vmatpush1.msra.mxu0 0.0
    %245 = vmatprep.subr.mxu0 0.0
    %246 = vmatpush1.msra.mxu0 0.0
    %247 = vmatprep.subr.mxu0 0.0
    %248 = vmatpush1.msra.mxu0 0.0
    %249 = vmatprep.subr.mxu0 0.0
    %250 = vmatpush1.msra.mxu0 0.0
    %251 = vmatprep.subr.mxu0 0.0
    %252 = vmatpush1.msra.mxu0 0.0
    %253 = vmatprep.subr.mxu0 0.0
    %254 = vmatpush1.msra.mxu0 0.0
    %255 = vmatprep.subr.mxu0 0.0
    %256 = vmatpush1.msra.mxu0 0.0
    %257 = vmatprep.subr.mxu0 0.0
    %258 = vmatpush1.msra.mxu0 0.0
    %259 = vmatprep.subr.mxu0 0.0
    %260 = vmatpush1.msra.mxu0 0.0
    %261 = vmatprep.subr.mxu0 %v226
    %262 = vmatpush1.msra.mxu0 %v225
    %263 = vmatprep.subr.mxu0 %v222
    %264 = vmatpush1.msra.mxu0 %v221
    %265 = vmatprep.subr.mxu0 0.0
    %266 = vmatpush2.msra.mxu0 0.0
    %267 = vmatprep.subr.mxu0 0.0
    %268 = vmatpush2.msra.mxu0 0.0
    %269 = vmatprep.subr.mxu0 0.0
    %270 = vmatpush2.msra.mxu0 0.0
    %271 = vmatprep.subr.mxu0 0.0
    %272 = vmatpush2.msra.mxu0 0.0
    %273 = vmatprep.subr.mxu0 0.0
    %274 = vmatpush2.msra.mxu0 0.0
    %275 = vmatprep.subr.mxu0 0.0
    %276 = vmatpush2.msra.mxu0 0.0
    %277 = vmatprep.subr.mxu0 0.0
    %278 = vmatpush2.msra.mxu0 0.0
    %279 = vmatprep.subr.mxu0 0.0
    %280 = vmatpush2.msra.mxu0 0.0
    %281 = vmatprep.subr.mxu0 0.0
    %282 = vmatpush2.msra.mxu0 0.0
    %283 = vmatprep.subr.mxu0 0.0
    %284 = vmatpush2.msra.mxu0 0.0
    %285 = vmatprep.subr.mxu0 0.0
    %286 = vmatpush2.msra.mxu0 0.0
    %287 = vmatprep.subr.mxu0 0.0
    %288 = vmatpush2.msra.mxu0 0.0
    %289 = vmatprep.subr.mxu0 0.0
    %290 = vmatpush2.msra.mxu0 0.0
    %291 = vmatprep.subr.mxu0 0.0
    %292 = vmatpush2.msra.mxu0 0.0
    %293 = vmatprep.subr.mxu0 0.0
    %294 = vmatpush2.msra.mxu0 0.0
    %295 = vmatprep.subr.mxu0 0.0
    %296 = vmatpush2.msra.mxu0 0.0
    %297 = vmatprep.mubr.f32.mxu0 0.0
    %298 = vmatmul.mubr.f32.gmra.mxu0 %v231
    %v299 = vpop.f32.mrf.mxu0
    %v300 = vadd.f32 0.0, %v299
    %v301 = vpop.f32.mrf.mxu0
    %v302 = vadd.f32 0.0, %v301
    %303 = vdwg.mxu0
    %304 = vmatprep.subr.mxu0 0.0
    %305 = vmatpush1.msra.mxu0 0.0
    %306 = vmatprep.subr.mxu0 0.0
    %307 = vmatpush1.msra.mxu0 0.0
    %308 = vmatprep.subr.mxu0 0.0
    %309 = vmatpush1.msra.mxu0 0.0
    %310 = vmatprep.subr.mxu0 0.0
    %311 = vmatpush1.msra.mxu0 0.0
    %312 = vmatprep.subr.mxu0 0.0
    %313 = vmatpush1.msra.mxu0 0.0
    %314 = vmatprep.subr.mxu0 0.0
    %315 = vmatpush1.msra.mxu0 0.0
    %316 = vmatprep.subr.mxu0 0.0
    %317 = vmatpush1.msra.mxu0 0.0
    %318 = vmatprep.subr.mxu0 0.0
    %319 = vmatpush1.msra.mxu0 0.0
    %320 = vmatprep.subr.mxu0 0.0
    %321 = vmatpush1.msra.mxu0 0.0
    %322 = vmatprep.subr.mxu0 0.0
    %323 = vmatpush1.msra.mxu0 0.0
    %324 = vmatprep.subr.mxu0 0.0
    %325 = vmatpush1.msra.mxu0 0.0
    %326 = vmatprep.subr.mxu0 0.0
    %327 = vmatpush1.msra.mxu0 0.0
    %328 = vmatprep.subr.mxu0 0.0
    %329 = vmatpush1.msra.mxu0 0.0
    %330 = vmatprep.subr.mxu0 0.0
    %331 = vmatpush1.msra.mxu0 0.0
    %332 = vmatprep.subr.mxu0 %v228
    %333 = vmatpush1.msra.mxu0 %v227
    %334 = vmatprep.subr.mxu0 %v224
    %335 = vmatpush1.msra.mxu0 %v223
    %336 = vmatprep.subr.mxu0 0.0
    %337 = vmatpush2.msra.mxu0 0.0
    %338 = vmatprep.subr.mxu0 0.0
    %339 = vmatpush2.msra.mxu0 0.0
    %340 = vmatprep.subr.mxu0 0.0
    %341 = vmatpush2.msra.mxu0 0.0
    %342 = vmatprep.subr.mxu0 0.0
    %343 = vmatpush2.msra.mxu0 0.0
    %344 = vmatprep.subr.mxu0 0.0
    %345 = vmatpush2.msra.mxu0 0.0
    %346 = vmatprep.subr.mxu0 0.0
    %347 = vmatpush2.msra.mxu0 0.0
    %348 = vmatprep.subr.mxu0 0.0
    %349 = vmatpush2.msra.mxu0 0.0
    %350 = vmatprep.subr.mxu0 0.0
    %351 = vmatpush2.msra.mxu0 0.0
    %352 = vmatprep.subr.mxu0 0.0
    %353 = vmatpush2.msra.mxu0 0.0
    %354 = vmatprep.subr.mxu0 0.0
    %355 = vmatpush2.msra.mxu0 0.0
    %356 = vmatprep.subr.mxu0 0.0
    %357 = vmatpush2.msra.mxu0 0.0
    %358 = vmatprep.subr.mxu0 0.0
    %359 = vmatpush2.msra.mxu0 0.0
    %360 = vmatprep.subr.mxu0 0.0
    %361 = vmatpush2.msra.mxu0 0.0
    %362 = vmatprep.subr.mxu0 0.0
    %363 = vmatpush2.msra.mxu0 0.0
    %364 = vmatprep.subr.mxu0 0.0
    %365 = vmatpush2.msra.mxu0 0.0
    %366 = vmatprep.subr.mxu0 0.0
    %367 = vmatpush2.msra.mxu0 0.0
    %368 = vmatprep.mubr.f32.mxu0 0.0
    %369 = vmatmul.mubr.f32.gmra.mxu0 %v231
    %v370 = vpop.f32.mrf.mxu0
    %v371 = vadd.f32 0.0, %v370
    %v372 = vpop.f32.mrf.mxu0
    %v373 = vadd.f32 0.0, %v372
    %374 = vdwg.mxu0
    %vm375 = vcmask 1041408
    %v376 = vsel %vm375, %v300, 0.0
    %v377 = vrot.slane %v376, 4
    %v378 = vadd.f32 %v376, %v377
    %v379 = vrot.slane %v378, 2
    %v380 = vadd.f32 %v378, %v379
    %v381 = vrot.slane %v380, 1
    %v382 = vadd.f32 %v380, %v381
    %v383 = vsel %vm375, %v302, 0.0
    %v384 = vrot.slane %v383, 4
    %v385 = vadd.f32 %v383, %v384
    %v386 = vrot.slane %v385, 2
    %v387 = vadd.f32 %v385, %v386
    %v388 = vrot.slane %v387, 1
    %v389 = vadd.f32 %v387, %v388
    %v390 = vsel %vm375, %v371, 0.0
    %v391 = vrot.slane %v390, 4
    %v392 = vadd.f32 %v390, %v391
    %v393 = vrot.slane %v392, 2
    %v394 = vadd.f32 %v392, %v393
    %v395 = vrot.slane %v394, 1
    %v396 = vadd.f32 %v394, %v395
    %v397 = vsel %vm375, %v373, 0.0
    %v398 = vrot.slane %v397, 4
    %v399 = vadd.f32 %v397, %v398
    %v400 = vrot.slane %v399, 2
    %v401 = vadd.f32 %v399, %v400
    %v402 = vrot.slane %v401, 1
    %v403 = vadd.f32 %v401, %v402
    %v404 = vmul.f32 %v382, 0.5
    %v405 = vmul.f32 %v389, 0.5
    %v406 = vmul.f32 %v396, 0.5
    %v407 = vmul.f32 %v403, 0.5
    %v408 = vsub.f32 %v300, %v404
    %v409 = vsub.f32 %v302, %v405
    %v410 = vsub.f32 %v371, %v406
    %v411 = vsub.f32 %v373, %v407
    %v412 = vmul.f32 %v408, %v408
    %v413 = vmul.f32 %v409, %v409
    %v414 = vmul.f32 %v410, %v410
    %v415 = vmul.f32 %v411, %v411
    %v416 = vsel %vm375, %v412, 0.0
    %v417 = vrot.slane %v416, 4
    %v418 = vadd.f32 %v416, %v417
    %v419 = vrot.slane %v418, 2
    %v420 = vadd.f32 %v418, %v419
    %v421 = vrot.slane %v420, 1
    %v422 = vadd.f32 %v420, %v421
    %v423 = vsel %vm375, %v413, 0.0
    %v424 = vrot.slane %v423, 4
    %v425 = vadd.f32 %v423, %v424
    %v426 = vrot.slane %v425, 2
    %v427 = vadd.f32 %v425, %v426
    %v428 = vrot.slane %v427, 1
    %v429 = vadd.f32 %v427, %v428
    %v430 = vsel %vm375, %v414, 0.0
    %v431 = vrot.slane %v430, 4
    %v432 = vadd.f32 %v430, %v431
    %v433 = vrot.slane %v432, 2
    %v434 = vadd.f32 %v432, %v433
    %v435 = vrot.slane %v434, 1
    %v436 = vadd.f32 %v434, %v435
    %v437 = vsel %vm375, %v415, 0.0
    %v438 = vrot.slane %v437, 4
    %v439 = vadd.f32 %v437, %v438
    %v440 = vrot.slane %v439, 2
    %v441 = vadd.f32 %v439, %v440
    %v442 = vrot.slane %v441, 1
    %v443 = vadd.f32 %v441, %v442
    %v444 = vmul.f32 %v422, 0.5
    %v445 = vmul.f32 %v429, 0.5
    %v446 = vmul.f32 %v436, 0.5
    %v447 = vmul.f32 %v443, 0.5
    %v448 = vld [vmem:[#allocation11] sm:$0xf]
    %v449 = vadd.f32 %v444, 1e-05
    %v450 = vadd.f32 %v445, 1e-05
    %v451 = vadd.f32 %v446, 1e-05
    %v452 = vadd.f32 %v447, 1e-05
    %v453 = vrsqrt.pop %v449
    %v454 = vrsqrt.pop %v450
    %v455 = vrsqrt.pop %v451
    %v456 = vrsqrt.pop %v452
    %v461 = vcombine.low %v453, %v454
    %v462 = vcombine.low %v455, %v456
    %v464 = vunpack.c.l.s4 1966171168
    %v465 = vunpack.c.0.s8 %v464
    %v466 = vlaneseq
    %v467 = vshrl.u32 %v466, 7
    %v468 = vsub.s32 %v465, %v467
    %v469 = vrot.slane %v461, %v468
    %v471 = vunpack.c.l.s4 1966171168
    %v472 = vunpack.c.0.s8 %v471
    %v473 = vlaneseq
    %v474 = vshrl.u32 %v473, 7
    %v475 = vsub.s32 %v472, %v474
    %v476 = vrot.slane %v462, %v475
    %v477 = vcombine.low %v469, %v476
    %v479 = vunpack.c.l.s4 1966171168
    %v480 = vunpack.c.0.s8 %v479
    %v481 = vlaneseq
    %v482 = vshrl.u32 %v481, 7
    %v483 = vsub.s32 %v480, %v482
    %v484 = vrot.slane %v477, %v483
    %v486 = vmul.f32 %v448, %v484
    %v488 = vlaneseq
    %v489 = vshrl.u32 %v488, 7
    %v490 = vsub.s32 0, %v489
    %v491 = vrot.slane %v486, %v490
    %v492 = vlaneseq
    %v493 = vshrl.u32 %v492, 7
    %v494 = vsub.s32 1, %v493
    %v495 = vrot.slane %v486, %v494
    %v496 = vlaneseq
    %v497 = vshrl.u32 %v496, 7
    %v498 = vsub.s32 2, %v497
    %v499 = vrot.slane %v486, %v498
    %v500 = vlaneseq
    %v501 = vshrl.u32 %v500, 7
    %v502 = vsub.s32 3, %v501
    %v503 = vrot.slane %v486, %v502
    %v508 = vmul.f32 %v408, %v491
    %v509 = vmul.f32 %v409, %v495
    %v510 = vmul.f32 %v410, %v499
    %v511 = vmul.f32 %v411, %v503
    %v512 = vld [vmem:[#allocation13] sm:$0xf]
    %v514 = vlaneseq
    %v515 = vshrl.u32 %v514, 7
    %v516 = vsub.s32 0, %v515
    %v517 = vrot.slane %v512, %v516
    %v518 = vlaneseq
    %v519 = vshrl.u32 %v518, 7
    %v520 = vsub.s32 1, %v519
    %v521 = vrot.slane %v512, %v520
    %v522 = vlaneseq
    %v523 = vshrl.u32 %v522, 7
    %v524 = vsub.s32 2, %v523
    %v525 = vrot.slane %v512, %v524
    %v526 = vlaneseq
    %v527 = vshrl.u32 %v526, 7
    %v528 = vsub.s32 3, %v527
    %v529 = vrot.slane %v512, %v528
    %v534 = vadd.f32 %v508, %v517
    %v535 = vadd.f32 %v509, %v521
    %v536 = vadd.f32 %v510, %v525
    %v537 = vadd.f32 %v511, %v529
    %v538 = vmax.f32 %v534, 0.0
    %v539 = vmax.f32 %v535, 0.0
    %v540 = vmax.f32 %v536, 0.0
    %v541 = vmax.f32 %v537, 0.0
    %v546 = vcombine.low %v538, %v539
    %v547 = vcombine.low %v540, %v541
    %v549 = vunpack.c.l.s4 1983009808
    %v550 = vunpack.c.0.s8 %v549
    %v551 = vlaneseq
    %v552 = vshrl.u32 %v551, 7
    %v553 = vsub.s32 %v550, %v552
    %v554 = vrot.slane %v546, %v553
    %v556 = vunpack.c.l.s4 1983009808
    %v557 = vunpack.c.0.s8 %v556
    %v558 = vlaneseq
    %v559 = vshrl.u32 %v558, 7
    %v560 = vsub.s32 %v557, %v559
    %v561 = vrot.slane %v547, %v560
    %v562 = vcombine.low %v554, %v561
    %564 = vst [vmem:[%s8] sm:$0xff] %v562
    %vm565 = vcmask 58368
    %566 = vst.msk [vmem:[#allocation14] sm:$0x3] %vm565, %v203
    %568 = vrot.lane.b32.xlu0 %v203, 120
    %v569 = vpop.permute.xlu0 %568
    %571 = vst.msk [vmem:[#allocation15] sm:$0x3] %vm565, %v569
    // Predicated region
    $region62: #{stage1g_resblock_forward.6} parent=1 // pred_check
      _
    $region63: #{stage1g_resblock_forward.6} parent=1 // pred_check_branch
      %573 = sbr.rel (0) target = $region65
    $region64: #{stage1g_resblock_forward.6} parent=1 // pred_region
      _
    $region65: #{stage1g_resblock_forward.6} parent=1 // pred_fallthru
      _
    // Predicated region
    $region66: #{stage1g_resblock_forward.6} parent=1 // pred_check
      _
    $region67: #{stage1g_resblock_forward.6} parent=1 // pred_check_branch
      %575 = sbr.rel (0) target = $region69
    $region68: #{stage1g_resblock_forward.6} parent=1 // pred_region
      %s577 = ssub.s32 32, 32
      %578 = vsyncadd [#allocation4], %s577
      %s580 = sshll.u32 [#allocation14], 4
      %s581 = int_to_ptr.vmem [resolvable:$true] %s580
      %583 = dma.vmem_to_hbm [thread:$0]  %s581, 32, %s9, [#allocation4]
    $region69: #{stage1g_resblock_forward.6} parent=1 // pred_fallthru
      _
    // Predicated region
    $region70: #{stage1g_resblock_forward.6} parent=1 // pred_check
      _
    $region71: #{stage1g_resblock_forward.6} parent=1 // pred_check_branch
      %585 = sbr.rel (0) target = $region73
    $region72: #{stage1g_resblock_forward.6} parent=1 // pred_region
      %s587 = ssub.s32 32, 32
      %588 = vsyncadd [#allocation16], %s587
      %s590 = sshll.u32 [#allocation15], 4
      %s591 = int_to_ptr.vmem [resolvable:$true] %s590
      %593 = dma.vmem_to_hbm [thread:$0]  %s591, 32, %s10, [#allocation16]
    $region73: #{stage1g_resblock_forward.6} parent=1 // pred_fallthru
      _
    // Predicated region
    $region74: #{stage1g_resblock_forward.6} parent=1 // pred_check
      _
    $region75: #{stage1g_resblock_forward.6} parent=1 // pred_check_branch
      %595 = sbr.rel (0) target = $region77
    $region76: #{stage1g_resblock_forward.6} parent=1 // pred_region
      _
    $region77: #{stage1g_resblock_forward.6} parent=1 // pred_fallthru
      _
    // Predicated region
    $region78: #{stage1g_resblock_forward.6} parent=1 // pred_check
      _
    $region79: #{stage1g_resblock_forward.6} parent=1 // pred_check_branch
      %597 = sbr.rel (0) target = $region81
    $region80: #{stage1g_resblock_forward.6} parent=1 // pred_region
      %598 = dma.done [#allocation4], 32
    $region81: #{stage1g_resblock_forward.6} parent=1 // pred_fallthru
      _
    // Predicated region
    $region82: #{stage1g_resblock_forward.6} parent=1 // pred_check
      _
    $region83: #{stage1g_resblock_forward.6} parent=1 // pred_check_branch
      %600 = sbr.rel (0) target = $region85
    $region84: #{stage1g_resblock_forward.6} parent=1 // pred_region
      %601 = dma.done [#allocation16], 32
    $region85: #{stage1g_resblock_forward.6} parent=1 // pred_fallthru
      _
    %602 = vsyncpa [#allocation3], 1
    %603 = vsyncpa [#allocation6], 1
    %604 = vsyncpa [#allocation9], 1
    %605 = vsyncpa [#allocation12], 1
    %606 = vsyncpa [#allocation4], 1
    %607 = vsyncpa [#allocation16], 1

// kernel: tile.43
$region0: #{tile.43}
  #allocation0 [shape = 's32[1]{0}', space=sflag, size = 0x4, scoped, tag = 'scoped memory for tile.43']
  %s0 = inlined_call_operand.vmem [shape: f32[16], index: 0, kind: input, shape index: {}]
  %s1 = inlined_call_operand.vmem [shape: f32[4,16], index: 1, kind: output, shape index: {}]
  // Predicated region
  $region2: #{tile.43} parent=0 // pred_check
    _
  $region3: #{tile.43} parent=0 // pred_check_branch
    %3 = sbr.rel (0) target = $region5
  $region4: #{tile.43} parent=0 // pred_region
    _
  $region5: #{tile.43} parent=0 // pred_fallthru
    _
  %v4 = vld [vmem:[%s0] ss:$0 sm:$0xff]
  %5 = vst [vmem:[%s1] sm:$0xf] %v4

// kernel: tile.48
$region0: #{tile.48}
  %s0 = inlined_call_operand.vmem [shape: f32[4,16], index: 0, kind: input, shape index: {}]
  %s1 = inlined_call_operand.vmem [shape: f32[64,1], index: 1, kind: output, shape index: {}]
  $region1: #{tile.48} parent=0
    #allocation0 [shape = 'u8[4096]{0}', space=vmem, size = 0x1000, scoped, tag = 'scoped mem for output reshape']
    #allocation1 [shape = 'u8[4096]{0}', space=vmem, size = 0x1000, scoped, tag = 'scoped mem for input reshape']
    %s3 = sshll.u32 1, 4
    %s4 = ssub.s32 %s3, 1
    %v5 = vld [vmem:[%s0] sm:%s4]
    %6 = vst [vmem:[#allocation1] sm:%s4] %v5
    %v7 = vld [vmem:[#allocation1] sm:$0x1]
    %vm8 = vcmask 130048
    %9 = vst.msk [vmem:[#allocation0] sm:$0x1] %vm8, %v7
    %s10 = scalar_lea.vmem [#allocation1], 3
    %v11 = vld [vmem:[%s10] sm:$0x1]
    %12 = vrot.lane.b32.xlu0 %v11, 48
    %v13 = vpop.permute.xlu0 %12
    %vm14 = vcmask 523648
    %15 = vst.msk [vmem:[#allocation0] sm:$0x1] %vm14, %v13
    %s16 = scalar_lea.vmem [#allocation1], 2
    %v17 = vld [vmem:[%s16] sm:$0x1]
    %18 = vrot.lane.b32.xlu0 %v17, 32
    %v19 = vpop.permute.xlu0 %18
    %vm20 = vcmask 392448
    %21 = vst.msk [vmem:[#allocation0] sm:$0x1] %vm20, %v19
    %s22 = scalar_lea.vmem [#allocation1], 1
    %v23 = vld [vmem:[%s22] sm:$0x1]
    %24 = vrot.lane.b32.xlu0 %v23, 16
    %v25 = vpop.permute.xlu0 %24
    %vm26 = vcmask 261248
    %27 = vst.msk [vmem:[#allocation0] sm:$0x1] %vm26, %v25
    %s29 = sshll.u32 1, 1
    %s30 = ssub.s32 %s29, 1
    %v32 = vld [vmem:[#allocation0] sm:%s30]
    %s33 = sshll.u32 1, 1
    %s34 = ssub.s32 %s33, 1
    %35 = vst [vmem:[%s1] sm:%s34] %v32

// kernel: stage1g_resblock_forward.7
$region0: #{stage1g_resblock_forward.7}
  #allocation0 [shape = 'u32[]', space=smem, size = 0x4, offset = 0x4, fixed_abs, tag = 'smem constant byte address 0x4 - core index']
  #allocation1 [shape = 'u32[144,128]{1,0:T(1,128)}', space=vmem, size = 0x12000, scoped, tag = 'internal scratch']
  %s0 = inlined_call_operand.vmem [shape: bf16[288,32], index: 0, kind: input, shape index: {}]
  %s1 = inlined_call_operand.vmem [shape: bf16[64,288], index: 1, kind: input, shape index: {}]
  %s2 = inlined_call_operand.vmem [shape: f32[64,2], index: 2, kind: input, shape index: {}]
  %s3 = inlined_call_operand.vmem [shape: f32[64,64], index: 3, kind: input, shape index: {}]
  %s4 = inlined_call_operand.vmem [shape: bf16[64,32], index: 4, kind: output, shape index: {}]
  %s5 = sld [smem:[#allocation0]]
  $region26: #{stage1g_resblock_forward.7} parent=0
    _
  %s7 = ssub.s32 1, %s5
  %s8 = scalar_select 0, %s7, %s5
  // Predicated region
  $region2: #{stage1g_resblock_forward.7} parent=0 // pred_check
    _
  $region3: #{stage1g_resblock_forward.7} parent=0 // pred_check_branch
    %10 = sbr.rel (0) target = $region5
  $region4: #{stage1g_resblock_forward.7} parent=0 // pred_region
    _
  $region5: #{stage1g_resblock_forward.7} parent=0 // pred_fallthru
    _
  // Predicated region
  $region6: #{stage1g_resblock_forward.7} parent=0 // pred_check
    _
  $region7: #{stage1g_resblock_forward.7} parent=0 // pred_check_branch
    %12 = sbr.rel (0) target = $region9
  $region8: #{stage1g_resblock_forward.7} parent=0 // pred_region
    _
  $region9: #{stage1g_resblock_forward.7} parent=0 // pred_fallthru
    _
  // Predicated region
  $region10: #{stage1g_resblock_forward.7} parent=0 // pred_check
    _
  $region11: #{stage1g_resblock_forward.7} parent=0 // pred_check_branch
    %14 = sbr.rel (0) target = $region13
  $region12: #{stage1g_resblock_forward.7} parent=0 // pred_region
    _
  $region13: #{stage1g_resblock_forward.7} parent=0 // pred_fallthru
    _
  // Predicated region
  $region14: #{stage1g_resblock_forward.7} parent=0 // pred_check
    _
  $region15: #{stage1g_resblock_forward.7} parent=0 // pred_check_branch
    %16 = sbr.rel (0) target = $region17
  $region16: #{stage1g_resblock_forward.7} parent=0 // pred_region
    _
  $region17: #{stage1g_resblock_forward.7} parent=0 // pred_fallthru
    _
  %v18 = vld [vmem:[%s1] sm:$0xff]
  %v19 = vld [vmem:[%s1 + $0x8] sm:$0xf]
  %v20 = vld [vmem:[%s1 + $0xc] sm:$0xff]
  %v21 = vld [vmem:[%s1 + $0x14] sm:$0xf]
  %v22 = vld [vmem:[%s1 + $0x18] sm:$0xff]
  %v23 = vld [vmem:[%s1 + $0x20] sm:$0xf]
  %v24 = vld [vmem:[%s1 + $0x24] sm:$0xff]
  %v25 = vld [vmem:[%s1 + $0x2c] sm:$0xf]
  %v26 = vld [vmem:[%s1 + $0x30] sm:$0xff]
  %v27 = vld [vmem:[%s1 + $0x38] sm:$0xf]
  %v28 = vld [vmem:[%s1 + $0x3c] sm:$0xff]
  %v29 = vld [vmem:[%s1 + $0x44] sm:$0xf]
  %v30 = vld [vmem:[%s1 + $0x48] sm:$0xff]
  %v31 = vld [vmem:[%s1 + $0x50] sm:$0xf]
  %v32 = vld [vmem:[%s1 + $0x54] sm:$0xff]
  %v33 = vld [vmem:[%s1 + $0x5c] sm:$0xf]
  %v34 = vld [vmem:[%s0] sm:$0xf]
  %v35 = vld [vmem:[%s0 + $0x4] sm:$0xf]
  %v36 = vld [vmem:[%s0 + $0x8] sm:$0xf]
  %v37 = vld [vmem:[%s0 + $0xc] sm:$0xf]
  %v38 = vld [vmem:[%s0 + $0x10] sm:$0xf]
  %v39 = vld [vmem:[%s0 + $0x14] sm:$0xf]
  %v40 = vld [vmem:[%s0 + $0x18] sm:$0xf]
  %v41 = vld [vmem:[%s0 + $0x1c] sm:$0xf]
  %v42 = vld [vmem:[%s0 + $0x20] sm:$0xf]
  %v43 = vld [vmem:[%s0 + $0x24] sm:$0xf]
  %v44 = vld [vmem:[%s0 + $0x28] sm:$0xf]
  %v45 = vld [vmem:[%s0 + $0x2c] sm:$0xf]
  %v46 = vld [vmem:[%s0 + $0x30] sm:$0xf]
  %v47 = vld [vmem:[%s0 + $0x34] sm:$0xf]
  %v48 = vld [vmem:[%s0 + $0x38] sm:$0xf]
  %v49 = vld [vmem:[%s0 + $0x3c] sm:$0xf]
  %v50 = vld [vmem:[%s0 + $0x40] sm:$0xf]
  %v51 = vld [vmem:[%s0 + $0x44] sm:$0xf]
  %v52 = vld [vmem:[%s0 + $0x48] sm:$0xf]
  %v53 = vld [vmem:[%s0 + $0x4c] sm:$0xf]
  %v54 = vld [vmem:[%s0 + $0x50] sm:$0xf]
  %v55 = vld [vmem:[%s0 + $0x54] sm:$0xf]
  %v56 = vld [vmem:[%s0 + $0x58] sm:$0xf]
  %v57 = vld [vmem:[%s0 + $0x5c] sm:$0xf]
  %v58 = vld [vmem:[%s0 + $0x60] sm:$0xf]
  %v59 = vld [vmem:[%s0 + $0x64] sm:$0xf]
  %v60 = vld [vmem:[%s0 + $0x68] sm:$0xf]
  %v61 = vld [vmem:[%s0 + $0x6c] sm:$0xf]
  %v62 = vld [vmem:[%s0 + $0x70] sm:$0xf]
  %v63 = vld [vmem:[%s0 + $0x74] sm:$0xf]
  %v64 = vld [vmem:[%s0 + $0x78] sm:$0xf]
  %v65 = vld [vmem:[%s0 + $0x7c] sm:$0xf]
  %v66 = vld [vmem:[%s0 + $0x80] sm:$0xf]
  %v67 = vld [vmem:[%s0 + $0x84] sm:$0xf]
  %v68 = vld [vmem:[%s0 + $0x88] sm:$0xf]
  %v69 = vld [vmem:[%s0 + $0x8c] sm:$0xf]
  %v86 = vunpack.c.l.b16 %v18
  %v87 = vunpack.c.h.b16 %v18
  %v88 = vunpack.c.l.b16 %v19
  %v89 = vunpack.c.l.b16 %v20
  %v90 = vunpack.c.h.b16 %v20
  %v91 = vunpack.c.l.b16 %v21
  %v92 = vunpack.c.l.b16 %v22
  %v93 = vunpack.c.h.b16 %v22
  %v94 = vunpack.c.l.b16 %v23
  %v95 = vunpack.c.l.b16 %v24
  %v96 = vunpack.c.h.b16 %v24
  %v97 = vunpack.c.l.b16 %v25
  %v98 = vunpack.c.l.b16 %v26
  %v99 = vunpack.c.h.b16 %v26
  %v100 = vunpack.c.l.b16 %v27
  %v101 = vunpack.c.l.b16 %v28
  %v102 = vunpack.c.h.b16 %v28
  %v103 = vunpack.c.l.b16 %v29
  %v104 = vunpack.c.l.b16 %v30
  %v105 = vunpack.c.h.b16 %v30
  %v106 = vunpack.c.l.b16 %v31
  %v107 = vunpack.c.l.b16 %v32
  %v108 = vunpack.c.h.b16 %v32
  %v109 = vunpack.c.l.b16 %v33
  %v110 = vpack.c.b16 %v89, %v86
  %v111 = vpack.c.b16 %v90, %v87
  %v112 = vpack.c.b16 %v91, %v88
  %v113 = vpack.c.b16 %v95, %v92
  %v114 = vpack.c.b16 %v96, %v93
  %v115 = vpack.c.b16 %v97, %v94
  %v116 = vpack.c.b16 %v101, %v98
  %v117 = vpack.c.b16 %v102, %v99
  %v118 = vpack.c.b16 %v103, %v100
  %v119 = vpack.c.b16 %v107, %v104
  %v120 = vpack.c.b16 %v108, %v105
  %v121 = vpack.c.b16 %v109, %v106
  %v166 = vunpack.c.l.b16 %v34
  %v167 = vunpack.c.l.b16 %v35
  %v168 = vunpack.c.l.b16 %v36
  %v169 = vunpack.c.l.b16 %v37
  %v170 = vunpack.c.l.b16 %v38
  %v171 = vunpack.c.l.b16 %v39
  %v172 = vunpack.c.l.b16 %v40
  %v173 = vunpack.c.l.b16 %v41
  %v174 = vunpack.c.l.b16 %v42
  %v175 = vunpack.c.l.b16 %v43
  %v176 = vunpack.c.l.b16 %v44
  %v177 = vunpack.c.l.b16 %v45
  %v178 = vunpack.c.l.b16 %v46
  %v179 = vunpack.c.l.b16 %v47
  %v180 = vunpack.c.l.b16 %v48
  %v181 = vunpack.c.l.b16 %v49
  %v182 = vunpack.c.l.b16 %v50
  %v183 = vunpack.c.l.b16 %v51
  %v184 = vunpack.c.l.b16 %v52
  %v185 = vunpack.c.l.b16 %v53
  %v186 = vunpack.c.l.b16 %v54
  %v187 = vunpack.c.l.b16 %v55
  %v188 = vunpack.c.l.b16 %v56
  %v189 = vunpack.c.l.b16 %v57
  %v190 = vunpack.c.l.b16 %v58
  %v191 = vunpack.c.l.b16 %v59
  %v192 = vunpack.c.l.b16 %v60
  %v193 = vunpack.c.l.b16 %v61
  %v194 = vunpack.c.l.b16 %v62
  %v195 = vunpack.c.l.b16 %v63
  %v196 = vunpack.c.l.b16 %v64
  %v197 = vunpack.c.l.b16 %v65
  %v198 = vunpack.c.l.b16 %v66
  %v199 = vunpack.c.l.b16 %v67
  %v200 = vunpack.c.l.b16 %v68
  %v201 = vunpack.c.l.b16 %v69
  %v202 = vpack.c.b16 %v167, %v166
  %v203 = vpack.c.b16 %v169, %v168
  %v204 = vpack.c.b16 %v171, %v170
  %v205 = vpack.c.b16 %v173, %v172
  %v206 = vpack.c.b16 %v175, %v174
  %v207 = vpack.c.b16 %v177, %v176
  %v208 = vpack.c.b16 %v179, %v178
  %v209 = vpack.c.b16 %v181, %v180
  %v210 = vpack.c.b16 %v183, %v182
  %v211 = vpack.c.b16 %v185, %v184
  %v212 = vpack.c.b16 %v187, %v186
  %v213 = vpack.c.b16 %v189, %v188
  %v214 = vpack.c.b16 %v191, %v190
  %v215 = vpack.c.b16 %v193, %v192
  %v216 = vpack.c.b16 %v195, %v194
  %v217 = vpack.c.b16 %v197, %v196
  %v218 = vpack.c.b16 %v199, %v198
  %v219 = vpack.c.b16 %v201, %v200
  %vm238 = vcmask 261120
  %v240 = vsel %vm238, %v112, 0
  %v243 = vsel %vm238, %v115, 0
  %v246 = vsel %vm238, %v118, 0
  %v249 = vsel %vm238, %v121, 0
  %251 = vmatprep.subr.bf16.mxu0 0
  %252 = vmatpush1.bf16.msra.mxu0 %v209
  %253 = vmatprep.subr.bf16.mxu0 0
  %254 = vmatpush1.bf16.msra.mxu0 %v208
  %255 = vmatprep.subr.bf16.mxu0 0
  %256 = vmatpush1.bf16.msra.mxu0 %v207
  %257 = vmatprep.subr.bf16.mxu0 0
  %258 = vmatpush1.bf16.msra.mxu0 %v206
  %259 = vmatprep.subr.bf16.mxu0 0
  %260 = vmatpush1.bf16.msra.mxu0 %v205
  %261 = vmatprep.subr.bf16.mxu0 0
  %262 = vmatpush1.bf16.msra.mxu0 %v204
  %263 = vmatprep.subr.bf16.mxu0 0
  %264 = vmatpush1.bf16.msra.mxu0 %v203
  %265 = vmatprep.subr.bf16.mxu0 0
  %266 = vmatpush1.bf16.msra.mxu0 %v202
  %267 = vmatprep.subr.bf16.mxu0 0
  %268 = vmatpush2.bf16.msra.mxu0 %v217
  %269 = vmatprep.subr.bf16.mxu0 0
  %270 = vmatpush2.bf16.msra.mxu0 %v216
  %271 = vmatprep.subr.bf16.mxu0 0
  %272 = vmatpush2.bf16.msra.mxu0 %v215
  %273 = vmatprep.subr.bf16.mxu0 0
  %274 = vmatpush2.bf16.msra.mxu0 %v214
  %275 = vmatprep.subr.bf16.mxu0 0
  %276 = vmatpush2.bf16.msra.mxu0 %v213
  %277 = vmatprep.subr.bf16.mxu0 0
  %278 = vmatpush2.bf16.msra.mxu0 %v212
  %279 = vmatprep.subr.bf16.mxu0 0
  %280 = vmatpush2.bf16.msra.mxu0 %v211
  %281 = vmatprep.subr.bf16.mxu0 0
  %282 = vmatpush2.bf16.msra.mxu0 %v210
  %283 = vmatprep.mubr.bf16.mxu0 %v111
  %284 = vmatmul.mubr.bf16.gmra.mxu0 %v110
  %v285 = vpop.f32.mrf.mxu0
  %v286 = vadd.f32 0.0, %v285
  %v287 = vpop.f32.mrf.mxu0
  %v288 = vpop.f32.mrf.mxu0
  %v289 = vadd.f32 0.0, %v288
  %v290 = vpop.f32.mrf.mxu0
  %291 = vmatprep.mubr.bf16.mxu0 %v114
  %292 = vmatmul.mubr.bf16.gmra.mxu0 %v113
  %v293 = vpop.f32.mrf.mxu0
  %v294 = vadd.f32 0.0, %v293
  %v295 = vpop.f32.mrf.mxu0
  %v296 = vpop.f32.mrf.mxu0
  %v297 = vadd.f32 0.0, %v296
  %v298 = vpop.f32.mrf.mxu0
  %299 = vmatprep.mubr.bf16.mxu0 %v117
  %300 = vmatmul.mubr.bf16.gmra.mxu0 %v116
  %v301 = vpop.f32.mrf.mxu0
  %v302 = vadd.f32 0.0, %v301
  %v303 = vpop.f32.mrf.mxu0
  %v304 = vpop.f32.mrf.mxu0
  %v305 = vadd.f32 0.0, %v304
  %v306 = vpop.f32.mrf.mxu0
  %307 = vmatprep.mubr.bf16.mxu0 %v120
  %308 = vmatmul.mubr.bf16.gmra.mxu0 %v119
  %v309 = vpop.f32.mrf.mxu0
  %v310 = vadd.f32 0.0, %v309
  %v311 = vpop.f32.mrf.mxu0
  %v312 = vpop.f32.mrf.mxu0
  %v313 = vadd.f32 0.0, %v312
  %v314 = vpop.f32.mrf.mxu0
  %315 = vdwg.mxu0
  %316 = vmatprep.subr.bf16.mxu0 0
  %317 = vmatpush1.bf16.msra.mxu0 0
  %318 = vmatprep.subr.bf16.mxu0 0
  %319 = vmatpush1.bf16.msra.mxu0 0
  %320 = vmatprep.subr.bf16.mxu0 0
  %321 = vmatpush1.bf16.msra.mxu0 0
  %322 = vmatprep.subr.bf16.mxu0 0
  %323 = vmatpush1.bf16.msra.mxu0 0
  %324 = vmatprep.subr.bf16.mxu0 0
  %325 = vmatpush1.bf16.msra.mxu0 0
  %326 = vmatprep.subr.bf16.mxu0 0
  %327 = vmatpush1.bf16.msra.mxu0 0
  %328 = vmatprep.subr.bf16.mxu0 0
  %329 = vmatpush1.bf16.msra.mxu0 %v219
  %330 = vmatprep.subr.bf16.mxu0 0
  %331 = vmatpush1.bf16.msra.mxu0 %v218
  %332 = vmatprep.subr.bf16.mxu0 0
  %333 = vmatpush2.bf16.msra.mxu0 0
  %334 = vmatprep.subr.bf16.mxu0 0
  %335 = vmatpush2.bf16.msra.mxu0 0
  %336 = vmatprep.subr.bf16.mxu0 0
  %337 = vmatpush2.bf16.msra.mxu0 0
  %338 = vmatprep.subr.bf16.mxu0 0
  %339 = vmatpush2.bf16.msra.mxu0 0
  %340 = vmatprep.subr.bf16.mxu0 0
  %341 = vmatpush2.bf16.msra.mxu0 0
  %342 = vmatprep.subr.bf16.mxu0 0
  %343 = vmatpush2.bf16.msra.mxu0 0
  %344 = vmatprep.subr.bf16.mxu0 0
  %345 = vmatpush2.bf16.msra.mxu0 0
  %346 = vmatprep.subr.bf16.mxu0 0
  %347 = vmatpush2.bf16.msra.mxu0 0
  %348 = vmatprep.mubr.bf16.mxu0 0
  %349 = vmatmul.mubr.bf16.gmra.mxu0 %v240
  %v350 = vpop.f32.mrf.mxu0
  %v351 = vadd.f32 %v286, %v350
  %v352 = vpop.f32.mrf.mxu0
  %v353 = vpop.f32.mrf.mxu0
  %v354 = vadd.f32 %v289, %v353
  %v355 = vpop.f32.mrf.mxu0
  %356 = vmatprep.mubr.bf16.mxu0 0
  %357 = vmatmul.mubr.bf16.gmra.mxu0 %v243
  %v358 = vpop.f32.mrf.mxu0
  %v359 = vadd.f32 %v294, %v358
  %v360 = vpop.f32.mrf.mxu0
  %v361 = vpop.f32.mrf.mxu0
  %v362 = vadd.f32 %v297, %v361
  %v363 = vpop.f32.mrf.mxu0
  %364 = vmatprep.mubr.bf16.mxu0 0
  %365 = vmatmul.mubr.bf16.gmra.mxu0 %v246
  %v366 = vpop.f32.mrf.mxu0
  %v367 = vadd.f32 %v302, %v366
  %v368 = vpop.f32.mrf.mxu0
  %v369 = vpop.f32.mrf.mxu0
  %v370 = vadd.f32 %v305, %v369
  %v371 = vpop.f32.mrf.mxu0
  %372 = vmatprep.mubr.bf16.mxu0 0
  %373 = vmatmul.mubr.bf16.gmra.mxu0 %v249
  %v374 = vpop.f32.mrf.mxu0
  %v375 = vadd.f32 %v310, %v374
  %v376 = vpop.f32.mrf.mxu0
  %v377 = vpop.f32.mrf.mxu0
  %v378 = vadd.f32 %v313, %v377
  %v379 = vpop.f32.mrf.mxu0
  %380 = vdwg.mxu0
  %v381 = vsel %vm238, %v351, 0.0
  %382 = vadd.xlane.f32.xlu0 %v381
  %v383 = vpop.xlane.xlu0 %382
  %v384 = vsel %vm238, %v354, 0.0
  %385 = vadd.xlane.f32.xlu0 %v384
  %v386 = vpop.xlane.xlu0 %385
  %v387 = vsel %vm238, %v359, 0.0
  %388 = vadd.xlane.f32.xlu0 %v387
  %v389 = vpop.xlane.xlu0 %388
  %v390 = vsel %vm238, %v362, 0.0
  %391 = vadd.xlane.f32.xlu0 %v390
  %v392 = vpop.xlane.xlu0 %391
  %v393 = vsel %vm238, %v367, 0.0
  %394 = vadd.xlane.f32.xlu0 %v393
  %v395 = vpop.xlane.xlu0 %394
  %v396 = vsel %vm238, %v370, 0.0
  %397 = vadd.xlane.f32.xlu0 %v396
  %v398 = vpop.xlane.xlu0 %397
  %v399 = vsel %vm238, %v375, 0.0
  %400 = vadd.xlane.f32.xlu0 %v399
  %v401 = vpop.xlane.xlu0 %400
  %v402 = vsel %vm238, %v378, 0.0
  %403 = vadd.xlane.f32.xlu0 %v402
  %v404 = vpop.xlane.xlu0 %403
  %v405 = vld [vmem:[%s3] sm:$0xff]
  %v406 = vld [vmem:[%s3 + $0x8] sm:$0xff]
  %v407 = vld [vmem:[%s3 + $0x10] sm:$0xff]
  %v408 = vld [vmem:[%s3 + $0x18] sm:$0xff]
  %v409 = vld [vmem:[%s3 + $0x20] sm:$0xff]
  %v410 = vld [vmem:[%s3 + $0x28] sm:$0xff]
  %v411 = vld [vmem:[%s3 + $0x30] sm:$0xff]
  %v412 = vld [vmem:[%s3 + $0x38] sm:$0xff]
  %vm413 = vcmask 523264
  %v415 = vsel %vm413, %v405, 0
  %v418 = vsel %vm413, %v406, 0
  %v421 = vsel %vm413, %v407, 0
  %v424 = vsel %vm413, %v408, 0
  %v427 = vsel %vm413, %v409, 0
  %v430 = vsel %vm413, %v410, 0
  %v433 = vsel %vm413, %v411, 0
  %v436 = vsel %vm413, %v412, 0
  %438 = vmatprep.subr.mxu0 0.0
  %439 = vmatpush1.msra.mxu0 0.0
  %440 = vmatprep.subr.mxu0 0.0
  %441 = vmatpush1.msra.mxu0 0.0
  %442 = vmatprep.subr.mxu0 0.0
  %443 = vmatpush1.msra.mxu0 0.0
  %444 = vmatprep.subr.mxu0 0.0
  %445 = vmatpush1.msra.mxu0 0.0
  %446 = vmatprep.subr.mxu0 0.0
  %447 = vmatpush1.msra.mxu0 0.0
  %448 = vmatprep.subr.mxu0 0.0
  %449 = vmatpush1.msra.mxu0 0.0
  %450 = vmatprep.subr.mxu0 0.0
  %451 = vmatpush1.msra.mxu0 0.0
  %452 = vmatprep.subr.mxu0 0.0
  %453 = vmatpush1.msra.mxu0 0.0
  %454 = vmatprep.subr.mxu0 0.0
  %455 = vmatpush1.msra.mxu0 %v404
  %456 = vmatprep.subr.mxu0 0.0
  %457 = vmatpush1.msra.mxu0 %v401
  %458 = vmatprep.subr.mxu0 0.0
  %459 = vmatpush1.msra.mxu0 %v398
  %460 = vmatprep.subr.mxu0 0.0
  %461 = vmatpush1.msra.mxu0 %v395
  %462 = vmatprep.subr.mxu0 0.0
  %463 = vmatpush1.msra.mxu0 %v392
  %464 = vmatprep.subr.mxu0 0.0
  %465 = vmatpush1.msra.mxu0 %v389
  %466 = vmatprep.subr.mxu0 0.0
  %467 = vmatpush1.msra.mxu0 %v386
  %468 = vmatprep.subr.mxu0 0.0
  %469 = vmatpush1.msra.mxu0 %v383
  %470 = vmatprep.subr.mxu0 0.0
  %471 = vmatpush2.msra.mxu0 0.0
  %472 = vmatprep.subr.mxu0 0.0
  %473 = vmatpush2.msra.mxu0 0.0
  %474 = vmatprep.subr.mxu0 0.0
  %475 = vmatpush2.msra.mxu0 0.0
  %476 = vmatprep.subr.mxu0 0.0
  %477 = vmatpush2.msra.mxu0 0.0
  %478 = vmatprep.subr.mxu0 0.0
  %479 = vmatpush2.msra.mxu0 0.0
  %480 = vmatprep.subr.mxu0 0.0
  %481 = vmatpush2.msra.mxu0 0.0
  %482 = vmatprep.subr.mxu0 0.0
  %483 = vmatpush2.msra.mxu0 0.0
  %484 = vmatprep.subr.mxu0 0.0
  %485 = vmatpush2.msra.mxu0 0.0
  %486 = vmatprep.subr.mxu0 0.0
  %487 = vmatpush2.msra.mxu0 0.0
  %488 = vmatprep.subr.mxu0 0.0
  %489 = vmatpush2.msra.mxu0 0.0
  %490 = vmatprep.subr.mxu0 0.0
  %491 = vmatpush2.msra.mxu0 0.0
  %492 = vmatprep.subr.mxu0 0.0
  %493 = vmatpush2.msra.mxu0 0.0
  %494 = vmatprep.subr.mxu0 0.0
  %495 = vmatpush2.msra.mxu0 0.0
  %496 = vmatprep.subr.mxu0 0.0
  %497 = vmatpush2.msra.mxu0 0.0
  %498 = vmatprep.subr.mxu0 0.0
  %499 = vmatpush2.msra.mxu0 0.0
  %500 = vmatprep.subr.mxu0 0.0
  %501 = vmatpush2.msra.mxu0 0.0
  %502 = vmatprep.mubr.f32.mxu0 0.0
  %503 = vmatmul.mubr.f32.gmra.mxu0 %v415
  %v504 = vpop.f32.mrf.mxu0
  %v505 = vadd.f32 0.0, %v504
  %v506 = vpop.f32.mrf.mxu0
  %507 = vmatprep.mubr.f32.mxu0 0.0
  %508 = vmatmul.mubr.f32.gmra.mxu0 %v418
  %v509 = vpop.f32.mrf.mxu0
  %v510 = vadd.f32 0.0, %v509
  %v511 = vpop.f32.mrf.mxu0
  %512 = vmatprep.mubr.f32.mxu0 0.0
  %513 = vmatmul.mubr.f32.gmra.mxu0 %v421
  %v514 = vpop.f32.mrf.mxu0
  %v515 = vadd.f32 0.0, %v514
  %v516 = vpop.f32.mrf.mxu0
  %517 = vmatprep.mubr.f32.mxu0 0.0
  %518 = vmatmul.mubr.f32.gmra.mxu0 %v424
  %v519 = vpop.f32.mrf.mxu0
  %v520 = vadd.f32 0.0, %v519
  %v521 = vpop.f32.mrf.mxu0
  %522 = vmatprep.mubr.f32.mxu0 0.0
  %523 = vmatmul.mubr.f32.gmra.mxu0 %v427
  %v524 = vpop.f32.mrf.mxu0
  %v525 = vadd.f32 0.0, %v524
  %v526 = vpop.f32.mrf.mxu0
  %527 = vmatprep.mubr.f32.mxu0 0.0
  %528 = vmatmul.mubr.f32.gmra.mxu0 %v430
  %v529 = vpop.f32.mrf.mxu0
  %v530 = vadd.f32 0.0, %v529
  %v531 = vpop.f32.mrf.mxu0
  %532 = vmatprep.mubr.f32.mxu0 0.0
  %533 = vmatmul.mubr.f32.gmra.mxu0 %v433
  %v534 = vpop.f32.mrf.mxu0
  %v535 = vadd.f32 0.0, %v534
  %v536 = vpop.f32.mrf.mxu0
  %537 = vmatprep.mubr.f32.mxu0 0.0
  %538 = vmatmul.mubr.f32.gmra.mxu0 %v436
  %v539 = vpop.f32.mrf.mxu0
  %v540 = vadd.f32 0.0, %v539
  %v541 = vpop.f32.mrf.mxu0
  %542 = vdwg.mxu0
  %v543 = vmul.f32 %v505, 0.0078125
  %v544 = vmul.f32 %v510, 0.0078125
  %v545 = vmul.f32 %v515, 0.0078125
  %v546 = vmul.f32 %v520, 0.0078125
  %v547 = vmul.f32 %v525, 0.0078125
  %v548 = vmul.f32 %v530, 0.0078125
  %v549 = vmul.f32 %v535, 0.0078125
  %v550 = vmul.f32 %v540, 0.0078125
  %552 = vset.pattern.permute.xlu0 0
  %553 = vperm.xlu0 %552, %v543
  %v554 = vpop.permute.xlu0 %553
  %557 = vset.pattern.permute.xlu0 0
  %558 = vperm.xlu0 %557, %v544
  %v559 = vpop.permute.xlu0 %558
  %562 = vset.pattern.permute.xlu0 0
  %563 = vperm.xlu0 %562, %v545
  %v564 = vpop.permute.xlu0 %563
  %567 = vset.pattern.permute.xlu0 0
  %568 = vperm.xlu0 %567, %v546
  %v569 = vpop.permute.xlu0 %568
  %572 = vset.pattern.permute.xlu0 0
  %573 = vperm.xlu0 %572, %v547
  %v574 = vpop.permute.xlu0 %573
  %577 = vset.pattern.permute.xlu0 0
  %578 = vperm.xlu0 %577, %v548
  %v579 = vpop.permute.xlu0 %578
  %582 = vset.pattern.permute.xlu0 0
  %583 = vperm.xlu0 %582, %v549
  %v584 = vpop.permute.xlu0 %583
  %587 = vset.pattern.permute.xlu0 0
  %588 = vperm.xlu0 %587, %v550
  %v589 = vpop.permute.xlu0 %588
  %v591 = vsub.f32 %v351, %v554
  %v592 = vsub.f32 %v354, %v559
  %v593 = vsub.f32 %v359, %v564
  %v594 = vsub.f32 %v362, %v569
  %v595 = vsub.f32 %v367, %v574
  %v596 = vsub.f32 %v370, %v579
  %v597 = vsub.f32 %v375, %v584
  %v598 = vsub.f32 %v378, %v589
  %v599 = vmul.f32 %v591, %v591
  %v600 = vmul.f32 %v592, %v592
  %v601 = vmul.f32 %v593, %v593
  %v602 = vmul.f32 %v594, %v594
  %v603 = vmul.f32 %v595, %v595
  %v604 = vmul.f32 %v596, %v596
  %v605 = vmul.f32 %v597, %v597
  %v606 = vmul.f32 %v598, %v598
  %v607 = vsel %vm238, %v599, 0.0
  %608 = vadd.xlane.f32.xlu0 %v607
  %v609 = vpop.xlane.xlu0 %608
  %v610 = vsel %vm238, %v600, 0.0
  %611 = vadd.xlane.f32.xlu0 %v610
  %v612 = vpop.xlane.xlu0 %611
  %v613 = vsel %vm238, %v601, 0.0
  %614 = vadd.xlane.f32.xlu0 %v613
  %v615 = vpop.xlane.xlu0 %614
  %v616 = vsel %vm238, %v602, 0.0
  %617 = vadd.xlane.f32.xlu0 %v616
  %v618 = vpop.xlane.xlu0 %617
  %v619 = vsel %vm238, %v603, 0.0
  %620 = vadd.xlane.f32.xlu0 %v619
  %v621 = vpop.xlane.xlu0 %620
  %v622 = vsel %vm238, %v604, 0.0
  %623 = vadd.xlane.f32.xlu0 %v622
  %v624 = vpop.xlane.xlu0 %623
  %v625 = vsel %vm238, %v605, 0.0
  %626 = vadd.xlane.f32.xlu0 %v625
  %v627 = vpop.xlane.xlu0 %626
  %v628 = vsel %vm238, %v606, 0.0
  %629 = vadd.xlane.f32.xlu0 %v628
  %v630 = vpop.xlane.xlu0 %629
  %631 = vmatprep.subr.mxu0 0.0
  %632 = vmatpush1.msra.mxu0 0.0
  %633 = vmatprep.subr.mxu0 0.0
  %634 = vmatpush1.msra.mxu0 0.0
  %635 = vmatprep.subr.mxu0 0.0
  %636 = vmatpush1.msra.mxu0 0.0
  %637 = vmatprep.subr.mxu0 0.0
  %638 = vmatpush1.msra.mxu0 0.0
  %639 = vmatprep.subr.mxu0 0.0
  %640 = vmatpush1.msra.mxu0 0.0
  %641 = vmatprep.subr.mxu0 0.0
  %642 = vmatpush1.msra.mxu0 0.0
  %643 = vmatprep.subr.mxu0 0.0
  %644 = vmatpush1.msra.mxu0 0.0
  %645 = vmatprep.subr.mxu0 0.0
  %646 = vmatpush1.msra.mxu0 0.0
  %647 = vmatprep.subr.mxu0 0.0
  %648 = vmatpush1.msra.mxu0 %v630
  %649 = vmatprep.subr.mxu0 0.0
  %650 = vmatpush1.msra.mxu0 %v627
  %651 = vmatprep.subr.mxu0 0.0
  %652 = vmatpush1.msra.mxu0 %v624
  %653 = vmatprep.subr.mxu0 0.0
  %654 = vmatpush1.msra.mxu0 %v621
  %655 = vmatprep.subr.mxu0 0.0
  %656 = vmatpush1.msra.mxu0 %v618
  %657 = vmatprep.subr.mxu0 0.0
  %658 = vmatpush1.msra.mxu0 %v615
  %659 = vmatprep.subr.mxu0 0.0
  %660 = vmatpush1.msra.mxu0 %v612
  %661 = vmatprep.subr.mxu0 0.0
  %662 = vmatpush1.msra.mxu0 %v609
  %663 = vmatprep.subr.mxu0 0.0
  %664 = vmatpush2.msra.mxu0 0.0
  %665 = vmatprep.subr.mxu0 0.0
  %666 = vmatpush2.msra.mxu0 0.0
  %667 = vmatprep.subr.mxu0 0.0
  %668 = vmatpush2.msra.mxu0 0.0
  %669 = vmatprep.subr.mxu0 0.0
  %670 = vmatpush2.msra.mxu0 0.0
  %671 = vmatprep.subr.mxu0 0.0
  %672 = vmatpush2.msra.mxu0 0.0
  %673 = vmatprep.subr.mxu0 0.0
  %674 = vmatpush2.msra.mxu0 0.0
  %675 = vmatprep.subr.mxu0 0.0
  %676 = vmatpush2.msra.mxu0 0.0
  %677 = vmatprep.subr.mxu0 0.0
  %678 = vmatpush2.msra.mxu0 0.0
  %679 = vmatprep.subr.mxu0 0.0
  %680 = vmatpush2.msra.mxu0 0.0
  %681 = vmatprep.subr.mxu0 0.0
  %682 = vmatpush2.msra.mxu0 0.0
  %683 = vmatprep.subr.mxu0 0.0
  %684 = vmatpush2.msra.mxu0 0.0
  %685 = vmatprep.subr.mxu0 0.0
  %686 = vmatpush2.msra.mxu0 0.0
  %687 = vmatprep.subr.mxu0 0.0
  %688 = vmatpush2.msra.mxu0 0.0
  %689 = vmatprep.subr.mxu0 0.0
  %690 = vmatpush2.msra.mxu0 0.0
  %691 = vmatprep.subr.mxu0 0.0
  %692 = vmatpush2.msra.mxu0 0.0
  %693 = vmatprep.subr.mxu0 0.0
  %694 = vmatpush2.msra.mxu0 0.0
  %695 = vmatprep.mubr.f32.mxu0 0.0
  %696 = vmatmul.mubr.f32.gmra.mxu0 %v415
  %v697 = vpop.f32.mrf.mxu0
  %v698 = vadd.f32 0.0, %v697
  %v699 = vpop.f32.mrf.mxu0
  %700 = vmatprep.mubr.f32.mxu0 0.0
  %701 = vmatmul.mubr.f32.gmra.mxu0 %v418
  %v702 = vpop.f32.mrf.mxu0
  %v703 = vadd.f32 0.0, %v702
  %v704 = vpop.f32.mrf.mxu0
  %705 = vmatprep.mubr.f32.mxu0 0.0
  %706 = vmatmul.mubr.f32.gmra.mxu0 %v421
  %v707 = vpop.f32.mrf.mxu0
  %v708 = vadd.f32 0.0, %v707
  %v709 = vpop.f32.mrf.mxu0
  %710 = vmatprep.mubr.f32.mxu0 0.0
  %711 = vmatmul.mubr.f32.gmra.mxu0 %v424
  %v712 = vpop.f32.mrf.mxu0
  %v713 = vadd.f32 0.0, %v712
  %v714 = vpop.f32.mrf.mxu0
  %715 = vmatprep.mubr.f32.mxu0 0.0
  %716 = vmatmul.mubr.f32.gmra.mxu0 %v427
  %v717 = vpop.f32.mrf.mxu0
  %v718 = vadd.f32 0.0, %v717
  %v719 = vpop.f32.mrf.mxu0
  %720 = vmatprep.mubr.f32.mxu0 0.0
  %721 = vmatmul.mubr.f32.gmra.mxu0 %v430
  %v722 = vpop.f32.mrf.mxu0
  %v723 = vadd.f32 0.0, %v722
  %v724 = vpop.f32.mrf.mxu0
  %725 = vmatprep.mubr.f32.mxu0 0.0
  %726 = vmatmul.mubr.f32.gmra.mxu0 %v433
  %v727 = vpop.f32.mrf.mxu0
  %v728 = vadd.f32 0.0, %v727
  %v729 = vpop.f32.mrf.mxu0
  %730 = vmatprep.mubr.f32.mxu0 0.0
  %731 = vmatmul.mubr.f32.gmra.mxu0 %v436
  %v732 = vpop.f32.mrf.mxu0
  %v733 = vadd.f32 0.0, %v732
  %v734 = vpop.f32.mrf.mxu0
  %735 = vdwg.mxu0
  %v736 = vmul.f32 %v698, 0.0078125
  %v737 = vmul.f32 %v703, 0.0078125
  %v738 = vmul.f32 %v708, 0.0078125
  %v739 = vmul.f32 %v713, 0.0078125
  %v740 = vmul.f32 %v718, 0.0078125
  %v741 = vmul.f32 %v723, 0.0078125
  %v742 = vmul.f32 %v728, 0.0078125
  %v743 = vmul.f32 %v733, 0.0078125
  %v744 = vld [vmem:[%s2] sm:$0xff]
  %v745 = vld [vmem:[%s2 + $0x8] sm:$0xff]
  %v746 = vld [vmem:[%s2 + $0x10] sm:$0xff]
  %v747 = vld [vmem:[%s2 + $0x18] sm:$0xff]
  %v748 = vld [vmem:[%s2 + $0x20] sm:$0xff]
  %v749 = vld [vmem:[%s2 + $0x28] sm:$0xff]
  %v750 = vld [vmem:[%s2 + $0x30] sm:$0xff]
  %v751 = vld [vmem:[%s2 + $0x38] sm:$0xff]
  %v752 = vadd.f32 %v736, 1e-05
  %v753 = vadd.f32 %v737, 1e-05
  %v754 = vadd.f32 %v738, 1e-05
  %v755 = vadd.f32 %v739, 1e-05
  %v756 = vadd.f32 %v740, 1e-05
  %v757 = vadd.f32 %v741, 1e-05
  %v758 = vadd.f32 %v742, 1e-05
  %v759 = vadd.f32 %v743, 1e-05
  %v760 = vrsqrt.pop %v752
  %v761 = vrsqrt.pop %v753
  %v762 = vrsqrt.pop %v754
  %v763 = vrsqrt.pop %v755
  %v764 = vrsqrt.pop %v756
  %v765 = vrsqrt.pop %v757
  %v766 = vrsqrt.pop %v758
  %v767 = vrsqrt.pop %v759
  %v768 = vmul.f32 %v744, %v760
  %v769 = vmul.f32 %v745, %v761
  %v770 = vmul.f32 %v746, %v762
  %v771 = vmul.f32 %v747, %v763
  %v772 = vmul.f32 %v748, %v764
  %v773 = vmul.f32 %v749, %v765
  %v774 = vmul.f32 %v750, %v766
  %v775 = vmul.f32 %v751, %v767
  %777 = vset.pattern.permute.xlu0 0
  %778 = vperm.xlu0 %777, %v768
  %v779 = vpop.permute.xlu0 %778
  %782 = vset.pattern.permute.xlu0 0
  %783 = vperm.xlu0 %782, %v769
  %v784 = vpop.permute.xlu0 %783
  %787 = vset.pattern.permute.xlu0 0
  %788 = vperm.xlu0 %787, %v770
  %v789 = vpop.permute.xlu0 %788
  %792 = vset.pattern.permute.xlu0 0
  %793 = vperm.xlu0 %792, %v771
  %v794 = vpop.permute.xlu0 %793
  %797 = vset.pattern.permute.xlu0 0
  %798 = vperm.xlu0 %797, %v772
  %v799 = vpop.permute.xlu0 %798
  %802 = vset.pattern.permute.xlu0 0
  %803 = vperm.xlu0 %802, %v773
  %v804 = vpop.permute.xlu0 %803
  %807 = vset.pattern.permute.xlu0 0
  %808 = vperm.xlu0 %807, %v774
  %v809 = vpop.permute.xlu0 %808
  %812 = vset.pattern.permute.xlu0 0
  %813 = vperm.xlu0 %812, %v775
  %v814 = vpop.permute.xlu0 %813
  %v816 = vmul.f32 %v591, %v779
  %v817 = vmul.f32 %v592, %v784
  %v818 = vmul.f32 %v593, %v789
  %v819 = vmul.f32 %v594, %v794
  %v820 = vmul.f32 %v595, %v799
  %v821 = vmul.f32 %v596, %v804
  %v822 = vmul.f32 %v597, %v809
  %v823 = vmul.f32 %v598, %v814
  %825 = vset.pattern.permute.xlu0 1
  %826 = vperm.xlu0 %825, %v744
  %v827 = vpop.permute.xlu0 %826
  %830 = vset.pattern.permute.xlu0 1
  %831 = vperm.xlu0 %830, %v745
  %v832 = vpop.permute.xlu0 %831
  %835 = vset.pattern.permute.xlu0 1
  %836 = vperm.xlu0 %835, %v746
  %v837 = vpop.permute.xlu0 %836
  %840 = vset.pattern.permute.xlu0 1
  %841 = vperm.xlu0 %840, %v747
  %v842 = vpop.permute.xlu0 %841
  %845 = vset.pattern.permute.xlu0 1
  %846 = vperm.xlu0 %845, %v748
  %v847 = vpop.permute.xlu0 %846
  %850 = vset.pattern.permute.xlu0 1
  %851 = vperm.xlu0 %850, %v749
  %v852 = vpop.permute.xlu0 %851
  %855 = vset.pattern.permute.xlu0 1
  %856 = vperm.xlu0 %855, %v750
  %v857 = vpop.permute.xlu0 %856
  %860 = vset.pattern.permute.xlu0 1
  %861 = vperm.xlu0 %860, %v751
  %v862 = vpop.permute.xlu0 %861
  %v864 = vadd.f32 %v816, %v827
  %v865 = vadd.f32 %v817, %v832
  %v866 = vadd.f32 %v818, %v837
  %v867 = vadd.f32 %v819, %v842
  %v868 = vadd.f32 %v820, %v847
  %v869 = vadd.f32 %v821, %v852
  %v870 = vadd.f32 %v822, %v857
  %v871 = vadd.f32 %v823, %v862
  %v872 = vmax.f32 %v864, 0.0
  %v873 = vmax.f32 %v865, 0.0
  %v874 = vmax.f32 %v866, 0.0
  %v875 = vmax.f32 %v867, 0.0
  %v876 = vmax.f32 %v868, 0.0
  %v877 = vmax.f32 %v869, 0.0
  %v878 = vmax.f32 %v870, 0.0
  %v879 = vmax.f32 %v871, 0.0
  %v880 = vpack.c.bf16 %v873, %v872
  %v881 = vpack.c.bf16 %v875, %v874
  %v882 = vpack.c.bf16 %v877, %v876
  %v883 = vpack.c.bf16 %v879, %v878
  %v888 = vunpack.c.l.b16 %v880
  %v889 = vunpack.c.h.b16 %v880
  %v890 = vunpack.c.l.b16 %v881
  %v891 = vunpack.c.h.b16 %v881
  %v892 = vunpack.c.l.b16 %v882
  %v893 = vunpack.c.h.b16 %v882
  %v894 = vunpack.c.l.b16 %v883
  %v895 = vunpack.c.h.b16 %v883
  %v896 = vpack.c.b16 %v888, %v888
  %v897 = vpack.c.b16 %v889, %v889
  %v898 = vpack.c.b16 %v890, %v890
  %v899 = vpack.c.b16 %v891, %v891
  %v900 = vpack.c.b16 %v892, %v892
  %v901 = vpack.c.b16 %v893, %v893
  %v902 = vpack.c.b16 %v894, %v894
  %v903 = vpack.c.b16 %v895, %v895
  %vm912 = vcmask 257024
  %913 = vst.msk [vmem:[%s4] sm:$0xf] %vm912, %v896
  %914 = vst.msk [vmem:[%s4 + $0x4] sm:$0xf] %vm912, %v897
  %915 = vst.msk [vmem:[%s4 + $0x8] sm:$0xf] %vm912, %v898
  %916 = vst.msk [vmem:[%s4 + $0xc] sm:$0xf] %vm912, %v899
  %917 = vst.msk [vmem:[%s4 + $0x10] sm:$0xf] %vm912, %v900
  %918 = vst.msk [vmem:[%s4 + $0x14] sm:$0xf] %vm912, %v901
  %919 = vst.msk [vmem:[%s4 + $0x18] sm:$0xf] %vm912, %v902
  %920 = vst.msk [vmem:[%s4 + $0x1c] sm:$0xf] %vm912, %v903
  // Predicated region
  $region18: #{stage1g_resblock_forward.7} parent=0 // pred_check
    _
  $region19: #{stage1g_resblock_forward.7} parent=0 // pred_check_branch
    %922 = sbr.rel (0) target = $region21
  $region20: #{stage1g_resblock_forward.7} parent=0 // pred_region
    _
  $region21: #{stage1g_resblock_forward.7} parent=0 // pred_fallthru
    _
  // Predicated region
  $region22: #{stage1g_resblock_forward.7} parent=0 // pred_check
    _
  $region23: #{stage1g_resblock_forward.7} parent=0 // pred_check_branch
    %924 = sbr.rel (0) target = $region25
  $region24: #{stage1g_resblock_forward.7} parent=0 // pred_region
    _
  $region25: #{stage1g_resblock_forward.7} parent=0 // pred_fallthru
    _

// kernel: tile.53
$region0: #{tile.53}
  #allocation0 [shape = 's32[1]{0}', space=sflag, size = 0x4, scoped, tag = 'scoped memory for tile.53']
  %s0 = inlined_call_operand.vmem [shape: f32[8], index: 0, kind: input, shape index: {}]
  %s1 = inlined_call_operand.vmem [shape: f32[4,8], index: 1, kind: output, shape index: {}]
  // Predicated region
  $region2: #{tile.53} parent=0 // pred_check
    _
  $region3: #{tile.53} parent=0 // pred_check_branch
    %3 = sbr.rel (0) target = $region5
  $region4: #{tile.53} parent=0 // pred_region
    _
  $region5: #{tile.53} parent=0 // pred_fallthru
    _
  %v4 = vld [vmem:[%s0] ss:$0 sm:$0xff]
  %5 = vst [vmem:[%s1] sm:$0xf] %v4

// kernel: tile.58
$region0: #{tile.58}
  %s0 = inlined_call_operand.vmem [shape: f32[4,8], index: 0, kind: input, shape index: {}]
  %s1 = inlined_call_operand.vmem [shape: f32[32,1], index: 1, kind: output, shape index: {}]
  $region1: #{tile.58} parent=0
    #allocation0 [shape = 'u8[4096]{0}', space=vmem, size = 0x1000, scoped, tag = 'scoped mem for output reshape']
    #allocation1 [shape = 'u8[4096]{0}', space=vmem, size = 0x1000, scoped, tag = 'scoped mem for input reshape']
    %s3 = sshll.u32 1, 4
    %s4 = ssub.s32 %s3, 1
    %v5 = vld [vmem:[%s0] sm:%s4]
    %6 = vst [vmem:[#allocation1] sm:%s4] %v5
    %v7 = vld [vmem:[#allocation1] sm:$0x1]
    %vm8 = vcmask 64512
    %9 = vst.msk [vmem:[#allocation0] sm:$0x1] %vm8, %v7
    %s10 = scalar_lea.vmem [#allocation1], 3
    %v11 = vld [vmem:[%s10] sm:$0x1]
    %12 = vrot.lane.b32.xlu0 %v11, 24
    %v13 = vpop.permute.xlu0 %12
    %vm14 = vcmask 261312
    %15 = vst.msk [vmem:[#allocation0] sm:$0x1] %vm14, %v13
    %s16 = scalar_lea.vmem [#allocation1], 2
    %v17 = vld [vmem:[%s16] sm:$0x1]
    %18 = vrot.lane.b32.xlu0 %v17, 16
    %v19 = vpop.permute.xlu0 %18
    %vm20 = vcmask 195712
    %21 = vst.msk [vmem:[#allocation0] sm:$0x1] %vm20, %v19
    %s22 = scalar_lea.vmem [#allocation1], 1
    %v23 = vld [vmem:[%s22] sm:$0x1]
    %24 = vrot.lane.b32.xlu0 %v23, 8
    %v25 = vpop.permute.xlu0 %24
    %vm26 = vcmask 130112
    %27 = vst.msk [vmem:[#allocation0] sm:$0x1] %vm26, %v25
    %s29 = sshll.u32 1, 1
    %s30 = ssub.s32 %s29, 1
    %v32 = vld [vmem:[#allocation0] sm:%s30]
    %s33 = sshll.u32 1, 1
    %s34 = ssub.s32 %s33, 1
    %35 = vst [vmem:[%s1] sm:%s34] %v32

// kernel: stage1g_resblock_forward.8
$region0: #{stage1g_resblock_forward.8}
  #allocation0 [shape = 'u32[]', space=smem, size = 0x4, offset = 0x4, fixed_abs, tag = 'smem constant byte address 0x4 - core index']
  #allocation1 [shape = 'u32[144,128]{1,0:T(1,128)}', space=vmem, size = 0x12000, scoped, tag = 'internal scratch']
  %s0 = inlined_call_operand.vmem [shape: bf16[144,128], index: 0, kind: input, shape index: {}]
  %s1 = inlined_call_operand.vmem [shape: bf16[32,144], index: 1, kind: input, shape index: {}]
  %s2 = inlined_call_operand.vmem [shape: f32[32,2], index: 2, kind: input, shape index: {}]
  %s3 = inlined_call_operand.vmem [shape: f32[32,32], index: 3, kind: input, shape index: {}]
  %s4 = inlined_call_operand.vmem [shape: bf16[32,128], index: 4, kind: output, shape index: {}]
  %s5 = sld [smem:[#allocation0]]
  $region26: #{stage1g_resblock_forward.8} parent=0
    _
  %s7 = ssub.s32 1, %s5
  %s8 = scalar_select 0, %s7, %s5
  // Predicated region
  $region2: #{stage1g_resblock_forward.8} parent=0 // pred_check
    _
  $region3: #{stage1g_resblock_forward.8} parent=0 // pred_check_branch
    %10 = sbr.rel (0) target = $region5
  $region4: #{stage1g_resblock_forward.8} parent=0 // pred_region
    _
  $region5: #{stage1g_resblock_forward.8} parent=0 // pred_fallthru
    _
  // Predicated region
  $region6: #{stage1g_resblock_forward.8} parent=0 // pred_check
    _
  $region7: #{stage1g_resblock_forward.8} parent=0 // pred_check_branch
    %12 = sbr.rel (0) target = $region9
  $region8: #{stage1g_resblock_forward.8} parent=0 // pred_region
    _
  $region9: #{stage1g_resblock_forward.8} parent=0 // pred_fallthru
    _
  // Predicated region
  $region10: #{stage1g_resblock_forward.8} parent=0 // pred_check
    _
  $region11: #{stage1g_resblock_forward.8} parent=0 // pred_check_branch
    %14 = sbr.rel (0) target = $region13
  $region12: #{stage1g_resblock_forward.8} parent=0 // pred_region
    _
  $region13: #{stage1g_resblock_forward.8} parent=0 // pred_fallthru
    _
  // Predicated region
  $region14: #{stage1g_resblock_forward.8} parent=0 // pred_check
    _
  $region15: #{stage1g_resblock_forward.8} parent=0 // pred_check_branch
    %16 = sbr.rel (0) target = $region17
  $region16: #{stage1g_resblock_forward.8} parent=0 // pred_region
    _
  $region17: #{stage1g_resblock_forward.8} parent=0 // pred_fallthru
    _
  %v18 = vld [vmem:[%s1] sm:$0xff]
  %v19 = vld [vmem:[%s1 + $0x8] sm:$0xff]
  %v20 = vld [vmem:[%s1 + $0x10] sm:$0xff]
  %v21 = vld [vmem:[%s1 + $0x18] sm:$0xff]
  %v22 = vld [vmem:[%s0] sm:$0xf]
  %v23 = vld [vmem:[%s0 + $0x4] sm:$0xf]
  %v24 = vld [vmem:[%s0 + $0x8] sm:$0xf]
  %v25 = vld [vmem:[%s0 + $0xc] sm:$0xf]
  %v26 = vld [vmem:[%s0 + $0x10] sm:$0xf]
  %v27 = vld [vmem:[%s0 + $0x14] sm:$0xf]
  %v28 = vld [vmem:[%s0 + $0x18] sm:$0xf]
  %v29 = vld [vmem:[%s0 + $0x1c] sm:$0xf]
  %v30 = vld [vmem:[%s0 + $0x20] sm:$0xf]
  %v31 = vld [vmem:[%s0 + $0x24] sm:$0xf]
  %v32 = vld [vmem:[%s0 + $0x28] sm:$0xf]
  %v33 = vld [vmem:[%s0 + $0x2c] sm:$0xf]
  %v34 = vld [vmem:[%s0 + $0x30] sm:$0xf]
  %v35 = vld [vmem:[%s0 + $0x34] sm:$0xf]
  %v36 = vld [vmem:[%s0 + $0x38] sm:$0xf]
  %v37 = vld [vmem:[%s0 + $0x3c] sm:$0xf]
  %v38 = vld [vmem:[%s0 + $0x40] sm:$0xf]
  %v39 = vld [vmem:[%s0 + $0x44] sm:$0xf]
  %v44 = vunpack.c.l.b16 %v18
  %v45 = vunpack.c.h.b16 %v18
  %v46 = vunpack.c.l.b16 %v19
  %v47 = vunpack.c.h.b16 %v19
  %v48 = vunpack.c.l.b16 %v20
  %v49 = vunpack.c.h.b16 %v20
  %v50 = vunpack.c.l.b16 %v21
  %v51 = vunpack.c.h.b16 %v21
  %v52 = vpack.c.b16 %v46, %v44
  %v53 = vpack.c.b16 %v47, %v45
  %v54 = vpack.c.b16 %v50, %v48
  %v55 = vpack.c.b16 %v51, %v49
  %v76 = vunpack.c.l.b16 %v22
  %v77 = vunpack.c.l.b16 %v23
  %v78 = vunpack.c.l.b16 %v24
  %v79 = vunpack.c.l.b16 %v25
  %v80 = vunpack.c.l.b16 %v26
  %v81 = vunpack.c.l.b16 %v27
  %v82 = vunpack.c.l.b16 %v28
  %v83 = vunpack.c.l.b16 %v29
  %v84 = vunpack.c.l.b16 %v30
  %v85 = vunpack.c.l.b16 %v31
  %v86 = vunpack.c.l.b16 %v32
  %v87 = vunpack.c.l.b16 %v33
  %v88 = vunpack.c.l.b16 %v34
  %v89 = vunpack.c.l.b16 %v35
  %v90 = vunpack.c.l.b16 %v36
  %v91 = vunpack.c.l.b16 %v37
  %v92 = vunpack.c.l.b16 %v38
  %v93 = vunpack.c.l.b16 %v39
  %v94 = vpack.c.b16 %v77, %v76
  %v95 = vpack.c.b16 %v79, %v78
  %v96 = vpack.c.b16 %v81, %v80
  %v97 = vpack.c.b16 %v83, %v82
  %v98 = vpack.c.b16 %v85, %v84
  %v99 = vpack.c.b16 %v87, %v86
  %v100 = vpack.c.b16 %v89, %v88
  %v101 = vpack.c.b16 %v91, %v90
  %v102 = vpack.c.b16 %v93, %v92
  %vm112 = vcmask 130048
  %v114 = vsel %vm112, %v53, 0
  %v117 = vsel %vm112, %v55, 0
  %119 = vmatprep.subr.bf16.mxu0 0
  %120 = vmatpush1.bf16.msra.mxu0 %v101
  %121 = vmatprep.subr.bf16.mxu0 0
  %122 = vmatpush1.bf16.msra.mxu0 %v100
  %123 = vmatprep.subr.bf16.mxu0 0
  %124 = vmatpush1.bf16.msra.mxu0 %v99
  %125 = vmatprep.subr.bf16.mxu0 0
  %126 = vmatpush1.bf16.msra.mxu0 %v98
  %127 = vmatprep.subr.bf16.mxu0 0
  %128 = vmatpush1.bf16.msra.mxu0 %v97
  %129 = vmatprep.subr.bf16.mxu0 0
  %130 = vmatpush1.bf16.msra.mxu0 %v96
  %131 = vmatprep.subr.bf16.mxu0 0
  %132 = vmatpush1.bf16.msra.mxu0 %v95
  %133 = vmatprep.subr.bf16.mxu0 0
  %134 = vmatpush1.bf16.msra.mxu0 %v94
  %135 = vmatprep.subr.bf16.mxu0 0
  %136 = vmatpush2.bf16.msra.mxu0 0
  %137 = vmatprep.subr.bf16.mxu0 0
  %138 = vmatpush2.bf16.msra.mxu0 0
  %139 = vmatprep.subr.bf16.mxu0 0
  %140 = vmatpush2.bf16.msra.mxu0 0
  %141 = vmatprep.subr.bf16.mxu0 0
  %142 = vmatpush2.bf16.msra.mxu0 0
  %143 = vmatprep.subr.bf16.mxu0 0
  %144 = vmatpush2.bf16.msra.mxu0 0
  %145 = vmatprep.subr.bf16.mxu0 0
  %146 = vmatpush2.bf16.msra.mxu0 0
  %147 = vmatprep.subr.bf16.mxu0 0
  %148 = vmatpush2.bf16.msra.mxu0 0
  %149 = vmatprep.subr.bf16.mxu0 0
  %150 = vmatpush2.bf16.msra.mxu0 %v102
  %151 = vmatprep.mubr.bf16.mxu0 %v114
  %152 = vmatmul.mubr.bf16.gmra.mxu0 %v52
  %v153 = vpop.f32.mrf.mxu0
  %v154 = vadd.f32 0.0, %v153
  %v155 = vpop.f32.mrf.mxu0
  %v156 = vpop.f32.mrf.mxu0
  %v157 = vadd.f32 0.0, %v156
  %v158 = vpop.f32.mrf.mxu0
  %159 = vmatprep.mubr.bf16.mxu0 %v117
  %160 = vmatmul.mubr.bf16.gmra.mxu0 %v54
  %v161 = vpop.f32.mrf.mxu0
  %v162 = vadd.f32 0.0, %v161
  %v163 = vpop.f32.mrf.mxu0
  %v164 = vpop.f32.mrf.mxu0
  %v165 = vadd.f32 0.0, %v164
  %v166 = vpop.f32.mrf.mxu0
  %167 = vdwg.mxu0
  %168 = vadd.xlane.f32.xlu0 %v154
  %v169 = vpop.xlane.xlu0 %168
  %170 = vadd.xlane.f32.xlu0 %v157
  %v171 = vpop.xlane.xlu0 %170
  %172 = vadd.xlane.f32.xlu0 %v162
  %v173 = vpop.xlane.xlu0 %172
  %174 = vadd.xlane.f32.xlu0 %v165
  %v175 = vpop.xlane.xlu0 %174
  %v176 = vld [vmem:[%s3] sm:$0xff]
  %v177 = vld [vmem:[%s3 + $0x8] sm:$0xff]
  %v178 = vld [vmem:[%s3 + $0x10] sm:$0xff]
  %v179 = vld [vmem:[%s3 + $0x18] sm:$0xff]
  %vm180 = vcmask 261120
  %v182 = vsel %vm180, %v176, 0
  %v185 = vsel %vm180, %v177, 0
  %v188 = vsel %vm180, %v178, 0
  %v191 = vsel %vm180, %v179, 0
  %193 = vmatprep.subr.mxu0 0.0
  %194 = vmatpush1.msra.mxu0 0.0
  %195 = vmatprep.subr.mxu0 0.0
  %196 = vmatpush1.msra.mxu0 0.0
  %197 = vmatprep.subr.mxu0 0.0
  %198 = vmatpush1.msra.mxu0 0.0
  %199 = vmatprep.subr.mxu0 0.0
  %200 = vmatpush1.msra.mxu0 0.0
  %201 = vmatprep.subr.mxu0 0.0
  %202 = vmatpush1.msra.mxu0 0.0
  %203 = vmatprep.subr.mxu0 0.0
  %204 = vmatpush1.msra.mxu0 0.0
  %205 = vmatprep.subr.mxu0 0.0
  %206 = vmatpush1.msra.mxu0 0.0
  %207 = vmatprep.subr.mxu0 0.0
  %208 = vmatpush1.msra.mxu0 0.0
  %209 = vmatprep.subr.mxu0 0.0
  %210 = vmatpush1.msra.mxu0 0.0
  %211 = vmatprep.subr.mxu0 0.0
  %212 = vmatpush1.msra.mxu0 0.0
  %213 = vmatprep.subr.mxu0 0.0
  %214 = vmatpush1.msra.mxu0 0.0
  %215 = vmatprep.subr.mxu0 0.0
  %216 = vmatpush1.msra.mxu0 0.0
  %217 = vmatprep.subr.mxu0 0.0
  %218 = vmatpush1.msra.mxu0 %v175
  %219 = vmatprep.subr.mxu0 0.0
  %220 = vmatpush1.msra.mxu0 %v173
  %221 = vmatprep.subr.mxu0 0.0
  %222 = vmatpush1.msra.mxu0 %v171
  %223 = vmatprep.subr.mxu0 0.0
  %224 = vmatpush1.msra.mxu0 %v169
  %225 = vmatprep.subr.mxu0 0.0
  %226 = vmatpush2.msra.mxu0 0.0
  %227 = vmatprep.subr.mxu0 0.0
  %228 = vmatpush2.msra.mxu0 0.0
  %229 = vmatprep.subr.mxu0 0.0
  %230 = vmatpush2.msra.mxu0 0.0
  %231 = vmatprep.subr.mxu0 0.0
  %232 = vmatpush2.msra.mxu0 0.0
  %233 = vmatprep.subr.mxu0 0.0
  %234 = vmatpush2.msra.mxu0 0.0
  %235 = vmatprep.subr.mxu0 0.0
  %236 = vmatpush2.msra.mxu0 0.0
  %237 = vmatprep.subr.mxu0 0.0
  %238 = vmatpush2.msra.mxu0 0.0
  %239 = vmatprep.subr.mxu0 0.0
  %240 = vmatpush2.msra.mxu0 0.0
  %241 = vmatprep.subr.mxu0 0.0
  %242 = vmatpush2.msra.mxu0 0.0
  %243 = vmatprep.subr.mxu0 0.0
  %244 = vmatpush2.msra.mxu0 0.0
  %245 = vmatprep.subr.mxu0 0.0
  %246 = vmatpush2.msra.mxu0 0.0
  %247 = vmatprep.subr.mxu0 0.0
  %248 = vmatpush2.msra.mxu0 0.0
  %249 = vmatprep.subr.mxu0 0.0
  %250 = vmatpush2.msra.mxu0 0.0
  %251 = vmatprep.subr.mxu0 0.0
  %252 = vmatpush2.msra.mxu0 0.0
  %253 = vmatprep.subr.mxu0 0.0
  %254 = vmatpush2.msra.mxu0 0.0
  %255 = vmatprep.subr.mxu0 0.0
  %256 = vmatpush2.msra.mxu0 0.0
  %257 = vmatprep.mubr.f32.mxu0 0.0
  %258 = vmatmul.mubr.f32.gmra.mxu0 %v182
  %v259 = vpop.f32.mrf.mxu0
  %v260 = vadd.f32 0.0, %v259
  %v261 = vpop.f32.mrf.mxu0
  %262 = vmatprep.mubr.f32.mxu0 0.0
  %263 = vmatmul.mubr.f32.gmra.mxu0 %v185
  %v264 = vpop.f32.mrf.mxu0
  %v265 = vadd.f32 0.0, %v264
  %v266 = vpop.f32.mrf.mxu0
  %267 = vmatprep.mubr.f32.mxu0 0.0
  %268 = vmatmul.mubr.f32.gmra.mxu0 %v188
  %v269 = vpop.f32.mrf.mxu0
  %v270 = vadd.f32 0.0, %v269
  %v271 = vpop.f32.mrf.mxu0
  %272 = vmatprep.mubr.f32.mxu0 0.0
  %273 = vmatmul.mubr.f32.gmra.mxu0 %v191
  %v274 = vpop.f32.mrf.mxu0
  %v275 = vadd.f32 0.0, %v274
  %v276 = vpop.f32.mrf.mxu0
  %277 = vdwg.mxu0
  %v278 = vmul.f32 %v260, 0.001953125
  %v279 = vmul.f32 %v265, 0.001953125
  %v280 = vmul.f32 %v270, 0.001953125
  %v281 = vmul.f32 %v275, 0.001953125
  %283 = vset.pattern.permute.xlu0 0
  %284 = vperm.xlu0 %283, %v278
  %v285 = vpop.permute.xlu0 %284
  %288 = vset.pattern.permute.xlu0 0
  %289 = vperm.xlu0 %288, %v279
  %v290 = vpop.permute.xlu0 %289
  %293 = vset.pattern.permute.xlu0 0
  %294 = vperm.xlu0 %293, %v280
  %v295 = vpop.permute.xlu0 %294
  %298 = vset.pattern.permute.xlu0 0
  %299 = vperm.xlu0 %298, %v281
  %v300 = vpop.permute.xlu0 %299
  %v302 = vsub.f32 %v154, %v285
  %v303 = vsub.f32 %v157, %v290
  %v304 = vsub.f32 %v162, %v295
  %v305 = vsub.f32 %v165, %v300
  %v306 = vmul.f32 %v302, %v302
  %v307 = vmul.f32 %v303, %v303
  %v308 = vmul.f32 %v304, %v304
  %v309 = vmul.f32 %v305, %v305
  %310 = vadd.xlane.f32.xlu0 %v306
  %v311 = vpop.xlane.xlu0 %310
  %312 = vadd.xlane.f32.xlu0 %v307
  %v313 = vpop.xlane.xlu0 %312
  %314 = vadd.xlane.f32.xlu0 %v308
  %v315 = vpop.xlane.xlu0 %314
  %316 = vadd.xlane.f32.xlu0 %v309
  %v317 = vpop.xlane.xlu0 %316
  %318 = vmatprep.subr.mxu0 0.0
  %319 = vmatpush1.msra.mxu0 0.0
  %320 = vmatprep.subr.mxu0 0.0
  %321 = vmatpush1.msra.mxu0 0.0
  %322 = vmatprep.subr.mxu0 0.0
  %323 = vmatpush1.msra.mxu0 0.0
  %324 = vmatprep.subr.mxu0 0.0
  %325 = vmatpush1.msra.mxu0 0.0
  %326 = vmatprep.subr.mxu0 0.0
  %327 = vmatpush1.msra.mxu0 0.0
  %328 = vmatprep.subr.mxu0 0.0
  %329 = vmatpush1.msra.mxu0 0.0
  %330 = vmatprep.subr.mxu0 0.0
  %331 = vmatpush1.msra.mxu0 0.0
  %332 = vmatprep.subr.mxu0 0.0
  %333 = vmatpush1.msra.mxu0 0.0
  %334 = vmatprep.subr.mxu0 0.0
  %335 = vmatpush1.msra.mxu0 0.0
  %336 = vmatprep.subr.mxu0 0.0
  %337 = vmatpush1.msra.mxu0 0.0
  %338 = vmatprep.subr.mxu0 0.0
  %339 = vmatpush1.msra.mxu0 0.0
  %340 = vmatprep.subr.mxu0 0.0
  %341 = vmatpush1.msra.mxu0 0.0
  %342 = vmatprep.subr.mxu0 0.0
  %343 = vmatpush1.msra.mxu0 %v317
  %344 = vmatprep.subr.mxu0 0.0
  %345 = vmatpush1.msra.mxu0 %v315
  %346 = vmatprep.subr.mxu0 0.0
  %347 = vmatpush1.msra.mxu0 %v313
  %348 = vmatprep.subr.mxu0 0.0
  %349 = vmatpush1.msra.mxu0 %v311
  %350 = vmatprep.subr.mxu0 0.0
  %351 = vmatpush2.msra.mxu0 0.0
  %352 = vmatprep.subr.mxu0 0.0
  %353 = vmatpush2.msra.mxu0 0.0
  %354 = vmatprep.subr.mxu0 0.0
  %355 = vmatpush2.msra.mxu0 0.0
  %356 = vmatprep.subr.mxu0 0.0
  %357 = vmatpush2.msra.mxu0 0.0
  %358 = vmatprep.subr.mxu0 0.0
  %359 = vmatpush2.msra.mxu0 0.0
  %360 = vmatprep.subr.mxu0 0.0
  %361 = vmatpush2.msra.mxu0 0.0
  %362 = vmatprep.subr.mxu0 0.0
  %363 = vmatpush2.msra.mxu0 0.0
  %364 = vmatprep.subr.mxu0 0.0
  %365 = vmatpush2.msra.mxu0 0.0
  %366 = vmatprep.subr.mxu0 0.0
  %367 = vmatpush2.msra.mxu0 0.0
  %368 = vmatprep.subr.mxu0 0.0
  %369 = vmatpush2.msra.mxu0 0.0
  %370 = vmatprep.subr.mxu0 0.0
  %371 = vmatpush2.msra.mxu0 0.0
  %372 = vmatprep.subr.mxu0 0.0
  %373 = vmatpush2.msra.mxu0 0.0
  %374 = vmatprep.subr.mxu0 0.0
  %375 = vmatpush2.msra.mxu0 0.0
  %376 = vmatprep.subr.mxu0 0.0
  %377 = vmatpush2.msra.mxu0 0.0
  %378 = vmatprep.subr.mxu0 0.0
  %379 = vmatpush2.msra.mxu0 0.0
  %380 = vmatprep.subr.mxu0 0.0
  %381 = vmatpush2.msra.mxu0 0.0
  %382 = vmatprep.mubr.f32.mxu0 0.0
  %383 = vmatmul.mubr.f32.gmra.mxu0 %v182
  %v384 = vpop.f32.mrf.mxu0
  %v385 = vadd.f32 0.0, %v384
  %v386 = vpop.f32.mrf.mxu0
  %387 = vmatprep.mubr.f32.mxu0 0.0
  %388 = vmatmul.mubr.f32.gmra.mxu0 %v185
  %v389 = vpop.f32.mrf.mxu0
  %v390 = vadd.f32 0.0, %v389
  %v391 = vpop.f32.mrf.mxu0
  %392 = vmatprep.mubr.f32.mxu0 0.0
  %393 = vmatmul.mubr.f32.gmra.mxu0 %v188
  %v394 = vpop.f32.mrf.mxu0
  %v395 = vadd.f32 0.0, %v394
  %v396 = vpop.f32.mrf.mxu0
  %397 = vmatprep.mubr.f32.mxu0 0.0
  %398 = vmatmul.mubr.f32.gmra.mxu0 %v191
  %v399 = vpop.f32.mrf.mxu0
  %v400 = vadd.f32 0.0, %v399
  %v401 = vpop.f32.mrf.mxu0
  %402 = vdwg.mxu0
  %v403 = vmul.f32 %v385, 0.001953125
  %v404 = vmul.f32 %v390, 0.001953125
  %v405 = vmul.f32 %v395, 0.001953125
  %v406 = vmul.f32 %v400, 0.001953125
  %v407 = vld [vmem:[%s2] sm:$0xff]
  %v408 = vld [vmem:[%s2 + $0x8] sm:$0xff]
  %v409 = vld [vmem:[%s2 + $0x10] sm:$0xff]
  %v410 = vld [vmem:[%s2 + $0x18] sm:$0xff]
  %v411 = vadd.f32 %v403, 1e-05
  %v412 = vadd.f32 %v404, 1e-05
  %v413 = vadd.f32 %v405, 1e-05
  %v414 = vadd.f32 %v406, 1e-05
  %v415 = vrsqrt.pop %v411
  %v416 = vrsqrt.pop %v412
  %v417 = vrsqrt.pop %v413
  %v418 = vrsqrt.pop %v414
  %v419 = vmul.f32 %v407, %v415
  %v420 = vmul.f32 %v408, %v416
  %v421 = vmul.f32 %v409, %v417
  %v422 = vmul.f32 %v410, %v418
  %424 = vset.pattern.permute.xlu0 0
  %425 = vperm.xlu0 %424, %v419
  %v426 = vpop.permute.xlu0 %425
  %429 = vset.pattern.permute.xlu0 0
  %430 = vperm.xlu0 %429, %v420
  %v431 = vpop.permute.xlu0 %430
  %434 = vset.pattern.permute.xlu0 0
  %435 = vperm.xlu0 %434, %v421
  %v436 = vpop.permute.xlu0 %435
  %439 = vset.pattern.permute.xlu0 0
  %440 = vperm.xlu0 %439, %v422
  %v441 = vpop.permute.xlu0 %440
  %v443 = vmul.f32 %v302, %v426
  %v444 = vmul.f32 %v303, %v431
  %v445 = vmul.f32 %v304, %v436
  %v446 = vmul.f32 %v305, %v441
  %448 = vset.pattern.permute.xlu0 1
  %449 = vperm.xlu0 %448, %v407
  %v450 = vpop.permute.xlu0 %449
  %453 = vset.pattern.permute.xlu0 1
  %454 = vperm.xlu0 %453, %v408
  %v455 = vpop.permute.xlu0 %454
  %458 = vset.pattern.permute.xlu0 1
  %459 = vperm.xlu0 %458, %v409
  %v460 = vpop.permute.xlu0 %459
  %463 = vset.pattern.permute.xlu0 1
  %464 = vperm.xlu0 %463, %v410
  %v465 = vpop.permute.xlu0 %464
  %v467 = vadd.f32 %v443, %v450
  %v468 = vadd.f32 %v444, %v455
  %v469 = vadd.f32 %v445, %v460
  %v470 = vadd.f32 %v446, %v465
  %v471 = vmax.f32 %v467, 0.0
  %v472 = vmax.f32 %v468, 0.0
  %v473 = vmax.f32 %v469, 0.0
  %v474 = vmax.f32 %v470, 0.0
  %v475 = vpack.c.bf16 %v472, %v471
  %v476 = vpack.c.bf16 %v474, %v473
  %v479 = vunpack.c.l.b16 %v475
  %v480 = vunpack.c.h.b16 %v475
  %v481 = vunpack.c.l.b16 %v476
  %v482 = vunpack.c.h.b16 %v476
  %v483 = vpack.c.b16 %v479, %v479
  %v484 = vpack.c.b16 %v480, %v480
  %v485 = vpack.c.b16 %v481, %v481
  %v486 = vpack.c.b16 %v482, %v482
  %491 = vst [vmem:[%s4] sm:$0xf] %v483
  %492 = vst [vmem:[%s4 + $0x4] sm:$0xf] %v484
  %493 = vst [vmem:[%s4 + $0x8] sm:$0xf] %v485
  %494 = vst [vmem:[%s4 + $0xc] sm:$0xf] %v486
  // Predicated region
  $region18: #{stage1g_resblock_forward.8} parent=0 // pred_check
    _
  $region19: #{stage1g_resblock_forward.8} parent=0 // pred_check_branch
    %496 = sbr.rel (0) target = $region21
  $region20: #{stage1g_resblock_forward.8} parent=0 // pred_region
    _
  $region21: #{stage1g_resblock_forward.8} parent=0 // pred_fallthru
    _
  // Predicated region
  $region22: #{stage1g_resblock_forward.8} parent=0 // pred_check
    _
  $region23: #{stage1g_resblock_forward.8} parent=0 // pred_check_branch
    %498 = sbr.rel (0) target = $region25
  $region24: #{stage1g_resblock_forward.8} parent=0 // pred_region
    _
  $region25: #{stage1g_resblock_forward.8} parent=0 // pred_fallthru
    _

// kernel: tile.63
$region0: #{tile.63}
  #allocation0 [shape = 's32[1]{0}', space=sflag, size = 0x4, scoped, tag = 'scoped memory for tile.63']
  %s0 = inlined_call_operand.vmem [shape: f32[4], index: 0, kind: input, shape index: {}]
  %s1 = inlined_call_operand.vmem [shape: f32[4,4], index: 1, kind: output, shape index: {}]
  // Predicated region
  $region2: #{tile.63} parent=0 // pred_check
    _
  $region3: #{tile.63} parent=0 // pred_check_branch
    %3 = sbr.rel (0) target = $region5
  $region4: #{tile.63} parent=0 // pred_region
    _
  $region5: #{tile.63} parent=0 // pred_fallthru
    _
  %v4 = vld [vmem:[%s0] ss:$0 sm:$0xff]
  %5 = vst [vmem:[%s1] sm:$0xf] %v4

// kernel: tile.68
$region0: #{tile.68}
  %s0 = inlined_call_operand.vmem [shape: f32[4,4], index: 0, kind: input, shape index: {}]
  %s1 = inlined_call_operand.vmem [shape: f32[16,1], index: 1, kind: output, shape index: {}]
  $region1: #{tile.68} parent=0
    #allocation0 [shape = 'u8[4096]{0}', space=vmem, size = 0x1000, scoped, tag = 'scoped mem for output reshape']
    #allocation1 [shape = 'u8[4096]{0}', space=vmem, size = 0x1000, scoped, tag = 'scoped mem for input reshape']
    %s3 = sshll.u32 1, 4
    %s4 = ssub.s32 %s3, 1
    %v5 = vld [vmem:[%s0] sm:%s4]
    %6 = vst [vmem:[#allocation1] sm:%s4] %v5
    %v7 = vld [vmem:[#allocation1] sm:$0x1]
    %vm8 = vcmask 31744
    %9 = vst.msk [vmem:[#allocation0] sm:$0x1] %vm8, %v7
    %s10 = scalar_lea.vmem [#allocation1], 3
    %v11 = vld [vmem:[%s10] sm:$0x1]
    %12 = vrot.lane.b32.xlu0 %v11, 12
    %v13 = vpop.permute.xlu0 %12
    %vm14 = vcmask 130144
    %15 = vst.msk [vmem:[#allocation0] sm:$0x1] %vm14, %v13
    %s16 = scalar_lea.vmem [#allocation1], 2
    %v17 = vld [vmem:[%s16] sm:$0x1]
    %18 = vrot.lane.b32.xlu0 %v17, 8
    %v19 = vpop.permute.xlu0 %18
    %vm20 = vcmask 97344
    %21 = vst.msk [vmem:[#allocation0] sm:$0x1] %vm20, %v19
    %s22 = scalar_lea.vmem [#allocation1], 1
    %v23 = vld [vmem:[%s22] sm:$0x1]
    %24 = vrot.lane.b32.xlu0 %v23, 4
    %v25 = vpop.permute.xlu0 %24
    %vm26 = vcmask 64544
    %27 = vst.msk [vmem:[#allocation0] sm:$0x1] %vm26, %v25
    %s29 = sshll.u32 1, 1
    %s30 = ssub.s32 %s29, 1
    %v32 = vld [vmem:[#allocation0] sm:%s30]
    %s33 = sshll.u32 1, 1
    %s34 = ssub.s32 %s33, 1
    %35 = vst [vmem:[%s1] sm:%s34] %v32

// kernel: stage1g_resblock_forward.9
$region0: #{stage1g_resblock_forward.9}
  #allocation0 [shape = 'u32[]', space=smem, size = 0x4, offset = 0x4, fixed_abs, tag = 'smem constant byte address 0x4 - core index']
  #allocation1 [shape = 'u32[144,128]{1,0:T(1,128)}', space=vmem, size = 0x12000, scoped, tag = 'internal scratch']
  %s0 = inlined_call_operand.vmem [shape: bf16[72,512], index: 0, kind: input, shape index: {}]
  %s1 = inlined_call_operand.vmem [shape: bf16[16,72], index: 1, kind: input, shape index: {}]
  %s2 = inlined_call_operand.vmem [shape: f32[16,2], index: 2, kind: input, shape index: {}]
  %s3 = inlined_call_operand.vmem [shape: f32[16,16], index: 3, kind: input, shape index: {}]
  %s4 = inlined_call_operand.vmem [shape: bf16[16,512], index: 4, kind: output, shape index: {}]
  %s5 = sld [smem:[#allocation0]]
  $region26: #{stage1g_resblock_forward.9} parent=0
    _
  %s7 = ssub.s32 1, %s5
  %s8 = scalar_select 0, %s7, %s5
  // Predicated region
  $region2: #{stage1g_resblock_forward.9} parent=0 // pred_check
    _
  $region3: #{stage1g_resblock_forward.9} parent=0 // pred_check_branch
    %10 = sbr.rel (0) target = $region5
  $region4: #{stage1g_resblock_forward.9} parent=0 // pred_region
    _
  $region5: #{stage1g_resblock_forward.9} parent=0 // pred_fallthru
    _
  // Predicated region
  $region6: #{stage1g_resblock_forward.9} parent=0 // pred_check
    _
  $region7: #{stage1g_resblock_forward.9} parent=0 // pred_check_branch
    %12 = sbr.rel (0) target = $region9
  $region8: #{stage1g_resblock_forward.9} parent=0 // pred_region
    _
  $region9: #{stage1g_resblock_forward.9} parent=0 // pred_fallthru
    _
  // Predicated region
  $region10: #{stage1g_resblock_forward.9} parent=0 // pred_check
    _
  $region11: #{stage1g_resblock_forward.9} parent=0 // pred_check_branch
    %14 = sbr.rel (0) target = $region13
  $region12: #{stage1g_resblock_forward.9} parent=0 // pred_region
    _
  $region13: #{stage1g_resblock_forward.9} parent=0 // pred_fallthru
    _
  // Predicated region
  $region14: #{stage1g_resblock_forward.9} parent=0 // pred_check
    _
  $region15: #{stage1g_resblock_forward.9} parent=0 // pred_check_branch
    %16 = sbr.rel (0) target = $region17
  $region16: #{stage1g_resblock_forward.9} parent=0 // pred_region
    _
  $region17: #{stage1g_resblock_forward.9} parent=0 // pred_fallthru
    _
  %v18 = vld [vmem:[%s1] sm:$0xf]
  %v19 = vld [vmem:[%s1 + $0x4] sm:$0xf]
  %v20 = vld [vmem:[%s0] sm:$0xff]
  %v21 = vld [vmem:[%s0 + $0x8] sm:$0xff]
  %v22 = vld [vmem:[%s0 + $0x10] sm:$0xff]
  %v23 = vld [vmem:[%s0 + $0x18] sm:$0xff]
  %v24 = vld [vmem:[%s0 + $0x20] sm:$0xff]
  %v25 = vld [vmem:[%s0 + $0x28] sm:$0xff]
  %v26 = vld [vmem:[%s0 + $0x30] sm:$0xff]
  %v27 = vld [vmem:[%s0 + $0x38] sm:$0xff]
  %v28 = vld [vmem:[%s0 + $0x40] sm:$0xff]
  %v29 = vld [vmem:[%s0 + $0x48] sm:$0xff]
  %v30 = vld [vmem:[%s0 + $0x50] sm:$0xff]
  %v31 = vld [vmem:[%s0 + $0x58] sm:$0xff]
  %v32 = vld [vmem:[%s0 + $0x60] sm:$0xff]
  %v33 = vld [vmem:[%s0 + $0x68] sm:$0xff]
  %v34 = vld [vmem:[%s0 + $0x70] sm:$0xff]
  %v35 = vld [vmem:[%s0 + $0x78] sm:$0xff]
  %v36 = vld [vmem:[%s0 + $0x80] sm:$0xff]
  %v37 = vld [vmem:[%s0 + $0x88] sm:$0xff]
  %v40 = vunpack.c.l.b16 %v18
  %v41 = vunpack.c.l.b16 %v19
  %v42 = vpack.c.b16 %v41, %v40
  %v61 = vunpack.c.l.b16 %v20
  %v62 = vunpack.c.h.b16 %v20
  %v63 = vunpack.c.l.b16 %v21
  %v64 = vunpack.c.h.b16 %v21
  %v65 = vunpack.c.l.b16 %v22
  %v66 = vunpack.c.h.b16 %v22
  %v67 = vunpack.c.l.b16 %v23
  %v68 = vunpack.c.h.b16 %v23
  %v69 = vunpack.c.l.b16 %v24
  %v70 = vunpack.c.h.b16 %v24
  %v71 = vunpack.c.l.b16 %v25
  %v72 = vunpack.c.h.b16 %v25
  %v73 = vunpack.c.l.b16 %v26
  %v74 = vunpack.c.h.b16 %v26
  %v75 = vunpack.c.l.b16 %v27
  %v76 = vunpack.c.h.b16 %v27
  %v77 = vunpack.c.l.b16 %v28
  %v78 = vunpack.c.h.b16 %v28
  %v79 = vunpack.c.l.b16 %v29
  %v80 = vunpack.c.h.b16 %v29
  %v81 = vunpack.c.l.b16 %v30
  %v82 = vunpack.c.h.b16 %v30
  %v83 = vunpack.c.l.b16 %v31
  %v84 = vunpack.c.h.b16 %v31
  %v85 = vunpack.c.l.b16 %v32
  %v86 = vunpack.c.h.b16 %v32
  %v87 = vunpack.c.l.b16 %v33
  %v88 = vunpack.c.h.b16 %v33
  %v89 = vunpack.c.l.b16 %v34
  %v90 = vunpack.c.h.b16 %v34
  %v91 = vunpack.c.l.b16 %v35
  %v92 = vunpack.c.h.b16 %v35
  %v93 = vunpack.c.l.b16 %v36
  %v94 = vunpack.c.h.b16 %v36
  %v95 = vunpack.c.l.b16 %v37
  %v96 = vunpack.c.h.b16 %v37
  %v97 = vpack.c.b16 %v65, %v61
  %v98 = vpack.c.b16 %v66, %v62
  %v99 = vpack.c.b16 %v67, %v63
  %v100 = vpack.c.b16 %v68, %v64
  %v101 = vpack.c.b16 %v73, %v69
  %v102 = vpack.c.b16 %v74, %v70
  %v103 = vpack.c.b16 %v75, %v71
  %v104 = vpack.c.b16 %v76, %v72
  %v105 = vpack.c.b16 %v81, %v77
  %v106 = vpack.c.b16 %v82, %v78
  %v107 = vpack.c.b16 %v83, %v79
  %v108 = vpack.c.b16 %v84, %v80
  %v109 = vpack.c.b16 %v89, %v85
  %v110 = vpack.c.b16 %v90, %v86
  %v111 = vpack.c.b16 %v91, %v87
  %v112 = vpack.c.b16 %v92, %v88
  %v113 = vpack.c.b16 %v93, %v93
  %v114 = vpack.c.b16 %v94, %v94
  %v115 = vpack.c.b16 %v95, %v95
  %v116 = vpack.c.b16 %v96, %v96
  %vm133 = vcmask 588800
  %v135 = vsel %vm133, %v42, 0
  %vm137 = vcmask 1043456
  %v139 = vsel %vm137, %v113, 0
  %v142 = vsel %vm137, %v114, 0
  %v145 = vsel %vm137, %v115, 0
  %v148 = vsel %vm137, %v116, 0
  %150 = vmatprep.subr.bf16.mxu0 0
  %151 = vmatpush1.bf16.msra.mxu0 0
  %152 = vmatprep.subr.bf16.mxu0 0
  %153 = vmatpush1.bf16.msra.mxu0 0
  %154 = vmatprep.subr.bf16.mxu0 0
  %155 = vmatpush1.bf16.msra.mxu0 0
  %156 = vmatprep.subr.bf16.mxu0 %v142
  %157 = vmatpush1.bf16.msra.mxu0 %v139
  %158 = vmatprep.subr.bf16.mxu0 %v110
  %159 = vmatpush1.bf16.msra.mxu0 %v109
  %160 = vmatprep.subr.bf16.mxu0 %v106
  %161 = vmatpush1.bf16.msra.mxu0 %v105
  %162 = vmatprep.subr.bf16.mxu0 %v102
  %163 = vmatpush1.bf16.msra.mxu0 %v101
  %164 = vmatprep.subr.bf16.mxu0 %v98
  %165 = vmatpush1.bf16.msra.mxu0 %v97
  %166 = vmatprep.subr.bf16.mxu0 0
  %167 = vmatpush2.bf16.msra.mxu0 0
  %168 = vmatprep.subr.bf16.mxu0 0
  %169 = vmatpush2.bf16.msra.mxu0 0
  %170 = vmatprep.subr.bf16.mxu0 0
  %171 = vmatpush2.bf16.msra.mxu0 0
  %172 = vmatprep.subr.bf16.mxu0 0
  %173 = vmatpush2.bf16.msra.mxu0 0
  %174 = vmatprep.subr.bf16.mxu0 0
  %175 = vmatpush2.bf16.msra.mxu0 0
  %176 = vmatprep.subr.bf16.mxu0 0
  %177 = vmatpush2.bf16.msra.mxu0 0
  %178 = vmatprep.subr.bf16.mxu0 0
  %179 = vmatpush2.bf16.msra.mxu0 0
  %180 = vmatprep.subr.bf16.mxu0 0
  %181 = vmatpush2.bf16.msra.mxu0 0
  %182 = vmatprep.mubr.bf16.mxu0 0
  %183 = vmatmul.mubr.bf16.gmra.mxu0 %v135
  %v184 = vpop.f32.mrf.mxu0
  %v185 = vadd.f32 0.0, %v184
  %v186 = vpop.f32.mrf.mxu0
  %v187 = vadd.f32 0.0, %v186
  %v188 = vpop.f32.mrf.mxu0
  %v189 = vadd.f32 0.0, %v188
  %v190 = vpop.f32.mrf.mxu0
  %v191 = vadd.f32 0.0, %v190
  %192 = vdwg.mxu0
  %193 = vmatprep.subr.bf16.mxu0 0
  %194 = vmatpush1.bf16.msra.mxu0 0
  %195 = vmatprep.subr.bf16.mxu0 0
  %196 = vmatpush1.bf16.msra.mxu0 0
  %197 = vmatprep.subr.bf16.mxu0 0
  %198 = vmatpush1.bf16.msra.mxu0 0
  %199 = vmatprep.subr.bf16.mxu0 %v148
  %200 = vmatpush1.bf16.msra.mxu0 %v145
  %201 = vmatprep.subr.bf16.mxu0 %v112
  %202 = vmatpush1.bf16.msra.mxu0 %v111
  %203 = vmatprep.subr.bf16.mxu0 %v108
  %204 = vmatpush1.bf16.msra.mxu0 %v107
  %205 = vmatprep.subr.bf16.mxu0 %v104
  %206 = vmatpush1.bf16.msra.mxu0 %v103
  %207 = vmatprep.subr.bf16.mxu0 %v100
  %208 = vmatpush1.bf16.msra.mxu0 %v99
  %209 = vmatprep.subr.bf16.mxu0 0
  %210 = vmatpush2.bf16.msra.mxu0 0
  %211 = vmatprep.subr.bf16.mxu0 0
  %212 = vmatpush2.bf16.msra.mxu0 0
  %213 = vmatprep.subr.bf16.mxu0 0
  %214 = vmatpush2.bf16.msra.mxu0 0
  %215 = vmatprep.subr.bf16.mxu0 0
  %216 = vmatpush2.bf16.msra.mxu0 0
  %217 = vmatprep.subr.bf16.mxu0 0
  %218 = vmatpush2.bf16.msra.mxu0 0
  %219 = vmatprep.subr.bf16.mxu0 0
  %220 = vmatpush2.bf16.msra.mxu0 0
  %221 = vmatprep.subr.bf16.mxu0 0
  %222 = vmatpush2.bf16.msra.mxu0 0
  %223 = vmatprep.subr.bf16.mxu0 0
  %224 = vmatpush2.bf16.msra.mxu0 0
  %225 = vmatprep.mubr.bf16.mxu0 0
  %226 = vmatmul.mubr.bf16.gmra.mxu0 %v135
  %v227 = vpop.f32.mrf.mxu0
  %v228 = vadd.f32 0.0, %v227
  %v229 = vpop.f32.mrf.mxu0
  %v230 = vadd.f32 0.0, %v229
  %v231 = vpop.f32.mrf.mxu0
  %v232 = vadd.f32 0.0, %v231
  %v233 = vpop.f32.mrf.mxu0
  %v234 = vadd.f32 0.0, %v233
  %235 = vdwg.mxu0
  %v236 = vadd.f32 %v185, %v187
  %v237 = vadd.f32 %v236, %v228
  %v238 = vadd.f32 %v237, %v230
  %239 = vadd.xlane.f32.xlu0 %v238
  %v240 = vpop.xlane.xlu0 %239
  %v241 = vadd.f32 %v189, %v191
  %v242 = vadd.f32 %v241, %v232
  %v243 = vadd.f32 %v242, %v234
  %244 = vadd.xlane.f32.xlu0 %v243
  %v245 = vpop.xlane.xlu0 %244
  %v246 = vld [vmem:[%s3] sm:$0xff]
  %v247 = vld [vmem:[%s3 + $0x8] sm:$0xff]
  %vm248 = vcmask 130048
  %v250 = vsel %vm248, %v246, 0
  %v253 = vsel %vm248, %v247, 0
  %255 = vmatprep.subr.mxu0 0.0
  %256 = vmatpush1.msra.mxu0 0.0
  %257 = vmatprep.subr.mxu0 0.0
  %258 = vmatpush1.msra.mxu0 0.0
  %259 = vmatprep.subr.mxu0 0.0
  %260 = vmatpush1.msra.mxu0 0.0
  %261 = vmatprep.subr.mxu0 0.0
  %262 = vmatpush1.msra.mxu0 0.0
  %263 = vmatprep.subr.mxu0 0.0
  %264 = vmatpush1.msra.mxu0 0.0
  %265 = vmatprep.subr.mxu0 0.0
  %266 = vmatpush1.msra.mxu0 0.0
  %267 = vmatprep.subr.mxu0 0.0
  %268 = vmatpush1.msra.mxu0 0.0
  %269 = vmatprep.subr.mxu0 0.0
  %270 = vmatpush1.msra.mxu0 0.0
  %271 = vmatprep.subr.mxu0 0.0
  %272 = vmatpush1.msra.mxu0 0.0
  %273 = vmatprep.subr.mxu0 0.0
  %274 = vmatpush1.msra.mxu0 0.0
  %275 = vmatprep.subr.mxu0 0.0
  %276 = vmatpush1.msra.mxu0 0.0
  %277 = vmatprep.subr.mxu0 0.0
  %278 = vmatpush1.msra.mxu0 0.0
  %279 = vmatprep.subr.mxu0 0.0
  %280 = vmatpush1.msra.mxu0 0.0
  %281 = vmatprep.subr.mxu0 0.0
  %282 = vmatpush1.msra.mxu0 0.0
  %283 = vmatprep.subr.mxu0 0.0
  %284 = vmatpush1.msra.mxu0 %v245
  %285 = vmatprep.subr.mxu0 0.0
  %286 = vmatpush1.msra.mxu0 %v240
  %287 = vmatprep.subr.mxu0 0.0
  %288 = vmatpush2.msra.mxu0 0.0
  %289 = vmatprep.subr.mxu0 0.0
  %290 = vmatpush2.msra.mxu0 0.0
  %291 = vmatprep.subr.mxu0 0.0
  %292 = vmatpush2.msra.mxu0 0.0
  %293 = vmatprep.subr.mxu0 0.0
  %294 = vmatpush2.msra.mxu0 0.0
  %295 = vmatprep.subr.mxu0 0.0
  %296 = vmatpush2.msra.mxu0 0.0
  %297 = vmatprep.subr.mxu0 0.0
  %298 = vmatpush2.msra.mxu0 0.0
  %299 = vmatprep.subr.mxu0 0.0
  %300 = vmatpush2.msra.mxu0 0.0
  %301 = vmatprep.subr.mxu0 0.0
  %302 = vmatpush2.msra.mxu0 0.0
  %303 = vmatprep.subr.mxu0 0.0
  %304 = vmatpush2.msra.mxu0 0.0
  %305 = vmatprep.subr.mxu0 0.0
  %306 = vmatpush2.msra.mxu0 0.0
  %307 = vmatprep.subr.mxu0 0.0
  %308 = vmatpush2.msra.mxu0 0.0
  %309 = vmatprep.subr.mxu0 0.0
  %310 = vmatpush2.msra.mxu0 0.0
  %311 = vmatprep.subr.mxu0 0.0
  %312 = vmatpush2.msra.mxu0 0.0
  %313 = vmatprep.subr.mxu0 0.0
  %314 = vmatpush2.msra.mxu0 0.0
  %315 = vmatprep.subr.mxu0 0.0
  %316 = vmatpush2.msra.mxu0 0.0
  %317 = vmatprep.subr.mxu0 0.0
  %318 = vmatpush2.msra.mxu0 0.0
  %319 = vmatprep.mubr.f32.mxu0 0.0
  %320 = vmatmul.mubr.f32.gmra.mxu0 %v250
  %v321 = vpop.f32.mrf.mxu0
  %v322 = vadd.f32 0.0, %v321
  %v323 = vpop.f32.mrf.mxu0
  %324 = vmatprep.mubr.f32.mxu0 0.0
  %325 = vmatmul.mubr.f32.gmra.mxu0 %v253
  %v326 = vpop.f32.mrf.mxu0
  %v327 = vadd.f32 0.0, %v326
  %v328 = vpop.f32.mrf.mxu0
  %329 = vdwg.mxu0
  %v330 = vmul.f32 %v322, 0.00048828125
  %v331 = vmul.f32 %v327, 0.00048828125
  %333 = vset.pattern.permute.xlu0 0
  %334 = vperm.xlu0 %333, %v330
  %v335 = vpop.permute.xlu0 %334
  %338 = vset.pattern.permute.xlu0 0
  %339 = vperm.xlu0 %338, %v331
  %v340 = vpop.permute.xlu0 %339
  %v342 = vsub.f32 %v185, %v335
  %v343 = vsub.f32 %v187, %v335
  %v344 = vsub.f32 %v228, %v335
  %v345 = vsub.f32 %v230, %v335
  %v346 = vsub.f32 %v189, %v340
  %v347 = vsub.f32 %v191, %v340
  %v348 = vsub.f32 %v232, %v340
  %v349 = vsub.f32 %v234, %v340
  %v350 = vmul.f32 %v342, %v342
  %v351 = vmul.f32 %v343, %v343
  %v352 = vmul.f32 %v344, %v344
  %v353 = vmul.f32 %v345, %v345
  %v354 = vmul.f32 %v346, %v346
  %v355 = vmul.f32 %v347, %v347
  %v356 = vmul.f32 %v348, %v348
  %v357 = vmul.f32 %v349, %v349
  %v358 = vadd.f32 %v350, %v351
  %v359 = vadd.f32 %v358, %v352
  %v360 = vadd.f32 %v359, %v353
  %361 = vadd.xlane.f32.xlu0 %v360
  %v362 = vpop.xlane.xlu0 %361
  %v363 = vadd.f32 %v354, %v355
  %v364 = vadd.f32 %v363, %v356
  %v365 = vadd.f32 %v364, %v357
  %366 = vadd.xlane.f32.xlu0 %v365
  %v367 = vpop.xlane.xlu0 %366
  %368 = vmatprep.subr.mxu0 0.0
  %369 = vmatpush1.msra.mxu0 0.0
  %370 = vmatprep.subr.mxu0 0.0
  %371 = vmatpush1.msra.mxu0 0.0
  %372 = vmatprep.subr.mxu0 0.0
  %373 = vmatpush1.msra.mxu0 0.0
  %374 = vmatprep.subr.mxu0 0.0
  %375 = vmatpush1.msra.mxu0 0.0
  %376 = vmatprep.subr.mxu0 0.0
  %377 = vmatpush1.msra.mxu0 0.0
  %378 = vmatprep.subr.mxu0 0.0
  %379 = vmatpush1.msra.mxu0 0.0
  %380 = vmatprep.subr.mxu0 0.0
  %381 = vmatpush1.msra.mxu0 0.0
  %382 = vmatprep.subr.mxu0 0.0
  %383 = vmatpush1.msra.mxu0 0.0
  %384 = vmatprep.subr.mxu0 0.0
  %385 = vmatpush1.msra.mxu0 0.0
  %386 = vmatprep.subr.mxu0 0.0
  %387 = vmatpush1.msra.mxu0 0.0
  %388 = vmatprep.subr.mxu0 0.0
  %389 = vmatpush1.msra.mxu0 0.0
  %390 = vmatprep.subr.mxu0 0.0
  %391 = vmatpush1.msra.mxu0 0.0
  %392 = vmatprep.subr.mxu0 0.0
  %393 = vmatpush1.msra.mxu0 0.0
  %394 = vmatprep.subr.mxu0 0.0
  %395 = vmatpush1.msra.mxu0 0.0
  %396 = vmatprep.subr.mxu0 0.0
  %397 = vmatpush1.msra.mxu0 %v367
  %398 = vmatprep.subr.mxu0 0.0
  %399 = vmatpush1.msra.mxu0 %v362
  %400 = vmatprep.subr.mxu0 0.0
  %401 = vmatpush2.msra.mxu0 0.0
  %402 = vmatprep.subr.mxu0 0.0
  %403 = vmatpush2.msra.mxu0 0.0
  %404 = vmatprep.subr.mxu0 0.0
  %405 = vmatpush2.msra.mxu0 0.0
  %406 = vmatprep.subr.mxu0 0.0
  %407 = vmatpush2.msra.mxu0 0.0
  %408 = vmatprep.subr.mxu0 0.0
  %409 = vmatpush2.msra.mxu0 0.0
  %410 = vmatprep.subr.mxu0 0.0
  %411 = vmatpush2.msra.mxu0 0.0
  %412 = vmatprep.subr.mxu0 0.0
  %413 = vmatpush2.msra.mxu0 0.0
  %414 = vmatprep.subr.mxu0 0.0
  %415 = vmatpush2.msra.mxu0 0.0
  %416 = vmatprep.subr.mxu0 0.0
  %417 = vmatpush2.msra.mxu0 0.0
  %418 = vmatprep.subr.mxu0 0.0
  %419 = vmatpush2.msra.mxu0 0.0
  %420 = vmatprep.subr.mxu0 0.0
  %421 = vmatpush2.msra.mxu0 0.0
  %422 = vmatprep.subr.mxu0 0.0
  %423 = vmatpush2.msra.mxu0 0.0
  %424 = vmatprep.subr.mxu0 0.0
  %425 = vmatpush2.msra.mxu0 0.0
  %426 = vmatprep.subr.mxu0 0.0
  %427 = vmatpush2.msra.mxu0 0.0
  %428 = vmatprep.subr.mxu0 0.0
  %429 = vmatpush2.msra.mxu0 0.0
  %430 = vmatprep.subr.mxu0 0.0
  %431 = vmatpush2.msra.mxu0 0.0
  %432 = vmatprep.mubr.f32.mxu0 0.0
  %433 = vmatmul.mubr.f32.gmra.mxu0 %v250
  %v434 = vpop.f32.mrf.mxu0
  %v435 = vadd.f32 0.0, %v434
  %v436 = vpop.f32.mrf.mxu0
  %437 = vmatprep.mubr.f32.mxu0 0.0
  %438 = vmatmul.mubr.f32.gmra.mxu0 %v253
  %v439 = vpop.f32.mrf.mxu0
  %v440 = vadd.f32 0.0, %v439
  %v441 = vpop.f32.mrf.mxu0
  %442 = vdwg.mxu0
  %v443 = vmul.f32 %v435, 0.00048828125
  %v444 = vmul.f32 %v440, 0.00048828125
  %v445 = vld [vmem:[%s2] sm:$0xff]
  %v446 = vld [vmem:[%s2 + $0x8] sm:$0xff]
  %v447 = vadd.f32 %v443, 1e-05
  %v448 = vadd.f32 %v444, 1e-05
  %v449 = vrsqrt.pop %v447
  %v450 = vrsqrt.pop %v448
  %v451 = vmul.f32 %v445, %v449
  %v452 = vmul.f32 %v446, %v450
  %454 = vset.pattern.permute.xlu0 0
  %455 = vperm.xlu0 %454, %v451
  %v456 = vpop.permute.xlu0 %455
  %459 = vset.pattern.permute.xlu0 0
  %460 = vperm.xlu0 %459, %v452
  %v461 = vpop.permute.xlu0 %460
  %v463 = vmul.f32 %v342, %v456
  %v464 = vmul.f32 %v343, %v456
  %v465 = vmul.f32 %v344, %v456
  %v466 = vmul.f32 %v345, %v456
  %v467 = vmul.f32 %v346, %v461
  %v468 = vmul.f32 %v347, %v461
  %v469 = vmul.f32 %v348, %v461
  %v470 = vmul.f32 %v349, %v461
  %472 = vset.pattern.permute.xlu0 1
  %473 = vperm.xlu0 %472, %v445
  %v474 = vpop.permute.xlu0 %473
  %477 = vset.pattern.permute.xlu0 1
  %478 = vperm.xlu0 %477, %v446
  %v479 = vpop.permute.xlu0 %478
  %v481 = vadd.f32 %v463, %v474
  %v482 = vadd.f32 %v464, %v474
  %v483 = vadd.f32 %v465, %v474
  %v484 = vadd.f32 %v466, %v474
  %v485 = vadd.f32 %v467, %v479
  %v486 = vadd.f32 %v468, %v479
  %v487 = vadd.f32 %v469, %v479
  %v488 = vadd.f32 %v470, %v479
  %v489 = vmax.f32 %v481, 0.0
  %v490 = vmax.f32 %v482, 0.0
  %v491 = vmax.f32 %v483, 0.0
  %v492 = vmax.f32 %v484, 0.0
  %v493 = vmax.f32 %v485, 0.0
  %v494 = vmax.f32 %v486, 0.0
  %v495 = vmax.f32 %v487, 0.0
  %v496 = vmax.f32 %v488, 0.0
  %v497 = vpack.c.bf16 %v493, %v489
  %v498 = vpack.c.bf16 %v494, %v490
  %v499 = vpack.c.bf16 %v495, %v491
  %v500 = vpack.c.bf16 %v496, %v492
  %v505 = vunpack.c.l.b16 %v497
  %v506 = vunpack.c.l.b16 %v498
  %v507 = vunpack.c.l.b16 %v499
  %v508 = vunpack.c.l.b16 %v500
  %v509 = vunpack.c.h.b16 %v497
  %v510 = vunpack.c.h.b16 %v498
  %v511 = vunpack.c.h.b16 %v499
  %v512 = vunpack.c.h.b16 %v500
  %v513 = vpack.c.b16 %v506, %v505
  %v514 = vpack.c.b16 %v508, %v507
  %v515 = vpack.c.b16 %v510, %v509
  %v516 = vpack.c.b16 %v512, %v511
  %521 = vst [vmem:[%s4] sm:$0xff] %v513
  %522 = vst [vmem:[%s4 + $0x8] sm:$0xff] %v514
  %523 = vst [vmem:[%s4 + $0x10] sm:$0xff] %v515
  %524 = vst [vmem:[%s4 + $0x18] sm:$0xff] %v516
  // Predicated region
  $region18: #{stage1g_resblock_forward.9} parent=0 // pred_check
    _
  $region19: #{stage1g_resblock_forward.9} parent=0 // pred_check_branch
    %526 = sbr.rel (0) target = $region21
  $region20: #{stage1g_resblock_forward.9} parent=0 // pred_region
    _
  $region21: #{stage1g_resblock_forward.9} parent=0 // pred_fallthru
    _
  // Predicated region
  $region22: #{stage1g_resblock_forward.9} parent=0 // pred_check
    _
  $region23: #{stage1g_resblock_forward.9} parent=0 // pred_check_branch
    %528 = sbr.rel (0) target = $region25
  $region24: #{stage1g_resblock_forward.9} parent=0 // pred_region
    _
  $region25: #{stage1g_resblock_forward.9} parent=0 // pred_fallthru
    _

// kernel: tile.73
$region0: #{tile.73}
  #allocation0 [shape = 's32[1]{0}', space=sflag, size = 0x4, scoped, tag = 'scoped memory for tile.73']
  %s0 = inlined_call_operand.vmem [shape: f32[2], index: 0, kind: input, shape index: {}]
  %s1 = inlined_call_operand.vmem [shape: f32[4,2], index: 1, kind: output, shape index: {}]
  // Predicated region
  $region2: #{tile.73} parent=0 // pred_check
    _
  $region3: #{tile.73} parent=0 // pred_check_branch
    %3 = sbr.rel (0) target = $region5
  $region4: #{tile.73} parent=0 // pred_region
    _
  $region5: #{tile.73} parent=0 // pred_fallthru
    _
  %v4 = vld [vmem:[%s0] ss:$0 sm:$0xff]
  %5 = vst [vmem:[%s1] sm:$0xf] %v4

// kernel: tile.78
$region0: #{tile.78}
  %s0 = inlined_call_operand.vmem [shape: f32[4,2], index: 0, kind: input, shape index: {}]
  %s1 = inlined_call_operand.vmem [shape: f32[8,1], index: 1, kind: output, shape index: {}]
  $region1: #{tile.78} parent=0
    #allocation0 [shape = 'u8[4096]{0}', space=vmem, size = 0x1000, scoped, tag = 'scoped mem for output reshape']
    #allocation1 [shape = 'u8[4096]{0}', space=vmem, size = 0x1000, scoped, tag = 'scoped mem for input reshape']
    %s3 = sshll.u32 1, 4
    %s4 = ssub.s32 %s3, 1
    %v5 = vld [vmem:[%s0] sm:%s4]
    %6 = vst [vmem:[#allocation1] sm:%s4] %v5
    %v7 = vld [vmem:[#allocation1] sm:$0x1]
    %vm8 = vcmask 15360
    %9 = vst.msk [vmem:[#allocation0] sm:$0x1] %vm8, %v7
    %s10 = scalar_lea.vmem [#allocation1], 3
    %v11 = vld [vmem:[%s10] sm:$0x1]
    %12 = vrot.lane.b32.xlu0 %v11, 6
    %v13 = vpop.permute.xlu0 %12
    %vm14 = vcmask 64560
    %15 = vst.msk [vmem:[#allocation0] sm:$0x1] %vm14, %v13
    %s16 = scalar_lea.vmem [#allocation1], 2
    %v17 = vld [vmem:[%s16] sm:$0x1]
    %18 = vrot.lane.b32.xlu0 %v17, 4
    %v19 = vpop.permute.xlu0 %18
    %vm20 = vcmask 48160
    %21 = vst.msk [vmem:[#allocation0] sm:$0x1] %vm20, %v19
    %s22 = scalar_lea.vmem [#allocation1], 1
    %v23 = vld [vmem:[%s22] sm:$0x1]
    %24 = vrot.lane.b32.xlu0 %v23, 2
    %v25 = vpop.permute.xlu0 %24
    %vm26 = vcmask 31760
    %27 = vst.msk [vmem:[#allocation0] sm:$0x1] %vm26, %v25
    %s29 = sshll.u32 1, 1
    %s30 = ssub.s32 %s29, 1
    %v32 = vld [vmem:[#allocation0] sm:%s30]
    %s33 = sshll.u32 1, 1
    %s34 = ssub.s32 %s33, 1
    %35 = vst [vmem:[%s1] sm:%s34] %v32

// kernel: stage1g_resblock_forward.10
$region0: #{stage1g_resblock_forward.10}
  #allocation0 [shape = 'u32[]', space=smem, size = 0x4, offset = 0x4, fixed_abs, tag = 'smem constant byte address 0x4 - core index']
  #allocation1 [shape = 'u32[144,128]{1,0:T(1,128)}', space=vmem, size = 0x12000, scoped, tag = 'internal scratch']
  %s0 = inlined_call_operand.vmem [shape: bf16[36,2048], index: 0, kind: input, shape index: {}]
  %s1 = inlined_call_operand.vmem [shape: bf16[8,36], index: 1, kind: input, shape index: {}]
  %s2 = inlined_call_operand.vmem [shape: f32[8,2], index: 2, kind: input, shape index: {}]
  %s3 = inlined_call_operand.vmem [shape: f32[8,8], index: 3, kind: input, shape index: {}]
  %s4 = inlined_call_operand.vmem [shape: bf16[8,2048], index: 4, kind: output, shape index: {}]
  %s5 = sld [smem:[#allocation0]]
  $region26: #{stage1g_resblock_forward.10} parent=0
    _
  %s7 = ssub.s32 1, %s5
  %s8 = scalar_select 0, %s7, %s5
  // Predicated region
  $region2: #{stage1g_resblock_forward.10} parent=0 // pred_check
    _
  $region3: #{stage1g_resblock_forward.10} parent=0 // pred_check_branch
    %10 = sbr.rel (0) target = $region5
  $region4: #{stage1g_resblock_forward.10} parent=0 // pred_region
    _
  $region5: #{stage1g_resblock_forward.10} parent=0 // pred_fallthru
    _
  // Predicated region
  $region6: #{stage1g_resblock_forward.10} parent=0 // pred_check
    _
  $region7: #{stage1g_resblock_forward.10} parent=0 // pred_check_branch
    %12 = sbr.rel (0) target = $region9
  $region8: #{stage1g_resblock_forward.10} parent=0 // pred_region
    _
  $region9: #{stage1g_resblock_forward.10} parent=0 // pred_fallthru
    _
  // Predicated region
  $region10: #{stage1g_resblock_forward.10} parent=0 // pred_check
    _
  $region11: #{stage1g_resblock_forward.10} parent=0 // pred_check_branch
    %14 = sbr.rel (0) target = $region13
  $region12: #{stage1g_resblock_forward.10} parent=0 // pred_region
    _
  $region13: #{stage1g_resblock_forward.10} parent=0 // pred_fallthru
    _
  // Predicated region
  $region14: #{stage1g_resblock_forward.10} parent=0 // pred_check
    _
  $region15: #{stage1g_resblock_forward.10} parent=0 // pred_check_branch
    %16 = sbr.rel (0) target = $region17
  $region16: #{stage1g_resblock_forward.10} parent=0 // pred_region
    _
  $region17: #{stage1g_resblock_forward.10} parent=0 // pred_fallthru
    _
  %v18 = vld [vmem:[%s1] sm:$0xf]
  %v19 = vld [vmem:[%s0] sm:$0xff]
  %v20 = vld [vmem:[%s0 + $0x8] sm:$0xff]
  %v21 = vld [vmem:[%s0 + $0x10] sm:$0xff]
  %v22 = vld [vmem:[%s0 + $0x18] sm:$0xff]
  %v23 = vld [vmem:[%s0 + $0x20] sm:$0xff]
  %v24 = vld [vmem:[%s0 + $0x28] sm:$0xff]
  %v25 = vld [vmem:[%s0 + $0x30] sm:$0xff]
  %v26 = vld [vmem:[%s0 + $0x38] sm:$0xff]
  %v27 = vld [vmem:[%s0 + $0x40] sm:$0xff]
  %v28 = vld [vmem:[%s0 + $0x48] sm:$0xff]
  %v29 = vld [vmem:[%s0 + $0x50] sm:$0xff]
  %v30 = vld [vmem:[%s0 + $0x58] sm:$0xff]
  %v31 = vld [vmem:[%s0 + $0x60] sm:$0xff]
  %v32 = vld [vmem:[%s0 + $0x68] sm:$0xff]
  %v33 = vld [vmem:[%s0 + $0x70] sm:$0xff]
  %v34 = vld [vmem:[%s0 + $0x78] sm:$0xff]
  %v35 = vld [vmem:[%s0 + $0x80] sm:$0xff]
  %v36 = vld [vmem:[%s0 + $0x88] sm:$0xff]
  %v37 = vld [vmem:[%s0 + $0x90] sm:$0xff]
  %v38 = vld [vmem:[%s0 + $0x98] sm:$0xff]
  %v39 = vld [vmem:[%s0 + $0xa0] sm:$0xff]
  %v40 = vld [vmem:[%s0 + $0xa8] sm:$0xff]
  %v41 = vld [vmem:[%s0 + $0xb0] sm:$0xff]
  %v42 = vld [vmem:[%s0 + $0xb8] sm:$0xff]
  %v43 = vld [vmem:[%s0 + $0xc0] sm:$0xff]
  %v44 = vld [vmem:[%s0 + $0xc8] sm:$0xff]
  %v45 = vld [vmem:[%s0 + $0xd0] sm:$0xff]
  %v46 = vld [vmem:[%s0 + $0xd8] sm:$0xff]
  %v47 = vld [vmem:[%s0 + $0xe0] sm:$0xff]
  %v48 = vld [vmem:[%s0 + $0xe8] sm:$0xff]
  %v49 = vld [vmem:[%s0 + $0xf0] sm:$0xff]
  %v50 = vld [vmem:[%s0 + $0xf8] sm:$0xff]
  %v51 = vld [vmem:[%s0 + $0x100] sm:$0x33]
  %v52 = vld [vmem:[%s0 + $0x108] sm:$0x33]
  %v53 = vld [vmem:[%s0 + $0x110] sm:$0x33]
  %v54 = vld [vmem:[%s0 + $0x118] sm:$0x33]
  %v55 = vld [vmem:[%s0 + $0x120] sm:$0x33]
  %v56 = vld [vmem:[%s0 + $0x128] sm:$0x33]
  %v57 = vld [vmem:[%s0 + $0x130] sm:$0x33]
  %v58 = vld [vmem:[%s0 + $0x138] sm:$0x33]
  %v99 = vunpack.c.l.b16 %v19
  %v100 = vunpack.c.h.b16 %v19
  %v101 = vunpack.c.l.b16 %v20
  %v102 = vunpack.c.h.b16 %v20
  %v103 = vunpack.c.l.b16 %v21
  %v104 = vunpack.c.h.b16 %v21
  %v105 = vunpack.c.l.b16 %v22
  %v106 = vunpack.c.h.b16 %v22
  %v107 = vunpack.c.l.b16 %v23
  %v108 = vunpack.c.h.b16 %v23
  %v109 = vunpack.c.l.b16 %v24
  %v110 = vunpack.c.h.b16 %v24
  %v111 = vunpack.c.l.b16 %v25
  %v112 = vunpack.c.h.b16 %v25
  %v113 = vunpack.c.l.b16 %v26
  %v114 = vunpack.c.h.b16 %v26
  %v115 = vunpack.c.l.b16 %v27
  %v116 = vunpack.c.h.b16 %v27
  %v117 = vunpack.c.l.b16 %v28
  %v118 = vunpack.c.h.b16 %v28
  %v119 = vunpack.c.l.b16 %v29
  %v120 = vunpack.c.h.b16 %v29
  %v121 = vunpack.c.l.b16 %v30
  %v122 = vunpack.c.h.b16 %v30
  %v123 = vunpack.c.l.b16 %v31
  %v124 = vunpack.c.h.b16 %v31
  %v125 = vunpack.c.l.b16 %v32
  %v126 = vunpack.c.h.b16 %v32
  %v127 = vunpack.c.l.b16 %v33
  %v128 = vunpack.c.h.b16 %v33
  %v129 = vunpack.c.l.b16 %v34
  %v130 = vunpack.c.h.b16 %v34
  %v131 = vunpack.c.l.b16 %v35
  %v132 = vunpack.c.h.b16 %v35
  %v133 = vunpack.c.l.b16 %v36
  %v134 = vunpack.c.h.b16 %v36
  %v135 = vunpack.c.l.b16 %v37
  %v136 = vunpack.c.h.b16 %v37
  %v137 = vunpack.c.l.b16 %v38
  %v138 = vunpack.c.h.b16 %v38
  %v139 = vunpack.c.l.b16 %v39
  %v140 = vunpack.c.h.b16 %v39
  %v141 = vunpack.c.l.b16 %v40
  %v142 = vunpack.c.h.b16 %v40
  %v143 = vunpack.c.l.b16 %v41
  %v144 = vunpack.c.h.b16 %v41
  %v145 = vunpack.c.l.b16 %v42
  %v146 = vunpack.c.h.b16 %v42
  %v147 = vunpack.c.l.b16 %v43
  %v148 = vunpack.c.h.b16 %v43
  %v149 = vunpack.c.l.b16 %v44
  %v150 = vunpack.c.h.b16 %v44
  %v151 = vunpack.c.l.b16 %v45
  %v152 = vunpack.c.h.b16 %v45
  %v153 = vunpack.c.l.b16 %v46
  %v154 = vunpack.c.h.b16 %v46
  %v155 = vunpack.c.l.b16 %v47
  %v156 = vunpack.c.h.b16 %v47
  %v157 = vunpack.c.l.b16 %v48
  %v158 = vunpack.c.h.b16 %v48
  %v159 = vunpack.c.l.b16 %v49
  %v160 = vunpack.c.h.b16 %v49
  %v161 = vunpack.c.l.b16 %v50
  %v162 = vunpack.c.h.b16 %v50
  %v163 = vunpack.c.l.b16 %v51
  %v164 = vunpack.c.h.b16 %v51
  %v165 = vunpack.c.l.b16 %v52
  %v166 = vunpack.c.h.b16 %v52
  %v167 = vunpack.c.l.b16 %v53
  %v168 = vunpack.c.h.b16 %v53
  %v169 = vunpack.c.l.b16 %v54
  %v170 = vunpack.c.h.b16 %v54
  %v171 = vunpack.c.l.b16 %v55
  %v172 = vunpack.c.h.b16 %v55
  %v173 = vunpack.c.l.b16 %v56
  %v174 = vunpack.c.h.b16 %v56
  %v175 = vunpack.c.l.b16 %v57
  %v176 = vunpack.c.h.b16 %v57
  %v177 = vunpack.c.l.b16 %v58
  %v178 = vunpack.c.h.b16 %v58
  %v179 = vpack.c.b16 %v115, %v99
  %v180 = vpack.c.b16 %v116, %v100
  %v181 = vpack.c.b16 %v117, %v101
  %v182 = vpack.c.b16 %v118, %v102
  %v183 = vpack.c.b16 %v119, %v103
  %v184 = vpack.c.b16 %v120, %v104
  %v185 = vpack.c.b16 %v121, %v105
  %v186 = vpack.c.b16 %v122, %v106
  %v187 = vpack.c.b16 %v123, %v107
  %v188 = vpack.c.b16 %v124, %v108
  %v189 = vpack.c.b16 %v125, %v109
  %v190 = vpack.c.b16 %v126, %v110
  %v191 = vpack.c.b16 %v127, %v111
  %v192 = vpack.c.b16 %v128, %v112
  %v193 = vpack.c.b16 %v129, %v113
  %v194 = vpack.c.b16 %v130, %v114
  %v195 = vpack.c.b16 %v147, %v131
  %v196 = vpack.c.b16 %v148, %v132
  %v197 = vpack.c.b16 %v149, %v133
  %v198 = vpack.c.b16 %v150, %v134
  %v199 = vpack.c.b16 %v151, %v135
  %v200 = vpack.c.b16 %v152, %v136
  %v201 = vpack.c.b16 %v153, %v137
  %v202 = vpack.c.b16 %v154, %v138
  %v203 = vpack.c.b16 %v155, %v139
  %v204 = vpack.c.b16 %v156, %v140
  %v205 = vpack.c.b16 %v157, %v141
  %v206 = vpack.c.b16 %v158, %v142
  %v207 = vpack.c.b16 %v159, %v143
  %v208 = vpack.c.b16 %v160, %v144
  %v209 = vpack.c.b16 %v161, %v145
  %v210 = vpack.c.b16 %v162, %v146
  %v211 = vpack.c.b16 %v163, %v163
  %v212 = vpack.c.b16 %v164, %v164
  %v213 = vpack.c.b16 %v165, %v165
  %v214 = vpack.c.b16 %v166, %v166
  %v215 = vpack.c.b16 %v167, %v167
  %v216 = vpack.c.b16 %v168, %v168
  %v217 = vpack.c.b16 %v169, %v169
  %v218 = vpack.c.b16 %v170, %v170
  %v219 = vpack.c.b16 %v171, %v171
  %v220 = vpack.c.b16 %v172, %v172
  %v221 = vpack.c.b16 %v173, %v173
  %v222 = vpack.c.b16 %v174, %v174
  %v223 = vpack.c.b16 %v175, %v175
  %v224 = vpack.c.b16 %v176, %v176
  %v225 = vpack.c.b16 %v177, %v177
  %v226 = vpack.c.b16 %v178, %v178
  %vm259 = vcmask 293888
  %v261 = vsel %vm259, %v18, 0
  %vm263 = vcmask 1041408
  %v265 = vsel %vm263, %v211, 0
  %v268 = vsel %vm263, %v212, 0
  %v271 = vsel %vm263, %v213, 0
  %v274 = vsel %vm263, %v214, 0
  %v277 = vsel %vm263, %v215, 0
  %v280 = vsel %vm263, %v216, 0
  %v283 = vsel %vm263, %v217, 0
  %v286 = vsel %vm263, %v218, 0
  %v289 = vsel %vm263, %v219, 0
  %v292 = vsel %vm263, %v220, 0
  %v295 = vsel %vm263, %v221, 0
  %v298 = vsel %vm263, %v222, 0
  %v301 = vsel %vm263, %v223, 0
  %v304 = vsel %vm263, %v224, 0
  %v307 = vsel %vm263, %v225, 0
  %v310 = vsel %vm263, %v226, 0
  %312 = vmatprep.subr.bf16.mxu0 0
  %313 = vmatpush1.bf16.msra.mxu0 0
  %314 = vmatprep.subr.bf16.mxu0 0
  %315 = vmatpush1.bf16.msra.mxu0 0
  %316 = vmatprep.subr.bf16.mxu0 0
  %317 = vmatpush1.bf16.msra.mxu0 0
  %318 = vmatprep.subr.bf16.mxu0 0
  %319 = vmatpush1.bf16.msra.mxu0 0
  %320 = vmatprep.subr.bf16.mxu0 0
  %321 = vmatpush1.bf16.msra.mxu0 0
  %322 = vmatprep.subr.bf16.mxu0 %v268
  %323 = vmatpush1.bf16.msra.mxu0 %v265
  %324 = vmatprep.subr.bf16.mxu0 %v196
  %325 = vmatpush1.bf16.msra.mxu0 %v195
  %326 = vmatprep.subr.bf16.mxu0 %v180
  %327 = vmatpush1.bf16.msra.mxu0 %v179
  %328 = vmatprep.subr.bf16.mxu0 0
  %329 = vmatpush2.bf16.msra.mxu0 0
  %330 = vmatprep.subr.bf16.mxu0 0
  %331 = vmatpush2.bf16.msra.mxu0 0
  %332 = vmatprep.subr.bf16.mxu0 0
  %333 = vmatpush2.bf16.msra.mxu0 0
  %334 = vmatprep.subr.bf16.mxu0 0
  %335 = vmatpush2.bf16.msra.mxu0 0
  %336 = vmatprep.subr.bf16.mxu0 0
  %337 = vmatpush2.bf16.msra.mxu0 0
  %338 = vmatprep.subr.bf16.mxu0 0
  %339 = vmatpush2.bf16.msra.mxu0 0
  %340 = vmatprep.subr.bf16.mxu0 0
  %341 = vmatpush2.bf16.msra.mxu0 0
  %342 = vmatprep.subr.bf16.mxu0 0
  %343 = vmatpush2.bf16.msra.mxu0 0
  %344 = vmatprep.mubr.bf16.mxu0 0
  %345 = vmatmul.mubr.bf16.gmra.mxu0 %v261
  %v346 = vpop.f32.mrf.mxu0
  %v347 = vadd.f32 0.0, %v346
  %v348 = vpop.f32.mrf.mxu0
  %v349 = vadd.f32 0.0, %v348
  %v350 = vpop.f32.mrf.mxu0
  %v351 = vpop.f32.mrf.mxu0
  %352 = vdwg.mxu0
  %353 = vmatprep.subr.bf16.mxu0 0
  %354 = vmatpush1.bf16.msra.mxu0 0
  %355 = vmatprep.subr.bf16.mxu0 0
  %356 = vmatpush1.bf16.msra.mxu0 0
  %357 = vmatprep.subr.bf16.mxu0 0
  %358 = vmatpush1.bf16.msra.mxu0 0
  %359 = vmatprep.subr.bf16.mxu0 0
  %360 = vmatpush1.bf16.msra.mxu0 0
  %361 = vmatprep.subr.bf16.mxu0 0
  %362 = vmatpush1.bf16.msra.mxu0 0
  %363 = vmatprep.subr.bf16.mxu0 %v274
  %364 = vmatpush1.bf16.msra.mxu0 %v271
  %365 = vmatprep.subr.bf16.mxu0 %v198
  %366 = vmatpush1.bf16.msra.mxu0 %v197
  %367 = vmatprep.subr.bf16.mxu0 %v182
  %368 = vmatpush1.bf16.msra.mxu0 %v181
  %369 = vmatprep.subr.bf16.mxu0 0
  %370 = vmatpush2.bf16.msra.mxu0 0
  %371 = vmatprep.subr.bf16.mxu0 0
  %372 = vmatpush2.bf16.msra.mxu0 0
  %373 = vmatprep.subr.bf16.mxu0 0
  %374 = vmatpush2.bf16.msra.mxu0 0
  %375 = vmatprep.subr.bf16.mxu0 0
  %376 = vmatpush2.bf16.msra.mxu0 0
  %377 = vmatprep.subr.bf16.mxu0 0
  %378 = vmatpush2.bf16.msra.mxu0 0
  %379 = vmatprep.subr.bf16.mxu0 0
  %380 = vmatpush2.bf16.msra.mxu0 0
  %381 = vmatprep.subr.bf16.mxu0 0
  %382 = vmatpush2.bf16.msra.mxu0 0
  %383 = vmatprep.subr.bf16.mxu0 0
  %384 = vmatpush2.bf16.msra.mxu0 0
  %385 = vmatprep.mubr.bf16.mxu0 0
  %386 = vmatmul.mubr.bf16.gmra.mxu0 %v261
  %v387 = vpop.f32.mrf.mxu0
  %v388 = vadd.f32 0.0, %v387
  %v389 = vpop.f32.mrf.mxu0
  %v390 = vadd.f32 0.0, %v389
  %v391 = vpop.f32.mrf.mxu0
  %v392 = vpop.f32.mrf.mxu0
  %393 = vdwg.mxu0
  %394 = vmatprep.subr.bf16.mxu0 0
  %395 = vmatpush1.bf16.msra.mxu0 0
  %396 = vmatprep.subr.bf16.mxu0 0
  %397 = vmatpush1.bf16.msra.mxu0 0
  %398 = vmatprep.subr.bf16.mxu0 0
  %399 = vmatpush1.bf16.msra.mxu0 0
  %400 = vmatprep.subr.bf16.mxu0 0
  %401 = vmatpush1.bf16.msra.mxu0 0
  %402 = vmatprep.subr.bf16.mxu0 0
  %403 = vmatpush1.bf16.msra.mxu0 0
  %404 = vmatprep.subr.bf16.mxu0 %v280
  %405 = vmatpush1.bf16.msra.mxu0 %v277
  %406 = vmatprep.subr.bf16.mxu0 %v200
  %407 = vmatpush1.bf16.msra.mxu0 %v199
  %408 = vmatprep.subr.bf16.mxu0 %v184
  %409 = vmatpush1.bf16.msra.mxu0 %v183
  %410 = vmatprep.subr.bf16.mxu0 0
  %411 = vmatpush2.bf16.msra.mxu0 0
  %412 = vmatprep.subr.bf16.mxu0 0
  %413 = vmatpush2.bf16.msra.mxu0 0
  %414 = vmatprep.subr.bf16.mxu0 0
  %415 = vmatpush2.bf16.msra.mxu0 0
  %416 = vmatprep.subr.bf16.mxu0 0
  %417 = vmatpush2.bf16.msra.mxu0 0
  %418 = vmatprep.subr.bf16.mxu0 0
  %419 = vmatpush2.bf16.msra.mxu0 0
  %420 = vmatprep.subr.bf16.mxu0 0
  %421 = vmatpush2.bf16.msra.mxu0 0
  %422 = vmatprep.subr.bf16.mxu0 0
  %423 = vmatpush2.bf16.msra.mxu0 0
  %424 = vmatprep.subr.bf16.mxu0 0
  %425 = vmatpush2.bf16.msra.mxu0 0
  %426 = vmatprep.mubr.bf16.mxu0 0
  %427 = vmatmul.mubr.bf16.gmra.mxu0 %v261
  %v428 = vpop.f32.mrf.mxu0
  %v429 = vadd.f32 0.0, %v428
  %v430 = vpop.f32.mrf.mxu0
  %v431 = vadd.f32 0.0, %v430
  %v432 = vpop.f32.mrf.mxu0
  %v433 = vpop.f32.mrf.mxu0
  %434 = vdwg.mxu0
  %435 = vmatprep.subr.bf16.mxu0 0
  %436 = vmatpush1.bf16.msra.mxu0 0
  %437 = vmatprep.subr.bf16.mxu0 0
  %438 = vmatpush1.bf16.msra.mxu0 0
  %439 = vmatprep.subr.bf16.mxu0 0
  %440 = vmatpush1.bf16.msra.mxu0 0
  %441 = vmatprep.subr.bf16.mxu0 0
  %442 = vmatpush1.bf16.msra.mxu0 0
  %443 = vmatprep.subr.bf16.mxu0 0
  %444 = vmatpush1.bf16.msra.mxu0 0
  %445 = vmatprep.subr.bf16.mxu0 %v286
  %446 = vmatpush1.bf16.msra.mxu0 %v283
  %447 = vmatprep.subr.bf16.mxu0 %v202
  %448 = vmatpush1.bf16.msra.mxu0 %v201
  %449 = vmatprep.subr.bf16.mxu0 %v186
  %450 = vmatpush1.bf16.msra.mxu0 %v185
  %451 = vmatprep.subr.bf16.mxu0 0
  %452 = vmatpush2.bf16.msra.mxu0 0
  %453 = vmatprep.subr.bf16.mxu0 0
  %454 = vmatpush2.bf16.msra.mxu0 0
  %455 = vmatprep.subr.bf16.mxu0 0
  %456 = vmatpush2.bf16.msra.mxu0 0
  %457 = vmatprep.subr.bf16.mxu0 0
  %458 = vmatpush2.bf16.msra.mxu0 0
  %459 = vmatprep.subr.bf16.mxu0 0
  %460 = vmatpush2.bf16.msra.mxu0 0
  %461 = vmatprep.subr.bf16.mxu0 0
  %462 = vmatpush2.bf16.msra.mxu0 0
  %463 = vmatprep.subr.bf16.mxu0 0
  %464 = vmatpush2.bf16.msra.mxu0 0
  %465 = vmatprep.subr.bf16.mxu0 0
  %466 = vmatpush2.bf16.msra.mxu0 0
  %467 = vmatprep.mubr.bf16.mxu0 0
  %468 = vmatmul.mubr.bf16.gmra.mxu0 %v261
  %v469 = vpop.f32.mrf.mxu0
  %v470 = vadd.f32 0.0, %v469
  %v471 = vpop.f32.mrf.mxu0
  %v472 = vadd.f32 0.0, %v471
  %v473 = vpop.f32.mrf.mxu0
  %v474 = vpop.f32.mrf.mxu0
  %475 = vdwg.mxu0
  %476 = vmatprep.subr.bf16.mxu0 0
  %477 = vmatpush1.bf16.msra.mxu0 0
  %478 = vmatprep.subr.bf16.mxu0 0
  %479 = vmatpush1.bf16.msra.mxu0 0
  %480 = vmatprep.subr.bf16.mxu0 0
  %481 = vmatpush1.bf16.msra.mxu0 0
  %482 = vmatprep.subr.bf16.mxu0 0
  %483 = vmatpush1.bf16.msra.mxu0 0
  %484 = vmatprep.subr.bf16.mxu0 0
  %485 = vmatpush1.bf16.msra.mxu0 0
  %486 = vmatprep.subr.bf16.mxu0 %v292
  %487 = vmatpush1.bf16.msra.mxu0 %v289
  %488 = vmatprep.subr.bf16.mxu0 %v204
  %489 = vmatpush1.bf16.msra.mxu0 %v203
  %490 = vmatprep.subr.bf16.mxu0 %v188
  %491 = vmatpush1.bf16.msra.mxu0 %v187
  %492 = vmatprep.subr.bf16.mxu0 0
  %493 = vmatpush2.bf16.msra.mxu0 0
  %494 = vmatprep.subr.bf16.mxu0 0
  %495 = vmatpush2.bf16.msra.mxu0 0
  %496 = vmatprep.subr.bf16.mxu0 0
  %497 = vmatpush2.bf16.msra.mxu0 0
  %498 = vmatprep.subr.bf16.mxu0 0
  %499 = vmatpush2.bf16.msra.mxu0 0
  %500 = vmatprep.subr.bf16.mxu0 0
  %501 = vmatpush2.bf16.msra.mxu0 0
  %502 = vmatprep.subr.bf16.mxu0 0
  %503 = vmatpush2.bf16.msra.mxu0 0
  %504 = vmatprep.subr.bf16.mxu0 0
  %505 = vmatpush2.bf16.msra.mxu0 0
  %506 = vmatprep.subr.bf16.mxu0 0
  %507 = vmatpush2.bf16.msra.mxu0 0
  %508 = vmatprep.mubr.bf16.mxu0 0
  %509 = vmatmul.mubr.bf16.gmra.mxu0 %v261
  %v510 = vpop.f32.mrf.mxu0
  %v511 = vadd.f32 0.0, %v510
  %v512 = vpop.f32.mrf.mxu0
  %v513 = vadd.f32 0.0, %v512
  %v514 = vpop.f32.mrf.mxu0
  %v515 = vpop.f32.mrf.mxu0
  %516 = vdwg.mxu0
  %517 = vmatprep.subr.bf16.mxu0 0
  %518 = vmatpush1.bf16.msra.mxu0 0
  %519 = vmatprep.subr.bf16.mxu0 0
  %520 = vmatpush1.bf16.msra.mxu0 0
  %521 = vmatprep.subr.bf16.mxu0 0
  %522 = vmatpush1.bf16.msra.mxu0 0
  %523 = vmatprep.subr.bf16.mxu0 0
  %524 = vmatpush1.bf16.msra.mxu0 0
  %525 = vmatprep.subr.bf16.mxu0 0
  %526 = vmatpush1.bf16.msra.mxu0 0
  %527 = vmatprep.subr.bf16.mxu0 %v298
  %528 = vmatpush1.bf16.msra.mxu0 %v295
  %529 = vmatprep.subr.bf16.mxu0 %v206
  %530 = vmatpush1.bf16.msra.mxu0 %v205
  %531 = vmatprep.subr.bf16.mxu0 %v190
  %532 = vmatpush1.bf16.msra.mxu0 %v189
  %533 = vmatprep.subr.bf16.mxu0 0
  %534 = vmatpush2.bf16.msra.mxu0 0
  %535 = vmatprep.subr.bf16.mxu0 0
  %536 = vmatpush2.bf16.msra.mxu0 0
  %537 = vmatprep.subr.bf16.mxu0 0
  %538 = vmatpush2.bf16.msra.mxu0 0
  %539 = vmatprep.subr.bf16.mxu0 0
  %540 = vmatpush2.bf16.msra.mxu0 0
  %541 = vmatprep.subr.bf16.mxu0 0
  %542 = vmatpush2.bf16.msra.mxu0 0
  %543 = vmatprep.subr.bf16.mxu0 0
  %544 = vmatpush2.bf16.msra.mxu0 0
  %545 = vmatprep.subr.bf16.mxu0 0
  %546 = vmatpush2.bf16.msra.mxu0 0
  %547 = vmatprep.subr.bf16.mxu0 0
  %548 = vmatpush2.bf16.msra.mxu0 0
  %549 = vmatprep.mubr.bf16.mxu0 0
  %550 = vmatmul.mubr.bf16.gmra.mxu0 %v261
  %v551 = vpop.f32.mrf.mxu0
  %v552 = vadd.f32 0.0, %v551
  %v553 = vpop.f32.mrf.mxu0
  %v554 = vadd.f32 0.0, %v553
  %v555 = vpop.f32.mrf.mxu0
  %v556 = vpop.f32.mrf.mxu0
  %557 = vdwg.mxu0
  %558 = vmatprep.subr.bf16.mxu0 0
  %559 = vmatpush1.bf16.msra.mxu0 0
  %560 = vmatprep.subr.bf16.mxu0 0
  %561 = vmatpush1.bf16.msra.mxu0 0
  %562 = vmatprep.subr.bf16.mxu0 0
  %563 = vmatpush1.bf16.msra.mxu0 0
  %564 = vmatprep.subr.bf16.mxu0 0
  %565 = vmatpush1.bf16.msra.mxu0 0
  %566 = vmatprep.subr.bf16.mxu0 0
  %567 = vmatpush1.bf16.msra.mxu0 0
  %568 = vmatprep.subr.bf16.mxu0 %v304
  %569 = vmatpush1.bf16.msra.mxu0 %v301
  %570 = vmatprep.subr.bf16.mxu0 %v208
  %571 = vmatpush1.bf16.msra.mxu0 %v207
  %572 = vmatprep.subr.bf16.mxu0 %v192
  %573 = vmatpush1.bf16.msra.mxu0 %v191
  %574 = vmatprep.subr.bf16.mxu0 0
  %575 = vmatpush2.bf16.msra.mxu0 0
  %576 = vmatprep.subr.bf16.mxu0 0
  %577 = vmatpush2.bf16.msra.mxu0 0
  %578 = vmatprep.subr.bf16.mxu0 0
  %579 = vmatpush2.bf16.msra.mxu0 0
  %580 = vmatprep.subr.bf16.mxu0 0
  %581 = vmatpush2.bf16.msra.mxu0 0
  %582 = vmatprep.subr.bf16.mxu0 0
  %583 = vmatpush2.bf16.msra.mxu0 0
  %584 = vmatprep.subr.bf16.mxu0 0
  %585 = vmatpush2.bf16.msra.mxu0 0
  %586 = vmatprep.subr.bf16.mxu0 0
  %587 = vmatpush2.bf16.msra.mxu0 0
  %588 = vmatprep.subr.bf16.mxu0 0
  %589 = vmatpush2.bf16.msra.mxu0 0
  %590 = vmatprep.mubr.bf16.mxu0 0
  %591 = vmatmul.mubr.bf16.gmra.mxu0 %v261
  %v592 = vpop.f32.mrf.mxu0
  %v593 = vadd.f32 0.0, %v592
  %v594 = vpop.f32.mrf.mxu0
  %v595 = vadd.f32 0.0, %v594
  %v596 = vpop.f32.mrf.mxu0
  %v597 = vpop.f32.mrf.mxu0
  %598 = vdwg.mxu0
  %599 = vmatprep.subr.bf16.mxu0 0
  %600 = vmatpush1.bf16.msra.mxu0 0
  %601 = vmatprep.subr.bf16.mxu0 0
  %602 = vmatpush1.bf16.msra.mxu0 0
  %603 = vmatprep.subr.bf16.mxu0 0
  %604 = vmatpush1.bf16.msra.mxu0 0
  %605 = vmatprep.subr.bf16.mxu0 0
  %606 = vmatpush1.bf16.msra.mxu0 0
  %607 = vmatprep.subr.bf16.mxu0 0
  %608 = vmatpush1.bf16.msra.mxu0 0
  %609 = vmatprep.subr.bf16.mxu0 %v310
  %610 = vmatpush1.bf16.msra.mxu0 %v307
  %611 = vmatprep.subr.bf16.mxu0 %v210
  %612 = vmatpush1.bf16.msra.mxu0 %v209
  %613 = vmatprep.subr.bf16.mxu0 %v194
  %614 = vmatpush1.bf16.msra.mxu0 %v193
  %615 = vmatprep.subr.bf16.mxu0 0
  %616 = vmatpush2.bf16.msra.mxu0 0
  %617 = vmatprep.subr.bf16.mxu0 0
  %618 = vmatpush2.bf16.msra.mxu0 0
  %619 = vmatprep.subr.bf16.mxu0 0
  %620 = vmatpush2.bf16.msra.mxu0 0
  %621 = vmatprep.subr.bf16.mxu0 0
  %622 = vmatpush2.bf16.msra.mxu0 0
  %623 = vmatprep.subr.bf16.mxu0 0
  %624 = vmatpush2.bf16.msra.mxu0 0
  %625 = vmatprep.subr.bf16.mxu0 0
  %626 = vmatpush2.bf16.msra.mxu0 0
  %627 = vmatprep.subr.bf16.mxu0 0
  %628 = vmatpush2.bf16.msra.mxu0 0
  %629 = vmatprep.subr.bf16.mxu0 0
  %630 = vmatpush2.bf16.msra.mxu0 0
  %631 = vmatprep.mubr.bf16.mxu0 0
  %632 = vmatmul.mubr.bf16.gmra.mxu0 %v261
  %v633 = vpop.f32.mrf.mxu0
  %v634 = vadd.f32 0.0, %v633
  %v635 = vpop.f32.mrf.mxu0
  %v636 = vadd.f32 0.0, %v635
  %v637 = vpop.f32.mrf.mxu0
  %v638 = vpop.f32.mrf.mxu0
  %639 = vdwg.mxu0
  %v640 = vadd.f32 %v347, %v349
  %v641 = vadd.f32 %v640, %v388
  %v642 = vadd.f32 %v641, %v390
  %v643 = vadd.f32 %v642, %v429
  %v644 = vadd.f32 %v643, %v431
  %v645 = vadd.f32 %v644, %v470
  %v646 = vadd.f32 %v645, %v472
  %v647 = vadd.f32 %v646, %v511
  %v648 = vadd.f32 %v647, %v513
  %v649 = vadd.f32 %v648, %v552
  %v650 = vadd.f32 %v649, %v554
  %v651 = vadd.f32 %v650, %v593
  %v652 = vadd.f32 %v651, %v595
  %v653 = vadd.f32 %v652, %v634
  %v654 = vadd.f32 %v653, %v636
  %655 = vadd.xlane.f32.xlu0 %v654
  %v656 = vpop.xlane.xlu0 %655
  %v657 = vld [vmem:[%s3] sm:$0xff]
  %vm658 = vcmask 64512
  %v660 = vsel %vm658, %v657, 0
  %662 = vmatprep.subr.mxu0 0.0
  %663 = vmatpush1.msra.mxu0 0.0
  %664 = vmatprep.subr.mxu0 0.0
  %665 = vmatpush1.msra.mxu0 0.0
  %666 = vmatprep.subr.mxu0 0.0
  %667 = vmatpush1.msra.mxu0 0.0
  %668 = vmatprep.subr.mxu0 0.0
  %669 = vmatpush1.msra.mxu0 0.0
  %670 = vmatprep.subr.mxu0 0.0
  %671 = vmatpush1.msra.mxu0 0.0
  %672 = vmatprep.subr.mxu0 0.0
  %673 = vmatpush1.msra.mxu0 0.0
  %674 = vmatprep.subr.mxu0 0.0
  %675 = vmatpush1.msra.mxu0 0.0
  %676 = vmatprep.subr.mxu0 0.0
  %677 = vmatpush1.msra.mxu0 0.0
  %678 = vmatprep.subr.mxu0 0.0
  %679 = vmatpush1.msra.mxu0 0.0
  %680 = vmatprep.subr.mxu0 0.0
  %681 = vmatpush1.msra.mxu0 0.0
  %682 = vmatprep.subr.mxu0 0.0
  %683 = vmatpush1.msra.mxu0 0.0
  %684 = vmatprep.subr.mxu0 0.0
  %685 = vmatpush1.msra.mxu0 0.0
  %686 = vmatprep.subr.mxu0 0.0
  %687 = vmatpush1.msra.mxu0 0.0
  %688 = vmatprep.subr.mxu0 0.0
  %689 = vmatpush1.msra.mxu0 0.0
  %690 = vmatprep.subr.mxu0 0.0
  %691 = vmatpush1.msra.mxu0 0.0
  %692 = vmatprep.subr.mxu0 0.0
  %693 = vmatpush1.msra.mxu0 %v656
  %694 = vmatprep.subr.mxu0 0.0
  %695 = vmatpush2.msra.mxu0 0.0
  %696 = vmatprep.subr.mxu0 0.0
  %697 = vmatpush2.msra.mxu0 0.0
  %698 = vmatprep.subr.mxu0 0.0
  %699 = vmatpush2.msra.mxu0 0.0
  %700 = vmatprep.subr.mxu0 0.0
  %701 = vmatpush2.msra.mxu0 0.0
  %702 = vmatprep.subr.mxu0 0.0
  %703 = vmatpush2.msra.mxu0 0.0
  %704 = vmatprep.subr.mxu0 0.0
  %705 = vmatpush2.msra.mxu0 0.0
  %706 = vmatprep.subr.mxu0 0.0
  %707 = vmatpush2.msra.mxu0 0.0
  %708 = vmatprep.subr.mxu0 0.0
  %709 = vmatpush2.msra.mxu0 0.0
  %710 = vmatprep.subr.mxu0 0.0
  %711 = vmatpush2.msra.mxu0 0.0
  %712 = vmatprep.subr.mxu0 0.0
  %713 = vmatpush2.msra.mxu0 0.0
  %714 = vmatprep.subr.mxu0 0.0
  %715 = vmatpush2.msra.mxu0 0.0
  %716 = vmatprep.subr.mxu0 0.0
  %717 = vmatpush2.msra.mxu0 0.0
  %718 = vmatprep.subr.mxu0 0.0
  %719 = vmatpush2.msra.mxu0 0.0
  %720 = vmatprep.subr.mxu0 0.0
  %721 = vmatpush2.msra.mxu0 0.0
  %722 = vmatprep.subr.mxu0 0.0
  %723 = vmatpush2.msra.mxu0 0.0
  %724 = vmatprep.subr.mxu0 0.0
  %725 = vmatpush2.msra.mxu0 0.0
  %726 = vmatprep.mubr.f32.mxu0 0.0
  %727 = vmatmul.mubr.f32.gmra.mxu0 %v660
  %v728 = vpop.f32.mrf.mxu0
  %v729 = vadd.f32 0.0, %v728
  %v730 = vpop.f32.mrf.mxu0
  %731 = vdwg.mxu0
  %v732 = vmul.f32 %v729, 0.00012207031
  %734 = vset.pattern.permute.xlu0 0
  %735 = vperm.xlu0 %734, %v732
  %v736 = vpop.permute.xlu0 %735
  %v738 = vsub.f32 %v347, %v736
  %v739 = vsub.f32 %v349, %v736
  %v740 = vsub.f32 %v388, %v736
  %v741 = vsub.f32 %v390, %v736
  %v742 = vsub.f32 %v429, %v736
  %v743 = vsub.f32 %v431, %v736
  %v744 = vsub.f32 %v470, %v736
  %v745 = vsub.f32 %v472, %v736
  %v746 = vsub.f32 %v511, %v736
  %v747 = vsub.f32 %v513, %v736
  %v748 = vsub.f32 %v552, %v736
  %v749 = vsub.f32 %v554, %v736
  %v750 = vsub.f32 %v593, %v736
  %v751 = vsub.f32 %v595, %v736
  %v752 = vsub.f32 %v634, %v736
  %v753 = vsub.f32 %v636, %v736
  %v754 = vmul.f32 %v738, %v738
  %v755 = vmul.f32 %v739, %v739
  %v756 = vmul.f32 %v740, %v740
  %v757 = vmul.f32 %v741, %v741
  %v758 = vmul.f32 %v742, %v742
  %v759 = vmul.f32 %v743, %v743
  %v760 = vmul.f32 %v744, %v744
  %v761 = vmul.f32 %v745, %v745
  %v762 = vmul.f32 %v746, %v746
  %v763 = vmul.f32 %v747, %v747
  %v764 = vmul.f32 %v748, %v748
  %v765 = vmul.f32 %v749, %v749
  %v766 = vmul.f32 %v750, %v750
  %v767 = vmul.f32 %v751, %v751
  %v768 = vmul.f32 %v752, %v752
  %v769 = vmul.f32 %v753, %v753
  %v770 = vadd.f32 %v754, %v755
  %v771 = vadd.f32 %v770, %v756
  %v772 = vadd.f32 %v771, %v757
  %v773 = vadd.f32 %v772, %v758
  %v774 = vadd.f32 %v773, %v759
  %v775 = vadd.f32 %v774, %v760
  %v776 = vadd.f32 %v775, %v761
  %v777 = vadd.f32 %v776, %v762
  %v778 = vadd.f32 %v777, %v763
  %v779 = vadd.f32 %v778, %v764
  %v780 = vadd.f32 %v779, %v765
  %v781 = vadd.f32 %v780, %v766
  %v782 = vadd.f32 %v781, %v767
  %v783 = vadd.f32 %v782, %v768
  %v784 = vadd.f32 %v783, %v769
  %785 = vadd.xlane.f32.xlu0 %v784
  %v786 = vpop.xlane.xlu0 %785
  %787 = vmatprep.subr.mxu0 0.0
  %788 = vmatpush1.msra.mxu0 0.0
  %789 = vmatprep.subr.mxu0 0.0
  %790 = vmatpush1.msra.mxu0 0.0
  %791 = vmatprep.subr.mxu0 0.0
  %792 = vmatpush1.msra.mxu0 0.0
  %793 = vmatprep.subr.mxu0 0.0
  %794 = vmatpush1.msra.mxu0 0.0
  %795 = vmatprep.subr.mxu0 0.0
  %796 = vmatpush1.msra.mxu0 0.0
  %797 = vmatprep.subr.mxu0 0.0
  %798 = vmatpush1.msra.mxu0 0.0
  %799 = vmatprep.subr.mxu0 0.0
  %800 = vmatpush1.msra.mxu0 0.0
  %801 = vmatprep.subr.mxu0 0.0
  %802 = vmatpush1.msra.mxu0 0.0
  %803 = vmatprep.subr.mxu0 0.0
  %804 = vmatpush1.msra.mxu0 0.0
  %805 = vmatprep.subr.mxu0 0.0
  %806 = vmatpush1.msra.mxu0 0.0
  %807 = vmatprep.subr.mxu0 0.0
  %808 = vmatpush1.msra.mxu0 0.0
  %809 = vmatprep.subr.mxu0 0.0
  %810 = vmatpush1.msra.mxu0 0.0
  %811 = vmatprep.subr.mxu0 0.0
  %812 = vmatpush1.msra.mxu0 0.0
  %813 = vmatprep.subr.mxu0 0.0
  %814 = vmatpush1.msra.mxu0 0.0
  %815 = vmatprep.subr.mxu0 0.0
  %816 = vmatpush1.msra.mxu0 0.0
  %817 = vmatprep.subr.mxu0 0.0
  %818 = vmatpush1.msra.mxu0 %v786
  %819 = vmatprep.subr.mxu0 0.0
  %820 = vmatpush2.msra.mxu0 0.0
  %821 = vmatprep.subr.mxu0 0.0
  %822 = vmatpush2.msra.mxu0 0.0
  %823 = vmatprep.subr.mxu0 0.0
  %824 = vmatpush2.msra.mxu0 0.0
  %825 = vmatprep.subr.mxu0 0.0
  %826 = vmatpush2.msra.mxu0 0.0
  %827 = vmatprep.subr.mxu0 0.0
  %828 = vmatpush2.msra.mxu0 0.0
  %829 = vmatprep.subr.mxu0 0.0
  %830 = vmatpush2.msra.mxu0 0.0
  %831 = vmatprep.subr.mxu0 0.0
  %832 = vmatpush2.msra.mxu0 0.0
  %833 = vmatprep.subr.mxu0 0.0
  %834 = vmatpush2.msra.mxu0 0.0
  %835 = vmatprep.subr.mxu0 0.0
  %836 = vmatpush2.msra.mxu0 0.0
  %837 = vmatprep.subr.mxu0 0.0
  %838 = vmatpush2.msra.mxu0 0.0
  %839 = vmatprep.subr.mxu0 0.0
  %840 = vmatpush2.msra.mxu0 0.0
  %841 = vmatprep.subr.mxu0 0.0
  %842 = vmatpush2.msra.mxu0 0.0
  %843 = vmatprep.subr.mxu0 0.0
  %844 = vmatpush2.msra.mxu0 0.0
  %845 = vmatprep.subr.mxu0 0.0
  %846 = vmatpush2.msra.mxu0 0.0
  %847 = vmatprep.subr.mxu0 0.0
  %848 = vmatpush2.msra.mxu0 0.0
  %849 = vmatprep.subr.mxu0 0.0
  %850 = vmatpush2.msra.mxu0 0.0
  %851 = vmatprep.mubr.f32.mxu0 0.0
  %852 = vmatmul.mubr.f32.gmra.mxu0 %v660
  %v853 = vpop.f32.mrf.mxu0
  %v854 = vadd.f32 0.0, %v853
  %v855 = vpop.f32.mrf.mxu0
  %856 = vdwg.mxu0
  %v857 = vmul.f32 %v854, 0.00012207031
  %v858 = vld [vmem:[%s2] sm:$0xff]
  %v859 = vadd.f32 %v857, 1e-05
  %v860 = vrsqrt.pop %v859
  %v861 = vmul.f32 %v858, %v860
  %863 = vset.pattern.permute.xlu0 0
  %864 = vperm.xlu0 %863, %v861
  %v865 = vpop.permute.xlu0 %864
  %v867 = vmul.f32 %v738, %v865
  %v868 = vmul.f32 %v739, %v865
  %v869 = vmul.f32 %v740, %v865
  %v870 = vmul.f32 %v741, %v865
  %v871 = vmul.f32 %v742, %v865
  %v872 = vmul.f32 %v743, %v865
  %v873 = vmul.f32 %v744, %v865
  %v874 = vmul.f32 %v745, %v865
  %v875 = vmul.f32 %v746, %v865
  %v876 = vmul.f32 %v747, %v865
  %v877 = vmul.f32 %v748, %v865
  %v878 = vmul.f32 %v749, %v865
  %v879 = vmul.f32 %v750, %v865
  %v880 = vmul.f32 %v751, %v865
  %v881 = vmul.f32 %v752, %v865
  %v882 = vmul.f32 %v753, %v865
  %884 = vset.pattern.permute.xlu0 1
  %885 = vperm.xlu0 %884, %v858
  %v886 = vpop.permute.xlu0 %885
  %v888 = vadd.f32 %v867, %v886
  %v889 = vadd.f32 %v868, %v886
  %v890 = vadd.f32 %v869, %v886
  %v891 = vadd.f32 %v870, %v886
  %v892 = vadd.f32 %v871, %v886
  %v893 = vadd.f32 %v872, %v886
  %v894 = vadd.f32 %v873, %v886
  %v895 = vadd.f32 %v874, %v886
  %v896 = vadd.f32 %v875, %v886
  %v897 = vadd.f32 %v876, %v886
  %v898 = vadd.f32 %v877, %v886
  %v899 = vadd.f32 %v878, %v886
  %v900 = vadd.f32 %v879, %v886
  %v901 = vadd.f32 %v880, %v886
  %v902 = vadd.f32 %v881, %v886
  %v903 = vadd.f32 %v882, %v886
  %v904 = vmax.f32 %v888, 0.0
  %v905 = vmax.f32 %v889, 0.0
  %v906 = vmax.f32 %v890, 0.0
  %v907 = vmax.f32 %v891, 0.0
  %v908 = vmax.f32 %v892, 0.0
  %v909 = vmax.f32 %v893, 0.0
  %v910 = vmax.f32 %v894, 0.0
  %v911 = vmax.f32 %v895, 0.0
  %v912 = vmax.f32 %v896, 0.0
  %v913 = vmax.f32 %v897, 0.0
  %v914 = vmax.f32 %v898, 0.0
  %v915 = vmax.f32 %v899, 0.0
  %v916 = vmax.f32 %v900, 0.0
  %v917 = vmax.f32 %v901, 0.0
  %v918 = vmax.f32 %v902, 0.0
  %v919 = vmax.f32 %v903, 0.0
  %v920 = vpack.c.bf16 %v904, %v904
  %v921 = vpack.c.bf16 %v905, %v905
  %v922 = vpack.c.bf16 %v906, %v906
  %v923 = vpack.c.bf16 %v907, %v907
  %v924 = vpack.c.bf16 %v908, %v908
  %v925 = vpack.c.bf16 %v909, %v909
  %v926 = vpack.c.bf16 %v910, %v910
  %v927 = vpack.c.bf16 %v911, %v911
  %v928 = vpack.c.bf16 %v912, %v912
  %v929 = vpack.c.bf16 %v913, %v913
  %v930 = vpack.c.bf16 %v914, %v914
  %v931 = vpack.c.bf16 %v915, %v915
  %v932 = vpack.c.bf16 %v916, %v916
  %v933 = vpack.c.bf16 %v917, %v917
  %v934 = vpack.c.bf16 %v918, %v918
  %v935 = vpack.c.bf16 %v919, %v919
  %v952 = vunpack.c.l.b16 %v920
  %v953 = vunpack.c.l.b16 %v921
  %v954 = vunpack.c.l.b16 %v922
  %v955 = vunpack.c.l.b16 %v923
  %v956 = vunpack.c.l.b16 %v924
  %v957 = vunpack.c.l.b16 %v925
  %v958 = vunpack.c.l.b16 %v926
  %v959 = vunpack.c.l.b16 %v927
  %v960 = vunpack.c.l.b16 %v928
  %v961 = vunpack.c.l.b16 %v929
  %v962 = vunpack.c.l.b16 %v930
  %v963 = vunpack.c.l.b16 %v931
  %v964 = vunpack.c.l.b16 %v932
  %v965 = vunpack.c.l.b16 %v933
  %v966 = vunpack.c.l.b16 %v934
  %v967 = vunpack.c.l.b16 %v935
  %v968 = vpack.c.b16 %v953, %v952
  %v969 = vpack.c.b16 %v955, %v954
  %v970 = vpack.c.b16 %v957, %v956
  %v971 = vpack.c.b16 %v959, %v958
  %v972 = vpack.c.b16 %v961, %v960
  %v973 = vpack.c.b16 %v963, %v962
  %v974 = vpack.c.b16 %v965, %v964
  %v975 = vpack.c.b16 %v967, %v966
  %984 = vst [vmem:[%s4] sm:$0xff] %v968
  %985 = vst [vmem:[%s4 + $0x8] sm:$0xff] %v969
  %986 = vst [vmem:[%s4 + $0x10] sm:$0xff] %v970
  %987 = vst [vmem:[%s4 + $0x18] sm:$0xff] %v971
  %988 = vst [vmem:[%s4 + $0x20] sm:$0xff] %v972
  %989 = vst [vmem:[%s4 + $0x28] sm:$0xff] %v973
  %990 = vst [vmem:[%s4 + $0x30] sm:$0xff] %v974
  %991 = vst [vmem:[%s4 + $0x38] sm:$0xff] %v975
  // Predicated region
  $region18: #{stage1g_resblock_forward.10} parent=0 // pred_check
    _
  $region19: #{stage1g_resblock_forward.10} parent=0 // pred_check_branch
    %993 = sbr.rel (0) target = $region21
  $region20: #{stage1g_resblock_forward.10} parent=0 // pred_region
    _
  $region21: #{stage1g_resblock_forward.10} parent=0 // pred_fallthru
    _
  // Predicated region
  $region22: #{stage1g_resblock_forward.10} parent=0 // pred_check
    _
  $region23: #{stage1g_resblock_forward.10} parent=0 // pred_check_branch
    %995 = sbr.rel (0) target = $region25
  $region24: #{stage1g_resblock_forward.10} parent=0 // pred_region
    _
  $region25: #{stage1g_resblock_forward.10} parent=0 // pred_fallthru
    _

// kernel: stage1g_resblock_forward.11
$region0: #{stage1g_resblock_forward.11}
  #allocation0 [shape = 'u32[]', space=smem, size = 0x4, offset = 0x4, fixed_abs, tag = 'smem constant byte address 0x4 - core index']
  #allocation1 [shape = 'u32[144,128]{1,0:T(1,128)}', space=vmem, size = 0x12000, scoped, tag = 'internal scratch']
  %s0 = inlined_call_operand.vmem [shape: bf16[18,8192], index: 0, kind: input, shape index: {}]
  %s1 = inlined_call_operand.vmem [shape: bf16[3,18], index: 1, kind: input, shape index: {}]
  %s2 = inlined_call_operand.vmem [shape: f32[2,3,4096], index: 2, kind: output, shape index: {}]
  %s3 = sld [smem:[#allocation0]]
  $region64: #{stage1g_resblock_forward.11} parent=0
    _
  %s5 = ssub.s32 1, %s3
  %s6 = scalar_select 0, %s5, %s3
  $region1: #{stage1g_resblock_forward.11} parent=0
    #allocation2 [shape = 'u8[196608]{0}', space=vmem, size = 0x30000, scoped, tag = 'input window, operand 0']
    loop: start=0, step=1, limit=6
    $region2: #{stage1g_resblock_forward.11} parent=1 // loop_pre_header
      _
    $region3: #{stage1g_resblock_forward.11} parent=1 // loop_header
      %s8 = sphi 0, %s12
      %p9 = scmp.ge.s32.totalorder %s8, 6
      %s15 = sphi 0, %s27
      %s16 = sphi 0, %s23
      %s17 = sphi 0, %s15
      %s18 = sphi 0, %s16
      %s19 = sphi 0, %s17
      %s20 = sphi 0, %s18
      %s34 = sphi 0, %s36
      %s37 = sphi 0, %s34
      %s38 = sphi 0, %s37
      %s54 = sphi 0, %s38
      %s58 = sphi 0, %s58
      %s60 = sphi 0, %s58
      %s61 = sphi 0, %s60
      %s75 = sphi 0, %s61
      %s83 = sphi 0, %s85
      %s86 = sphi 0, %s83
      %s87 = sphi 0, %s86
      %s103 = sphi 0, %s87
    $region4: #{stage1g_resblock_forward.11} parent=1 // loop_header_branch
      %11 = sbr.rel (%p9) target = $region8
    $region5: #{stage1g_resblock_forward.11} parent=1 // loop_body
      %s13 = ssub.s32 %s8, 1
      %s14 = ssub.s32 %s8, 2
      %s21 = sadd.s32 1, %s16
      %p22 = scmp.ge.s32.totalorder %s21, 2
      %s23 = scalar_select %p22, 0, %s21
      %s24 = sadd.s32 1, %s15
      %s25 = scalar_select %p22, %s24, %s15
      %p26 = scmp.ge.s32.totalorder %s25, 2
      %s27 = scalar_select %p26, 0, %s25
      %s28 = smul.u32 %s15, 2
      %s29 = sadd.s32 %s28, %s16
      %s30 = smul.u32 %s27, 2
      %s31 = sadd.s32 %s30, %s23
      %s32 = ssub.s32 %s29, %s31
      %p33 = scmp.eq.s32.totalorder %s32, 0
      %s35 = sadd.s32 %s34, 1
      %s36 = scalar_select %p33, %s34, %s35
      %p39 = pneg %p33
      %p40 = scmp.eq.s32.totalorder %s8, 3
      %p41 = por %p39, %p40
      %p42 = scmp.ne.s32.totalorder %s34, %s37
      %p43 = scmp.eq.s32.totalorder %s8, 0
      %p44 = por %p42, %p43
      %p45 = scmp.ne.s32.totalorder %s34, %s37
      %p46 = scmp.eq.s32.totalorder %s13, 3
      %p47 = por %p45, %p46
      %p48 = scmp.ne.s32.totalorder %s37, %s38
      %p49 = scmp.eq.s32.totalorder %s13, 0
      %p50 = por %p48, %p49
      %p51 = scmp.ne.s32.totalorder %s37, %s38
      %p52 = scmp.eq.s32.totalorder %s14, 3
      %p53 = por %p51, %p52
      %p55 = scmp.ne.s32.totalorder %s38, %s54
      %p56 = scmp.eq.s32.totalorder %s14, 0
      %p57 = por %p55, %p56
      %s59 = sadd.s32 %s58, 1
      %p62 = scmp.eq.s32.totalorder %s8, 3
      %p63 = scmp.ne.s32.totalorder %s58, %s60
      %p64 = scmp.eq.s32.totalorder %s8, 0
      %p65 = por %p63, %p64
      %p66 = scmp.ne.s32.totalorder %s58, %s60
      %p67 = scmp.eq.s32.totalorder %s13, 3
      %p68 = por %p66, %p67
      %p69 = scmp.ne.s32.totalorder %s60, %s61
      %p70 = scmp.eq.s32.totalorder %s13, 0
      %p71 = por %p69, %p70
      %p72 = scmp.ne.s32.totalorder %s60, %s61
      %p73 = scmp.eq.s32.totalorder %s14, 3
      %p74 = por %p72, %p73
      %p76 = scmp.ne.s32.totalorder %s61, %s75
      %p77 = scmp.eq.s32.totalorder %s14, 0
      %p78 = por %p76, %p77
      %s79 = ssub.s32 %s15, %s27
      %s80 = ssub.s32 %s16, %s23
      %s81 = sor.u32 %s79, %s80
      %p82 = scmp.eq.s32.totalorder %s81, 0
      %s84 = sadd.s32 %s83, 1
      %s85 = scalar_select %p82, %s83, %s84
      %p88 = pneg %p82
      %p89 = scmp.eq.s32.totalorder %s8, 3
      %p90 = por %p88, %p89
      %p91 = scmp.ne.s32.totalorder %s83, %s86
      %p92 = scmp.eq.s32.totalorder %s8, 0
      %p93 = por %p91, %p92
      %p94 = scmp.ne.s32.totalorder %s83, %s86
      %p95 = scmp.eq.s32.totalorder %s13, 3
      %p96 = por %p94, %p95
      %p97 = scmp.ne.s32.totalorder %s86, %s87
      %p98 = scmp.eq.s32.totalorder %s13, 0
      %p99 = por %p97, %p98
      %p100 = scmp.ne.s32.totalorder %s86, %s87
      %p101 = scmp.eq.s32.totalorder %s14, 3
      %p102 = por %p100, %p101
      %p104 = scmp.ne.s32.totalorder %s87, %s103
      %p105 = scmp.eq.s32.totalorder %s14, 0
      %p106 = por %p104, %p105
      %p107 = scmp.le.s32.totalorder 1, %s8
      %p108 = scmp.lt.s32.totalorder %s8, 5
      %p109 = pnand %p107, %p108
      %p110 = pneg %p109
      // Predicated region
      $region9: #{stage1g_resblock_forward.11} parent=5 // pred_check
        _
      $region10: #{stage1g_resblock_forward.11} parent=5 // pred_check_branch
        %112 = sbr.rel (%p109) target = $region12
      $region11: #{stage1g_resblock_forward.11} parent=5 // pred_region
        %s113 = ssub.s32 %s8, 1
        // Predicated region
        $region13: #{stage1g_resblock_forward.11} parent=11 // pred_check
          %p114 = pneg %p71
        $region14: #{stage1g_resblock_forward.11} parent=11 // pred_check_branch
          %116 = sbr.rel (%p114) target = $region16
        $region15: #{stage1g_resblock_forward.11} parent=11 // pred_region
          _
        $region16: #{stage1g_resblock_forward.11} parent=11 // pred_fallthru
          _
      $region12: #{stage1g_resblock_forward.11} parent=5 // pred_fallthru
        _
      %p117 = scmp.lt.s32.totalorder %s8, 4
      // Predicated region
      $region17: #{stage1g_resblock_forward.11} parent=5 // pred_check
        %p118 = pneg %p117
      $region18: #{stage1g_resblock_forward.11} parent=5 // pred_check_branch
        %120 = sbr.rel (%p118) target = $region20
      $region19: #{stage1g_resblock_forward.11} parent=5 // pred_region
        // Predicated region
        $region21: #{stage1g_resblock_forward.11} parent=19 // pred_check
          %p121 = pneg %p44
        $region22: #{stage1g_resblock_forward.11} parent=19 // pred_check_branch
          %123 = sbr.rel (%p121) target = $region24
        $region23: #{stage1g_resblock_forward.11} parent=19 // pred_region
          %s124 = sand.u32 %s34, 1
          %s125 = sand.u32 %s34, 1
          %s126 = smul.addr %s125, 192
          %s127 = scalar_lea.vmem [#allocation2], %s126
          %s128 = smul.u32 %s15, 2
          %s129 = sadd.s32 %s128, %s16
          %s130 = smul.u32 16, %s129
          %s131 = smul.addr %s130, 4
          %s132 = scalar_lea.vmem %s0, %s131
          // Predicated region
          $region25: #{stage1g_resblock_forward.11} parent=23 // pred_check
            _
          $region26: #{stage1g_resblock_forward.11} parent=23 // pred_check_branch
            %134 = sbr.rel (0) target = $region28
          $region27: #{stage1g_resblock_forward.11} parent=23 // pred_region
            // Predicated region
            $region29: #{stage1g_resblock_forward.11} parent=27 // pred_check
              _
            $region30: #{stage1g_resblock_forward.11} parent=27 // pred_check_branch
              %136 = sbr.rel (0) target = $region32
            $region31: #{stage1g_resblock_forward.11} parent=27 // pred_region
              loop: start=0, step=1, limit=1
              $region33: #{stage1g_resblock_forward.11} parent=31 // loop_pre_header
                _
              $region34: #{stage1g_resblock_forward.11} parent=31 // loop_header
                %s138 = sphi 0, %s142
                %p139 = scmp.ge.s32.totalorder %s138, 1
                %s143 = sphi %s132, %s132
                %s144 = sphi %s127, %s127
              $region35: #{stage1g_resblock_forward.11} parent=31 // loop_header_branch
                %141 = sbr.rel (%p139) target = $region39
              $region36: #{stage1g_resblock_forward.11} parent=31 // loop_body
                %v145 = vld [vmem:[%s143] sm:$0xff]
                %146 = vst [vmem:[%s144] sm:$0xff] %v145
                %v147 = vld [vmem:[%s143 + $0x8] sm:$0xff]
                %148 = vst [vmem:[%s144 + $0x8] sm:$0xff] %v147
                %v149 = vld [vmem:[%s143 + $0x10] sm:$0xff]
                %150 = vst [vmem:[%s144 + $0x10] sm:$0xff] %v149
                %v151 = vld [vmem:[%s143 + $0x18] sm:$0xff]
                %152 = vst [vmem:[%s144 + $0x18] sm:$0xff] %v151
                %v153 = vld [vmem:[%s143 + $0x20] sm:$0xff]
                %154 = vst [vmem:[%s144 + $0x20] sm:$0xff] %v153
                %v155 = vld [vmem:[%s143 + $0x28] sm:$0xff]
                %156 = vst [vmem:[%s144 + $0x28] sm:$0xff] %v155
                %v157 = vld [vmem:[%s143 + $0x30] sm:$0xff]
                %158 = vst [vmem:[%s144 + $0x30] sm:$0xff] %v157
                %v159 = vld [vmem:[%s143 + $0x38] sm:$0xff]
                %160 = vst [vmem:[%s144 + $0x38] sm:$0xff] %v159
                %v161 = vld [vmem:[%s143 + $0x100] sm:$0xff]
                %162 = vst [vmem:[%s144 + $0x40] sm:$0xff] %v161
                %v163 = vld [vmem:[%s143 + $0x108] sm:$0xff]
                %164 = vst [vmem:[%s144 + $0x48] sm:$0xff] %v163
                %v165 = vld [vmem:[%s143 + $0x110] sm:$0xff]
                %166 = vst [vmem:[%s144 + $0x50] sm:$0xff] %v165
                %v167 = vld [vmem:[%s143 + $0x118] sm:$0xff]
                %168 = vst [vmem:[%s144 + $0x58] sm:$0xff] %v167
                %v169 = vld [vmem:[%s143 + $0x120] sm:$0xff]
                %170 = vst [vmem:[%s144 + $0x60] sm:$0xff] %v169
                %v171 = vld [vmem:[%s143 + $0x128] sm:$0xff]
                %172 = vst [vmem:[%s144 + $0x68] sm:$0xff] %v171
                %v173 = vld [vmem:[%s143 + $0x130] sm:$0xff]
                %174 = vst [vmem:[%s144 + $0x70] sm:$0xff] %v173
                %v175 = vld [vmem:[%s143 + $0x138] sm:$0xff]
                %176 = vst [vmem:[%s144 + $0x78] sm:$0xff] %v175
                %v177 = vld [vmem:[%s143 + $0x200] sm:$0xff]
                %178 = vst [vmem:[%s144 + $0x80] sm:$0xff] %v177
                %v179 = vld [vmem:[%s143 + $0x208] sm:$0xff]
                %180 = vst [vmem:[%s144 + $0x88] sm:$0xff] %v179
                %v181 = vld [vmem:[%s143 + $0x210] sm:$0xff]
                %182 = vst [vmem:[%s144 + $0x90] sm:$0xff] %v181
                %v183 = vld [vmem:[%s143 + $0x218] sm:$0xff]
                %184 = vst [vmem:[%s144 + $0x98] sm:$0xff] %v183
                %v185 = vld [vmem:[%s143 + $0x220] sm:$0xff]
                %186 = vst [vmem:[%s144 + $0xa0] sm:$0xff] %v185
                %v187 = vld [vmem:[%s143 + $0x228] sm:$0xff]
                %188 = vst [vmem:[%s144 + $0xa8] sm:$0xff] %v187
                %v189 = vld [vmem:[%s143 + $0x230] sm:$0xff]
                %190 = vst [vmem:[%s144 + $0xb0] sm:$0xff] %v189
                %v191 = vld [vmem:[%s143 + $0x238] sm:$0xff]
                %192 = vst [vmem:[%s144 + $0xb8] sm:$0xff] %v191
              $region37: #{stage1g_resblock_forward.11} parent=31 // loop_footer
                %s142 = sadd.s32 1, %s138
              $region38: #{stage1g_resblock_forward.11} parent=31 // loop_footer_branch
                %137 = sbr.rel target = $region34
              $region39: #{stage1g_resblock_forward.11} parent=31 // loop_exit
                _
            $region32: #{stage1g_resblock_forward.11} parent=27 // pred_fallthru
              _
            // Predicated region
            $region40: #{stage1g_resblock_forward.11} parent=27 // pred_check
              _
            $region41: #{stage1g_resblock_forward.11} parent=27 // pred_check_branch
              %194 = sbr.rel target = $region43
            $region42: #{stage1g_resblock_forward.11} parent=27 // pred_region
              _
            $region43: #{stage1g_resblock_forward.11} parent=27 // pred_fallthru
              _
          $region28: #{stage1g_resblock_forward.11} parent=23 // pred_fallthru
            _
          %195 = vnop
        $region24: #{stage1g_resblock_forward.11} parent=19 // pred_fallthru
          _
      $region20: #{stage1g_resblock_forward.11} parent=5 // pred_fallthru
        _
      %p196 = scmp.le.s32.totalorder 1, %s8
      %p197 = scmp.lt.s32.totalorder %s8, 5
      %p198 = pnand %p196, %p197
      %p199 = pneg %p198
      // Predicated region
      $region44: #{stage1g_resblock_forward.11} parent=5 // pred_check
        _
      $region45: #{stage1g_resblock_forward.11} parent=5 // pred_check_branch
        %201 = sbr.rel (%p198) target = $region47
      $region46: #{stage1g_resblock_forward.11} parent=5 // pred_region
        %s202 = ssub.s32 %s8, 1
        %s203 = sand.u32 %s37, 1
        %s204 = sand.u32 %s37, 1
        %s205 = smul.addr %s204, 192
        %s206 = scalar_lea.vmem [#allocation2], %s205
        // Predicated region
        $region48: #{stage1g_resblock_forward.11} parent=46 // pred_check
          %p207 = pneg %p50
        $region49: #{stage1g_resblock_forward.11} parent=46 // pred_check_branch
          %209 = sbr.rel (%p207) target = $region51
        $region50: #{stage1g_resblock_forward.11} parent=46 // pred_region
          _
        $region51: #{stage1g_resblock_forward.11} parent=46 // pred_fallthru
          _
        %s210 = sand.u32 %s37, 1
        %s211 = sand.u32 %s37, 1
        %s212 = smul.addr %s211, 192
        %s213 = scalar_lea.vmem [#allocation2], %s212
        %p214 = pneg %p50
        %p215 = pneg %p47
        %p216 = pneg %p71
        %p217 = pneg %p68
        %p218 = pneg %p99
        %p219 = pneg %p96
        %s220 = smul.u32 16, %s18
        %p221 = scmp.lt.s32.totalorder %s17, 1
        %s222 = scalar_select %p221, %s17, 1
        %p223 = scmp.lt.s32.totalorder %s220, 31
        %s224 = scalar_select %p223, %s220, 31
        %s225 = smul.addr %s222, 32
        %s226 = sadd.s32 %s224, %s225
        %s227 = smul.addr %s226, 4
        %s228 = scalar_lea.vmem %s2, %s227
        %s229 = smul.u32 %s17, 2
        %s230 = sadd.s32 %s229, %s18
        %s231 = smul.u32 16, %s230
        %s232 = smul.u32 16, %s18
        %p233 = scmp.lt.s32.totalorder %s17, 1
        %s234 = scalar_select %p233, %s17, 1
        %p235 = scmp.lt.s32.totalorder %s232, 31
        %s236 = scalar_select %p235, %s232, 31
        %s237 = smul.addr %s234, 32
        %s238 = sadd.s32 %s236, %s237
        %s239 = smul.addr %s238, 4
        %s240 = scalar_lea.vmem %s2, %s239
        %s241 = smul.u32 16, %s18
        %v243 = vld [vmem:[%s1] sm:$0x3]
        %v244 = vld [vmem:[%s206] sm:$0xff]
        %v245 = vld [vmem:[%s206 + $0x8] sm:$0xff]
        %v246 = vld [vmem:[%s206 + $0x10] sm:$0xff]
        %v247 = vld [vmem:[%s206 + $0x18] sm:$0xff]
        %v248 = vld [vmem:[%s206 + $0x20] sm:$0xff]
        %v249 = vld [vmem:[%s206 + $0x28] sm:$0xff]
        %v250 = vld [vmem:[%s206 + $0x30] sm:$0xff]
        %v251 = vld [vmem:[%s206 + $0x38] sm:$0xff]
        %v252 = vld [vmem:[%s206 + $0x40] sm:$0xff]
        %v253 = vld [vmem:[%s206 + $0x48] sm:$0xff]
        %v254 = vld [vmem:[%s206 + $0x50] sm:$0xff]
        %v255 = vld [vmem:[%s206 + $0x58] sm:$0xff]
        %v256 = vld [vmem:[%s206 + $0x60] sm:$0xff]
        %v257 = vld [vmem:[%s206 + $0x68] sm:$0xff]
        %v258 = vld [vmem:[%s206 + $0x70] sm:$0xff]
        %v259 = vld [vmem:[%s206 + $0x78] sm:$0xff]
        %v260 = vld [vmem:[%s206 + $0x80] sm:$0x11]
        %v261 = vld [vmem:[%s206 + $0x88] sm:$0x11]
        %v262 = vld [vmem:[%s206 + $0x90] sm:$0x11]
        %v263 = vld [vmem:[%s206 + $0x98] sm:$0x11]
        %v264 = vld [vmem:[%s206 + $0xa0] sm:$0x11]
        %v265 = vld [vmem:[%s206 + $0xa8] sm:$0x11]
        %v266 = vld [vmem:[%s206 + $0xb0] sm:$0x11]
        %v267 = vld [vmem:[%s206 + $0xb8] sm:$0x11]
        %v292 = vunpack.c.l.b16 %v244
        %v293 = vunpack.c.h.b16 %v244
        %v294 = vunpack.c.l.b16 %v245
        %v295 = vunpack.c.h.b16 %v245
        %v296 = vunpack.c.l.b16 %v246
        %v297 = vunpack.c.h.b16 %v246
        %v298 = vunpack.c.l.b16 %v247
        %v299 = vunpack.c.h.b16 %v247
        %v300 = vunpack.c.l.b16 %v248
        %v301 = vunpack.c.h.b16 %v248
        %v302 = vunpack.c.l.b16 %v249
        %v303 = vunpack.c.h.b16 %v249
        %v304 = vunpack.c.l.b16 %v250
        %v305 = vunpack.c.h.b16 %v250
        %v306 = vunpack.c.l.b16 %v251
        %v307 = vunpack.c.h.b16 %v251
        %v308 = vunpack.c.l.b16 %v252
        %v309 = vunpack.c.h.b16 %v252
        %v310 = vunpack.c.l.b16 %v253
        %v311 = vunpack.c.h.b16 %v253
        %v312 = vunpack.c.l.b16 %v254
        %v313 = vunpack.c.h.b16 %v254
        %v314 = vunpack.c.l.b16 %v255
        %v315 = vunpack.c.h.b16 %v255
        %v316 = vunpack.c.l.b16 %v256
        %v317 = vunpack.c.h.b16 %v256
        %v318 = vunpack.c.l.b16 %v257
        %v319 = vunpack.c.h.b16 %v257
        %v320 = vunpack.c.l.b16 %v258
        %v321 = vunpack.c.h.b16 %v258
        %v322 = vunpack.c.l.b16 %v259
        %v323 = vunpack.c.h.b16 %v259
        %v324 = vunpack.c.l.b16 %v260
        %v325 = vunpack.c.h.b16 %v260
        %v326 = vunpack.c.l.b16 %v261
        %v327 = vunpack.c.h.b16 %v261
        %v328 = vunpack.c.l.b16 %v262
        %v329 = vunpack.c.h.b16 %v262
        %v330 = vunpack.c.l.b16 %v263
        %v331 = vunpack.c.h.b16 %v263
        %v332 = vunpack.c.l.b16 %v264
        %v333 = vunpack.c.h.b16 %v264
        %v334 = vunpack.c.l.b16 %v265
        %v335 = vunpack.c.h.b16 %v265
        %v336 = vunpack.c.l.b16 %v266
        %v337 = vunpack.c.h.b16 %v266
        %v338 = vunpack.c.l.b16 %v267
        %v339 = vunpack.c.h.b16 %v267
        %v340 = vpack.c.b16 %v308, %v292
        %v341 = vpack.c.b16 %v309, %v293
        %v342 = vpack.c.b16 %v310, %v294
        %v343 = vpack.c.b16 %v311, %v295
        %v344 = vpack.c.b16 %v312, %v296
        %v345 = vpack.c.b16 %v313, %v297
        %v346 = vpack.c.b16 %v314, %v298
        %v347 = vpack.c.b16 %v315, %v299
        %v348 = vpack.c.b16 %v316, %v300
        %v349 = vpack.c.b16 %v317, %v301
        %v350 = vpack.c.b16 %v318, %v302
        %v351 = vpack.c.b16 %v319, %v303
        %v352 = vpack.c.b16 %v320, %v304
        %v353 = vpack.c.b16 %v321, %v305
        %v354 = vpack.c.b16 %v322, %v306
        %v355 = vpack.c.b16 %v323, %v307
        %v356 = vpack.c.b16 %v324, %v324
        %v357 = vpack.c.b16 %v325, %v325
        %v358 = vpack.c.b16 %v326, %v326
        %v359 = vpack.c.b16 %v327, %v327
        %v360 = vpack.c.b16 %v328, %v328
        %v361 = vpack.c.b16 %v329, %v329
        %v362 = vpack.c.b16 %v330, %v330
        %v363 = vpack.c.b16 %v331, %v331
        %v364 = vpack.c.b16 %v332, %v332
        %v365 = vpack.c.b16 %v333, %v333
        %v366 = vpack.c.b16 %v334, %v334
        %v367 = vpack.c.b16 %v335, %v335
        %v368 = vpack.c.b16 %v336, %v336
        %v369 = vpack.c.b16 %v337, %v337
        %v370 = vpack.c.b16 %v338, %v338
        %v371 = vpack.c.b16 %v339, %v339
        %vm388 = vcmask 146432
        %v390 = vsel %vm388, %v243, 0
        %vm392 = vcmask 1040384
        %v394 = vsel %vm392, %v356, 0
        %v397 = vsel %vm392, %v357, 0
        %v400 = vsel %vm392, %v358, 0
        %v403 = vsel %vm392, %v359, 0
        %v406 = vsel %vm392, %v360, 0
        %v409 = vsel %vm392, %v361, 0
        %v412 = vsel %vm392, %v362, 0
        %v415 = vsel %vm392, %v363, 0
        %v418 = vsel %vm392, %v364, 0
        %v421 = vsel %vm392, %v365, 0
        %v424 = vsel %vm392, %v366, 0
        %v427 = vsel %vm392, %v367, 0
        %v430 = vsel %vm392, %v368, 0
        %v433 = vsel %vm392, %v369, 0
        %v436 = vsel %vm392, %v370, 0
        %v439 = vsel %vm392, %v371, 0
        %441 = vmatprep.subr.bf16.mxu0 0
        %442 = vmatpush1.bf16.msra.mxu0 0
        %443 = vmatprep.subr.bf16.mxu0 0
        %444 = vmatpush1.bf16.msra.mxu0 0
        %445 = vmatprep.subr.bf16.mxu0 0
        %446 = vmatpush1.bf16.msra.mxu0 0
        %447 = vmatprep.subr.bf16.mxu0 0
        %448 = vmatpush1.bf16.msra.mxu0 0
        %449 = vmatprep.subr.bf16.mxu0 0
        %450 = vmatpush1.bf16.msra.mxu0 0
        %451 = vmatprep.subr.bf16.mxu0 0
        %452 = vmatpush1.bf16.msra.mxu0 0
        %453 = vmatprep.subr.bf16.mxu0 %v397
        %454 = vmatpush1.bf16.msra.mxu0 %v394
        %455 = vmatprep.subr.bf16.mxu0 %v341
        %456 = vmatpush1.bf16.msra.mxu0 %v340
        %457 = vmatprep.subr.bf16.mxu0 0
        %458 = vmatpush2.bf16.msra.mxu0 0
        %459 = vmatprep.subr.bf16.mxu0 0
        %460 = vmatpush2.bf16.msra.mxu0 0
        %461 = vmatprep.subr.bf16.mxu0 0
        %462 = vmatpush2.bf16.msra.mxu0 0
        %463 = vmatprep.subr.bf16.mxu0 0
        %464 = vmatpush2.bf16.msra.mxu0 0
        %465 = vmatprep.subr.bf16.mxu0 0
        %466 = vmatpush2.bf16.msra.mxu0 0
        %467 = vmatprep.subr.bf16.mxu0 0
        %468 = vmatpush2.bf16.msra.mxu0 0
        %469 = vmatprep.subr.bf16.mxu0 0
        %470 = vmatpush2.bf16.msra.mxu0 0
        %471 = vmatprep.subr.bf16.mxu0 0
        %472 = vmatpush2.bf16.msra.mxu0 0
        %473 = vmatprep.mubr.bf16.mxu0 0
        %474 = vmatmul.mubr.bf16.gmra.mxu0 %v390
        %v475 = vpop.f32.mrf.mxu0
        %v476 = vadd.f32 0.0, %v475
        %v477 = vpop.f32.mrf.mxu0
        %v478 = vadd.f32 0.0, %v477
        %v479 = vpop.f32.mrf.mxu0
        %v480 = vpop.f32.mrf.mxu0
        %481 = vdwg.mxu0
        %482 = vmatprep.subr.bf16.mxu0 0
        %483 = vmatpush1.bf16.msra.mxu0 0
        %484 = vmatprep.subr.bf16.mxu0 0
        %485 = vmatpush1.bf16.msra.mxu0 0
        %486 = vmatprep.subr.bf16.mxu0 0
        %487 = vmatpush1.bf16.msra.mxu0 0
        %488 = vmatprep.subr.bf16.mxu0 0
        %489 = vmatpush1.bf16.msra.mxu0 0
        %490 = vmatprep.subr.bf16.mxu0 0
        %491 = vmatpush1.bf16.msra.mxu0 0
        %492 = vmatprep.subr.bf16.mxu0 0
        %493 = vmatpush1.bf16.msra.mxu0 0
        %494 = vmatprep.subr.bf16.mxu0 %v403
        %495 = vmatpush1.bf16.msra.mxu0 %v400
        %496 = vmatprep.subr.bf16.mxu0 %v343
        %497 = vmatpush1.bf16.msra.mxu0 %v342
        %498 = vmatprep.subr.bf16.mxu0 0
        %499 = vmatpush2.bf16.msra.mxu0 0
        %500 = vmatprep.subr.bf16.mxu0 0
        %501 = vmatpush2.bf16.msra.mxu0 0
        %502 = vmatprep.subr.bf16.mxu0 0
        %503 = vmatpush2.bf16.msra.mxu0 0
        %504 = vmatprep.subr.bf16.mxu0 0
        %505 = vmatpush2.bf16.msra.mxu0 0
        %506 = vmatprep.subr.bf16.mxu0 0
        %507 = vmatpush2.bf16.msra.mxu0 0
        %508 = vmatprep.subr.bf16.mxu0 0
        %509 = vmatpush2.bf16.msra.mxu0 0
        %510 = vmatprep.subr.bf16.mxu0 0
        %511 = vmatpush2.bf16.msra.mxu0 0
        %512 = vmatprep.subr.bf16.mxu0 0
        %513 = vmatpush2.bf16.msra.mxu0 0
        %514 = vmatprep.mubr.bf16.mxu0 0
        %515 = vmatmul.mubr.bf16.gmra.mxu0 %v390
        %v516 = vpop.f32.mrf.mxu0
        %v517 = vadd.f32 0.0, %v516
        %v518 = vpop.f32.mrf.mxu0
        %v519 = vadd.f32 0.0, %v518
        %v520 = vpop.f32.mrf.mxu0
        %v521 = vpop.f32.mrf.mxu0
        %522 = vdwg.mxu0
        %523 = vmatprep.subr.bf16.mxu0 0
        %524 = vmatpush1.bf16.msra.mxu0 0
        %525 = vmatprep.subr.bf16.mxu0 0
        %526 = vmatpush1.bf16.msra.mxu0 0
        %527 = vmatprep.subr.bf16.mxu0 0
        %528 = vmatpush1.bf16.msra.mxu0 0
        %529 = vmatprep.subr.bf16.mxu0 0
        %530 = vmatpush1.bf16.msra.mxu0 0
        %531 = vmatprep.subr.bf16.mxu0 0
        %532 = vmatpush1.bf16.msra.mxu0 0
        %533 = vmatprep.subr.bf16.mxu0 0
        %534 = vmatpush1.bf16.msra.mxu0 0
        %535 = vmatprep.subr.bf16.mxu0 %v409
        %536 = vmatpush1.bf16.msra.mxu0 %v406
        %537 = vmatprep.subr.bf16.mxu0 %v345
        %538 = vmatpush1.bf16.msra.mxu0 %v344
        %539 = vmatprep.subr.bf16.mxu0 0
        %540 = vmatpush2.bf16.msra.mxu0 0
        %541 = vmatprep.subr.bf16.mxu0 0
        %542 = vmatpush2.bf16.msra.mxu0 0
        %543 = vmatprep.subr.bf16.mxu0 0
        %544 = vmatpush2.bf16.msra.mxu0 0
        %545 = vmatprep.subr.bf16.mxu0 0
        %546 = vmatpush2.bf16.msra.mxu0 0
        %547 = vmatprep.subr.bf16.mxu0 0
        %548 = vmatpush2.bf16.msra.mxu0 0
        %549 = vmatprep.subr.bf16.mxu0 0
        %550 = vmatpush2.bf16.msra.mxu0 0
        %551 = vmatprep.subr.bf16.mxu0 0
        %552 = vmatpush2.bf16.msra.mxu0 0
        %553 = vmatprep.subr.bf16.mxu0 0
        %554 = vmatpush2.bf16.msra.mxu0 0
        %555 = vmatprep.mubr.bf16.mxu0 0
        %556 = vmatmul.mubr.bf16.gmra.mxu0 %v390
        %v557 = vpop.f32.mrf.mxu0
        %v558 = vadd.f32 0.0, %v557
        %v559 = vpop.f32.mrf.mxu0
        %v560 = vadd.f32 0.0, %v559
        %v561 = vpop.f32.mrf.mxu0
        %v562 = vpop.f32.mrf.mxu0
        %563 = vdwg.mxu0
        %564 = vmatprep.subr.bf16.mxu0 0
        %565 = vmatpush1.bf16.msra.mxu0 0
        %566 = vmatprep.subr.bf16.mxu0 0
        %567 = vmatpush1.bf16.msra.mxu0 0
        %568 = vmatprep.subr.bf16.mxu0 0
        %569 = vmatpush1.bf16.msra.mxu0 0
        %570 = vmatprep.subr.bf16.mxu0 0
        %571 = vmatpush1.bf16.msra.mxu0 0
        %572 = vmatprep.subr.bf16.mxu0 0
        %573 = vmatpush1.bf16.msra.mxu0 0
        %574 = vmatprep.subr.bf16.mxu0 0
        %575 = vmatpush1.bf16.msra.mxu0 0
        %576 = vmatprep.subr.bf16.mxu0 %v415
        %577 = vmatpush1.bf16.msra.mxu0 %v412
        %578 = vmatprep.subr.bf16.mxu0 %v347
        %579 = vmatpush1.bf16.msra.mxu0 %v346
        %580 = vmatprep.subr.bf16.mxu0 0
        %581 = vmatpush2.bf16.msra.mxu0 0
        %582 = vmatprep.subr.bf16.mxu0 0
        %583 = vmatpush2.bf16.msra.mxu0 0
        %584 = vmatprep.subr.bf16.mxu0 0
        %585 = vmatpush2.bf16.msra.mxu0 0
        %586 = vmatprep.subr.bf16.mxu0 0
        %587 = vmatpush2.bf16.msra.mxu0 0
        %588 = vmatprep.subr.bf16.mxu0 0
        %589 = vmatpush2.bf16.msra.mxu0 0
        %590 = vmatprep.subr.bf16.mxu0 0
        %591 = vmatpush2.bf16.msra.mxu0 0
        %592 = vmatprep.subr.bf16.mxu0 0
        %593 = vmatpush2.bf16.msra.mxu0 0
        %594 = vmatprep.subr.bf16.mxu0 0
        %595 = vmatpush2.bf16.msra.mxu0 0
        %596 = vmatprep.mubr.bf16.mxu0 0
        %597 = vmatmul.mubr.bf16.gmra.mxu0 %v390
        %v598 = vpop.f32.mrf.mxu0
        %v599 = vadd.f32 0.0, %v598
        %v600 = vpop.f32.mrf.mxu0
        %v601 = vadd.f32 0.0, %v600
        %v602 = vpop.f32.mrf.mxu0
        %v603 = vpop.f32.mrf.mxu0
        %604 = vdwg.mxu0
        %605 = vmatprep.subr.bf16.mxu0 0
        %606 = vmatpush1.bf16.msra.mxu0 0
        %607 = vmatprep.subr.bf16.mxu0 0
        %608 = vmatpush1.bf16.msra.mxu0 0
        %609 = vmatprep.subr.bf16.mxu0 0
        %610 = vmatpush1.bf16.msra.mxu0 0
        %611 = vmatprep.subr.bf16.mxu0 0
        %612 = vmatpush1.bf16.msra.mxu0 0
        %613 = vmatprep.subr.bf16.mxu0 0
        %614 = vmatpush1.bf16.msra.mxu0 0
        %615 = vmatprep.subr.bf16.mxu0 0
        %616 = vmatpush1.bf16.msra.mxu0 0
        %617 = vmatprep.subr.bf16.mxu0 %v421
        %618 = vmatpush1.bf16.msra.mxu0 %v418
        %619 = vmatprep.subr.bf16.mxu0 %v349
        %620 = vmatpush1.bf16.msra.mxu0 %v348
        %621 = vmatprep.subr.bf16.mxu0 0
        %622 = vmatpush2.bf16.msra.mxu0 0
        %623 = vmatprep.subr.bf16.mxu0 0
        %624 = vmatpush2.bf16.msra.mxu0 0
        %625 = vmatprep.subr.bf16.mxu0 0
        %626 = vmatpush2.bf16.msra.mxu0 0
        %627 = vmatprep.subr.bf16.mxu0 0
        %628 = vmatpush2.bf16.msra.mxu0 0
        %629 = vmatprep.subr.bf16.mxu0 0
        %630 = vmatpush2.bf16.msra.mxu0 0
        %631 = vmatprep.subr.bf16.mxu0 0
        %632 = vmatpush2.bf16.msra.mxu0 0
        %633 = vmatprep.subr.bf16.mxu0 0
        %634 = vmatpush2.bf16.msra.mxu0 0
        %635 = vmatprep.subr.bf16.mxu0 0
        %636 = vmatpush2.bf16.msra.mxu0 0
        %637 = vmatprep.mubr.bf16.mxu0 0
        %638 = vmatmul.mubr.bf16.gmra.mxu0 %v390
        %v639 = vpop.f32.mrf.mxu0
        %v640 = vadd.f32 0.0, %v639
        %v641 = vpop.f32.mrf.mxu0
        %v642 = vadd.f32 0.0, %v641
        %v643 = vpop.f32.mrf.mxu0
        %v644 = vpop.f32.mrf.mxu0
        %645 = vdwg.mxu0
        %646 = vmatprep.subr.bf16.mxu0 0
        %647 = vmatpush1.bf16.msra.mxu0 0
        %648 = vmatprep.subr.bf16.mxu0 0
        %649 = vmatpush1.bf16.msra.mxu0 0
        %650 = vmatprep.subr.bf16.mxu0 0
        %651 = vmatpush1.bf16.msra.mxu0 0
        %652 = vmatprep.subr.bf16.mxu0 0
        %653 = vmatpush1.bf16.msra.mxu0 0
        %654 = vmatprep.subr.bf16.mxu0 0
        %655 = vmatpush1.bf16.msra.mxu0 0
        %656 = vmatprep.subr.bf16.mxu0 0
        %657 = vmatpush1.bf16.msra.mxu0 0
        %658 = vmatprep.subr.bf16.mxu0 %v427
        %659 = vmatpush1.bf16.msra.mxu0 %v424
        %660 = vmatprep.subr.bf16.mxu0 %v351
        %661 = vmatpush1.bf16.msra.mxu0 %v350
        %662 = vmatprep.subr.bf16.mxu0 0
        %663 = vmatpush2.bf16.msra.mxu0 0
        %664 = vmatprep.subr.bf16.mxu0 0
        %665 = vmatpush2.bf16.msra.mxu0 0
        %666 = vmatprep.subr.bf16.mxu0 0
        %667 = vmatpush2.bf16.msra.mxu0 0
        %668 = vmatprep.subr.bf16.mxu0 0
        %669 = vmatpush2.bf16.msra.mxu0 0
        %670 = vmatprep.subr.bf16.mxu0 0
        %671 = vmatpush2.bf16.msra.mxu0 0
        %672 = vmatprep.subr.bf16.mxu0 0
        %673 = vmatpush2.bf16.msra.mxu0 0
        %674 = vmatprep.subr.bf16.mxu0 0
        %675 = vmatpush2.bf16.msra.mxu0 0
        %676 = vmatprep.subr.bf16.mxu0 0
        %677 = vmatpush2.bf16.msra.mxu0 0
        %678 = vmatprep.mubr.bf16.mxu0 0
        %679 = vmatmul.mubr.bf16.gmra.mxu0 %v390
        %v680 = vpop.f32.mrf.mxu0
        %v681 = vadd.f32 0.0, %v680
        %v682 = vpop.f32.mrf.mxu0
        %v683 = vadd.f32 0.0, %v682
        %v684 = vpop.f32.mrf.mxu0
        %v685 = vpop.f32.mrf.mxu0
        %686 = vdwg.mxu0
        %687 = vmatprep.subr.bf16.mxu0 0
        %688 = vmatpush1.bf16.msra.mxu0 0
        %689 = vmatprep.subr.bf16.mxu0 0
        %690 = vmatpush1.bf16.msra.mxu0 0
        %691 = vmatprep.subr.bf16.mxu0 0
        %692 = vmatpush1.bf16.msra.mxu0 0
        %693 = vmatprep.subr.bf16.mxu0 0
        %694 = vmatpush1.bf16.msra.mxu0 0
        %695 = vmatprep.subr.bf16.mxu0 0
        %696 = vmatpush1.bf16.msra.mxu0 0
        %697 = vmatprep.subr.bf16.mxu0 0
        %698 = vmatpush1.bf16.msra.mxu0 0
        %699 = vmatprep.subr.bf16.mxu0 %v433
        %700 = vmatpush1.bf16.msra.mxu0 %v430
        %701 = vmatprep.subr.bf16.mxu0 %v353
        %702 = vmatpush1.bf16.msra.mxu0 %v352
        %703 = vmatprep.subr.bf16.mxu0 0
        %704 = vmatpush2.bf16.msra.mxu0 0
        %705 = vmatprep.subr.bf16.mxu0 0
        %706 = vmatpush2.bf16.msra.mxu0 0
        %707 = vmatprep.subr.bf16.mxu0 0
        %708 = vmatpush2.bf16.msra.mxu0 0
        %709 = vmatprep.subr.bf16.mxu0 0
        %710 = vmatpush2.bf16.msra.mxu0 0
        %711 = vmatprep.subr.bf16.mxu0 0
        %712 = vmatpush2.bf16.msra.mxu0 0
        %713 = vmatprep.subr.bf16.mxu0 0
        %714 = vmatpush2.bf16.msra.mxu0 0
        %715 = vmatprep.subr.bf16.mxu0 0
        %716 = vmatpush2.bf16.msra.mxu0 0
        %717 = vmatprep.subr.bf16.mxu0 0
        %718 = vmatpush2.bf16.msra.mxu0 0
        %719 = vmatprep.mubr.bf16.mxu0 0
        %720 = vmatmul.mubr.bf16.gmra.mxu0 %v390
        %v721 = vpop.f32.mrf.mxu0
        %v722 = vadd.f32 0.0, %v721
        %v723 = vpop.f32.mrf.mxu0
        %v724 = vadd.f32 0.0, %v723
        %v725 = vpop.f32.mrf.mxu0
        %v726 = vpop.f32.mrf.mxu0
        %727 = vdwg.mxu0
        %728 = vmatprep.subr.bf16.mxu0 0
        %729 = vmatpush1.bf16.msra.mxu0 0
        %730 = vmatprep.subr.bf16.mxu0 0
        %731 = vmatpush1.bf16.msra.mxu0 0
        %732 = vmatprep.subr.bf16.mxu0 0
        %733 = vmatpush1.bf16.msra.mxu0 0
        %734 = vmatprep.subr.bf16.mxu0 0
        %735 = vmatpush1.bf16.msra.mxu0 0
        %736 = vmatprep.subr.bf16.mxu0 0
        %737 = vmatpush1.bf16.msra.mxu0 0
        %738 = vmatprep.subr.bf16.mxu0 0
        %739 = vmatpush1.bf16.msra.mxu0 0
        %740 = vmatprep.subr.bf16.mxu0 %v439
        %741 = vmatpush1.bf16.msra.mxu0 %v436
        %742 = vmatprep.subr.bf16.mxu0 %v355
        %743 = vmatpush1.bf16.msra.mxu0 %v354
        %744 = vmatprep.subr.bf16.mxu0 0
        %745 = vmatpush2.bf16.msra.mxu0 0
        %746 = vmatprep.subr.bf16.mxu0 0
        %747 = vmatpush2.bf16.msra.mxu0 0
        %748 = vmatprep.subr.bf16.mxu0 0
        %749 = vmatpush2.bf16.msra.mxu0 0
        %750 = vmatprep.subr.bf16.mxu0 0
        %751 = vmatpush2.bf16.msra.mxu0 0
        %752 = vmatprep.subr.bf16.mxu0 0
        %753 = vmatpush2.bf16.msra.mxu0 0
        %754 = vmatprep.subr.bf16.mxu0 0
        %755 = vmatpush2.bf16.msra.mxu0 0
        %756 = vmatprep.subr.bf16.mxu0 0
        %757 = vmatpush2.bf16.msra.mxu0 0
        %758 = vmatprep.subr.bf16.mxu0 0
        %759 = vmatpush2.bf16.msra.mxu0 0
        %760 = vmatprep.mubr.bf16.mxu0 0
        %761 = vmatmul.mubr.bf16.gmra.mxu0 %v390
        %v762 = vpop.f32.mrf.mxu0
        %v763 = vadd.f32 0.0, %v762
        %v764 = vpop.f32.mrf.mxu0
        %v765 = vadd.f32 0.0, %v764
        %v766 = vpop.f32.mrf.mxu0
        %v767 = vpop.f32.mrf.mxu0
        %768 = vdwg.mxu0
        %v769 = vtanh.pop %v476
        %v770 = vtanh.pop %v478
        %v771 = vtanh.pop %v517
        %v772 = vtanh.pop %v519
        %v773 = vtanh.pop %v558
        %v774 = vtanh.pop %v560
        %v775 = vtanh.pop %v599
        %v776 = vtanh.pop %v601
        %v777 = vtanh.pop %v640
        %v778 = vtanh.pop %v642
        %v779 = vtanh.pop %v681
        %v780 = vtanh.pop %v683
        %v781 = vtanh.pop %v722
        %v782 = vtanh.pop %v724
        %v783 = vtanh.pop %v763
        %v784 = vtanh.pop %v765
        %v801 = vcombine.low %v769, %v770
        %v802 = vcombine.low %v771, %v772
        %v803 = vcombine.low %v773, %v774
        %v804 = vcombine.low %v775, %v776
        %v805 = vcombine.low %v777, %v778
        %v806 = vcombine.low %v779, %v780
        %v807 = vcombine.low %v781, %v782
        %v808 = vcombine.low %v783, %v784
        %817 = vst [vmem:[%s240] sm:$0x77] %v801
        %818 = vst [vmem:[%s240 + $0x8] sm:$0x77] %v802
        %819 = vst [vmem:[%s240 + $0x10] sm:$0x77] %v803
        %820 = vst [vmem:[%s240 + $0x18] sm:$0x77] %v804
        %821 = vst [vmem:[%s240 + $0x20] sm:$0x77] %v805
        %822 = vst [vmem:[%s240 + $0x28] sm:$0x77] %v806
        %823 = vst [vmem:[%s240 + $0x30] sm:$0x77] %v807
        %824 = vst [vmem:[%s240 + $0x38] sm:$0x77] %v808
        %s825 = smul.u32 16, %s18
        %p826 = scmp.lt.s32.totalorder %s17, 1
        %s827 = scalar_select %p826, %s17, 1
        %p828 = scmp.lt.s32.totalorder %s825, 31
        %s829 = scalar_select %p828, %s825, 31
        %s830 = smul.addr %s827, 32
        %s831 = sadd.s32 %s829, %s830
        %s832 = smul.addr %s831, 4
        %s833 = scalar_lea.vmem %s2, %s832
        // Predicated region
        $region52: #{stage1g_resblock_forward.11} parent=46 // pred_check
          %p834 = pneg %p96
        $region53: #{stage1g_resblock_forward.11} parent=46 // pred_check_branch
          %836 = sbr.rel (%p834) target = $region55
        $region54: #{stage1g_resblock_forward.11} parent=46 // pred_region
          %s837 = smul.u32 16, %s18
        $region55: #{stage1g_resblock_forward.11} parent=46 // pred_fallthru
          _
      $region47: #{stage1g_resblock_forward.11} parent=5 // pred_fallthru
        _
      %p838 = scmp.le.s32.totalorder 2, %s8
      // Predicated region
      $region56: #{stage1g_resblock_forward.11} parent=5 // pred_check
        %p839 = pneg %p838
      $region57: #{stage1g_resblock_forward.11} parent=5 // pred_check_branch
        %841 = sbr.rel (%p839) target = $region59
      $region58: #{stage1g_resblock_forward.11} parent=5 // pred_region
        %s842 = ssub.s32 %s8, 2
        // Predicated region
        $region60: #{stage1g_resblock_forward.11} parent=58 // pred_check
          %p843 = pneg %p102
        $region61: #{stage1g_resblock_forward.11} parent=58 // pred_check_branch
          %845 = sbr.rel (%p843) target = $region63
        $region62: #{stage1g_resblock_forward.11} parent=58 // pred_region
          %s846 = smul.u32 16, %s20
          %p847 = scmp.lt.s32.totalorder %s19, 1
          %s848 = scalar_select %p847, %s19, 1
          %p849 = scmp.lt.s32.totalorder %s846, 31
          %s850 = scalar_select %p849, %s846, 31
          %s851 = smul.addr %s848, 32
          %s852 = sadd.s32 %s850, %s851
          %s853 = smul.addr %s852, 4
          %s854 = scalar_lea.vmem %s2, %s853
        $region63: #{stage1g_resblock_forward.11} parent=58 // pred_fallthru
          _
      $region59: #{stage1g_resblock_forward.11} parent=5 // pred_fallthru
        _
    $region6: #{stage1g_resblock_forward.11} parent=1 // loop_footer
      %s12 = sadd.s32 1, %s8
    $region7: #{stage1g_resblock_forward.11} parent=1 // loop_footer_branch
      %7 = sbr.rel target = $region3
    $region8: #{stage1g_resblock_forward.11} parent=1 // loop_exit
      _

</llo_original>
